<compile_context>
chip_gen: v7x
topology: tpu7x:2x2x1
jax: 0.10.0
libtpu: 0.0.40
codegen_flags: <defaults>
</compile_context>

<pallas_src>
import functools

import jax
import jax.numpy as jnp
from jax import lax
from jax.experimental import pallas as pl
from jax.experimental.pallas import tpu as pltpu


def _round_up(x, m):
    return (x + m - 1) // m * m


# ----------------------------------------------------------------------------
# Pallas kernel: one grid step == one slab t (all heads + FF fused, uniform work)
# ----------------------------------------------------------------------------
def encoder_layer_kernel(
    x_ref,        # (1, BQ, Dp)  f32   slab t, batch-major rows, zero-padded lanes >= D
    rk_ref,       # (H, R, Dh)   bf16  r @ Wr per head (hoisted to wrapper)
    mb_ref,       # (1, B, 1, K) f32   additive mask bias (0 / -1e30)
    wqkv_ref,     # (Dp, 3*H*Dh) bf16  fused [Wq | Wk | Wv]
    wo_ref,       # (H, Dh, Dp)  bf16  output projection, split per head
    rwb_ref,      # (1, H*Dh)    f32   r_w_bias
    rrb_ref,      # (1, H*Dh)    f32   r_r_bias
    ln1g_ref, ln1b_ref,              # (1, Dp) f32 attn layer-norm (zero padded)
    w1_ref,       # (Dp, Dip)    bf16
    b1_ref,       # (1, Dip)     f32
    w2_ref,       # (Dip, Dp)    bf16
    b2_ref,       # (1, Dp)      f32
    ln2g_ref, ln2b_ref,              # (1, Dp) f32 FF layer-norm
    out_ref,      # (1, BQ, Dp)  f32
    *, qlen, bsz, n_head, d_head, d_model, scale, eps,
):
    Q, B, H, Dh, D = qlen, bsz, n_head, d_head, d_model
    K = Q
    R = rk_ref.shape[1]
    BQ = B * Q
    HD = H * Dh
    Dp = x_ref.shape[-1]
    bf = jnp.bfloat16
    f32 = jnp.float32

    x = x_ref[0]                                        # (BQ, Dp) f32
    xb = x.astype(bf)

    # Fused Q/K/V projection: one MXU matmul filling the whole 3*H*Dh output.
    qkv = jnp.dot(xb, wqkv_ref[...], preferred_element_type=f32)     # (BQ, 3*HD)

    rwb = rwb_ref[...]
    rrb = rrb_ref[...]
    mb = mb_ref[0]                                      # (B, 1, K)

    ac_list, bd_list, v_list = [], [], []
    for h in range(H):                                  # static unroll over heads
        q_h = qkv[:, h * Dh:(h + 1) * Dh]               # (BQ, Dh)
        k_h = qkv[:, HD + h * Dh:HD + (h + 1) * Dh]
        v_h = qkv[:, 2 * HD + h * Dh:2 * HD + (h + 1) * Dh]

        # fold 1/sqrt(Dh) into the queries (cheapest place to scale)
        rwq = ((q_h + rwb[:, h * Dh:(h + 1) * Dh]) * scale).astype(bf)
        rrq = ((q_h + rrb[:, h * Dh:(h + 1) * Dh]) * scale).astype(bf)

        k3 = k_h.reshape(B, K, Dh).astype(bf)
        ac_list.append(
            jnp.einsum('bqd,bkd->bqk', rwq.reshape(B, Q, Dh), k3,
                       preferred_element_type=f32))                   # (B, Q, K)
        bd_un_h = lax.dot_general(rrq, rk_ref[h], (((1,), (1,)), ((), ())),
                                  preferred_element_type=f32)         # (BQ, R)
        bd_list.append(bd_un_h.reshape(B, Q, R))
        v_list.append(v_h.reshape(B, K, Dh).astype(bf))

    ac = jnp.stack(ac_list, axis=0)                     # (H, B, Q, K)
    bd_un = jnp.stack(bd_list, axis=0)                  # (H, B, Q, R)

    # _rel_shift (exact, incl. the torch wrap-around artifact):
    #   shifted[i, j] = ext[i, Q-1-i+j] with ext row = [bd_un[i] | 0 | bd_un[i+1]]
    bd_dn = jnp.concatenate(
        [bd_un[:, :, 1:, :], jnp.zeros((H, B, 1, R), f32)], axis=2)
    ext = jnp.concatenate(
        [bd_un, jnp.zeros((H, B, Q, 1), f32), bd_dn], axis=3)         # (H,B,Q,2R+1)
    rows = [ext[:, :, i:i + 1, Q - 1 - i:Q - 1 - i + K] for i in range(Q)]
    bd = jnp.concatenate(rows, axis=2)                  # (H, B, Q, K)

    # Scores (already scaled via q), additive mask bias, softmax over keys.
    score = ac + bd + mb                                # mb (B,1,K) broadcasts
    s_max = jnp.max(score, axis=-1, keepdims=True)
    e = jnp.exp(score - s_max)
    prob = e * pl.reciprocal(jnp.sum(e, axis=-1, keepdims=True), approx=True)

    # prob @ V per head, folded straight into the (BQ, Dp) attention output.
    attn_out = jnp.zeros((BQ, Dp), f32)
    for h in range(H):
        pv = jnp.einsum('bqk,bkd->bqd', prob[h].astype(bf), v_list[h],
                        preferred_element_type=f32)      # (B, Q, Dh)
        attn_out = attn_out + jnp.dot(pv.reshape(BQ, Dh).astype(bf), wo_ref[h],
                                      preferred_element_type=f32)

    # Masked layer norm over the true D columns (padded lanes are exactly zero).
    lane = lax.broadcasted_iota(jnp.int32, (1, Dp), 1)
    dmask = (lane < D).astype(f32)
    inv_d = 1.0 / D

    def layer_norm(y, g, b):
        mu = jnp.sum(y, axis=-1, keepdims=True) * inv_d
        yc = (y - mu) * dmask
        var = jnp.sum(yc * yc, axis=-1, keepdims=True) * inv_d
        return yc * lax.rsqrt(var + eps) * g + b

    h1 = layer_norm(x + attn_out, ln1g_ref[...], ln1b_ref[...])       # post-LN

    # PositionwiseFF (post-LN); padded rows/cols of w1/w2/b1/b2 are zero.
    ff = jnp.dot(h1.astype(bf), w1_ref[...], preferred_element_type=f32) + b1_ref[...]
    ff = jnp.maximum(ff, 0.0)
    ff = jnp.dot(ff.astype(bf), w2_ref[...], preferred_element_type=f32) + b2_ref[...]
    out_ref[0] = layer_norm(h1 + ff, ln2g_ref[...], ln2b_ref[...])


# ----------------------------------------------------------------------------
# Wrapper
# ----------------------------------------------------------------------------
def rel_encoder_layer_pallas(enc_inp, r, enc_attn_mask, params, *, n_head, d_head,
                             eps=1e-5):
    # enc_inp: (N, qlen, bsz, d_model) torch layout, r: (rlen, d_model),
    # enc_attn_mask: (N, klen, bsz) int (1 == masked).
    N, Q, B, D = enc_inp.shape
    R = r.shape[0]
    K = Q
    BQ = B * Q
    H, Dh = n_head, d_head
    HD = H * Dh
    Di = params["w1"].shape[1]
    assert R >= K, "rlen must be >= klen"

    f32, bf16 = jnp.float32, jnp.bfloat16
    Dp = _round_up(D, 128)    # lane-dense stores / MXU-aligned contractions
    Dip = _round_up(Di, 128)

    def padf(a, rows, cols, dtype):
        a = a.astype(f32)
        return jnp.pad(a, ((0, rows - a.shape[0]), (0, cols - a.shape[1]))).astype(dtype)

    # Batch-major slabs, zero-padded model dim; additive mask bias precomputed.
    x = jnp.transpose(enc_inp, (0, 2, 1, 3)).reshape(N, BQ, D).astype(f32)
    x = jnp.pad(x, ((0, 0), (0, 0), (0, Dp - D)))
    mask_bias = jnp.where(jnp.transpose(enc_attn_mask, (0, 2, 1)) == 1,
                          -1e30, 0.0).astype(f32).reshape(N, B, 1, K)

    # Hoisted: r @ Wr, per head (independent of the slab index).
    rk = (r.astype(f32) @ params["wr"].astype(f32)).reshape(R, H, Dh)
    rk = jnp.transpose(rk, (1, 0, 2)).astype(bf16)                     # (H, R, Dh)

    wqkv = jnp.concatenate([params["wq"], params["wk"], params["wv"]], axis=1)
    wqkv = padf(wqkv, Dp, 3 * HD, bf16)                                # (Dp, 3HD)
    wo = padf(params["wo"], HD, Dp, bf16).reshape(H, Dh, Dp)           # (H, Dh, Dp)
    rwb = params["r_w_bias"].reshape(1, HD).astype(f32)
    rrb = params["r_r_bias"].reshape(1, HD).astype(f32)
    ln1g = padf(params["ln1_g"], 1, Dp, f32)
    ln1b = padf(params["ln1_b"], 1, Dp, f32)
    w1 = padf(params["w1"], Dp, Dip, bf16)
    b1 = padf(params["b1"], 1, Dip, f32)
    w2 = padf(params["w2"], Dip, Dp, bf16)
    b2 = padf(params["b2"], 1, Dp, f32)
    ln2g = padf(params["ln2_g"], 1, Dp, f32)
    ln2b = padf(params["ln2_b"], 1, Dp, f32)

    kernel = functools.partial(
        encoder_layer_kernel, qlen=Q, bsz=B, n_head=H, d_head=Dh, d_model=D,
        scale=1.0 / (Dh ** 0.5), eps=eps)

    slab3 = lambda t: (t, 0, 0)
    slab4 = lambda t: (t, 0, 0, 0)
    c2 = lambda t: (0, 0)
    c3 = lambda t: (0, 0, 0)

    in_specs = [
        pl.BlockSpec((1, BQ, Dp), slab3),       # x
        pl.BlockSpec((H, R, Dh), c3),           # rk (hoisted r @ Wr)
        pl.BlockSpec((1, B, 1, K), slab4),      # mask bias
        pl.BlockSpec((Dp, 3 * HD), c2),         # fused Wqkv
        pl.BlockSpec((H, Dh, Dp), c3),          # Wo
        pl.BlockSpec((1, HD), c2),              # r_w_bias
        pl.BlockSpec((1, HD), c2),              # r_r_bias
        pl.BlockSpec((1, Dp), c2),              # ln1 gamma
        pl.BlockSpec((1, Dp), c2),              # ln1 beta
        pl.BlockSpec((Dp, Dip), c2),            # FF w1
        pl.BlockSpec((1, Dip), c2),             # FF b1
        pl.BlockSpec((Dip, Dp), c2),            # FF w2
        pl.BlockSpec((1, Dp), c2),              # FF b2
        pl.BlockSpec((1, Dp), c2),              # ln2 gamma
        pl.BlockSpec((1, Dp), c2),              # ln2 beta
    ]

    out = pl.pallas_call(
        kernel,
        out_shape=jax.ShapeDtypeStruct((N, BQ, Dp), f32),
        grid_spec=pltpu.PrefetchScalarGridSpec(
            num_scalar_prefetch=0,
            grid=(N,),
            in_specs=in_specs,
            out_specs=pl.BlockSpec((1, BQ, Dp), slab3),
        ),
        compiler_params=pltpu.CompilerParams(
            dimension_semantics=("parallel",)),
    )(x, rk, mask_bias, wqkv, wo, rwb, rrb,
      ln1g, ln1b, w1, b1, w2, b2, ln2g, ln2b)

    # drop padding, back to torch layout (N, qlen, bsz, d_model)
    out = out[:, :, :D].reshape(N, B, Q, D)
    return jnp.transpose(out, (0, 2, 1, 3))


# ----------------------------------------------------------------------------
# Pure-JAX reference (mirrors the torch forward literally, torch layout, f32)
# ----------------------------------------------------------------------------
def _rel_shift_ref(x, cut_len):
    Qd, Rd, Bd, Hd = x.shape
    zp = jnp.zeros((Qd, 1, Bd, Hd), x.dtype)
    xp = jnp.concatenate([zp, x], axis=1)
    xp = xp.reshape(Rd + 1, Qd, Bd, Hd)
    x = xp[1:].reshape(Qd, Rd, Bd, Hd)
    return x[:, 0:cut_len]


def reference_forward(enc_inp, r, enc_attn_mask, p, *, n_head, d_head):
    N, Q, B, D = enc_inp.shape
    R = r.shape[0]
    scale = 1.0 / (d_head ** 0.5)
    eps = 1e-5

    def layer_norm(x, g, b):
        mu = jnp.mean(x, axis=-1, keepdims=True)
        var = jnp.mean((x - mu) ** 2, axis=-1, keepdims=True)
        return (x - mu) / jnp.sqrt(var + eps) * g + b

    outs = []
    for t in range(N):
        h = enc_inp[t]                                    # (Q, B, D)
        q = h @ p["wq"]
        k = h @ p["wk"]
        v = h @ p["wv"]
        rk = r @ p["wr"]
        qh = q.reshape(Q, B, n_head, d_head)
        kh = k.reshape(Q, B, n_head, d_head)
        vh = v.reshape(Q, B, n_head, d_head)
        rkh = rk.reshape(R, n_head, d_head)
        AC = jnp.einsum("ibnd,jbnd->ijbn", qh + p["r_w_bias"], kh)
        BD = jnp.einsum("ibnd,jnd->ijbn", qh + p["r_r_bias"], rkh)
        BD = _rel_shift_ref(BD, Q)
        score = (AC + BD) * scale
        mt = enc_attn_mask[t]                             # (K, B)
        score = jnp.where((mt == 1)[None, :, :, None], jnp.float32(-1e30), score)
        prob = jax.nn.softmax(score, axis=1)
        attn_vec = jnp.einsum("ijbn,jbnd->ibnd", prob, vh).reshape(Q, B, n_head * d_head)
        attn_out = attn_vec @ p["wo"]
        h1 = layer_norm(h + attn_out, p["ln1_g"], p["ln1_b"])
        ff = jnp.maximum(h1 @ p["w1"] + p["b1"], 0.0) @ p["w2"] + p["b2"]
        outs.append(layer_norm(h1 + ff, p["ln2_g"], p["ln2_b"]))
    return jnp.stack(outs)


# ----------------------------------------------------------------------------
# Main
# ----------------------------------------------------------------------------
if __name__ == "__main__":
    N, qlen, bsz = 2, 8, 2
    d_model, n_head, d_head, d_inner = 32, 4, 8, 64
    rlen = qlen  # no mems -> klen == qlen

    key = jax.random.PRNGKey(0)
    ks = jax.random.split(key, 16)
    std = 0.02

    params = {
        "wq": std * jax.random.normal(ks[0], (d_model, n_head * d_head), jnp.float32),
        "wk": std * jax.random.normal(ks[1], (d_model, n_head * d_head), jnp.float32),
        "wv": std * jax.random.normal(ks[2], (d_model, n_head * d_head), jnp.float32),
        "wr": std * jax.random.normal(ks[3], (d_model, n_head * d_head), jnp.float32),
        "wo": std * jax.random.normal(ks[4], (n_head * d_head, d_model), jnp.float32),
        "r_w_bias": std * jax.random.normal(ks[5], (n_head, d_head), jnp.float32),
        "r_r_bias": std * jax.random.normal(ks[6], (n_head, d_head), jnp.float32),
        "ln1_g": 1.0 + 0.1 * jax.random.normal(ks[7], (1, d_model), jnp.float32),
        "ln1_b": 0.1 * jax.random.normal(ks[8], (1, d_model), jnp.float32),
        "w1": std * jax.random.normal(ks[9], (d_model, d_inner), jnp.float32),
        "b1": 0.1 * jax.random.normal(ks[10], (1, d_inner), jnp.float32),
        "w2": std * jax.random.normal(ks[11], (d_inner, d_model), jnp.float32),
        "b2": 0.1 * jax.random.normal(ks[12], (1, d_model), jnp.float32),
        "ln2_g": 1.0 + 0.1 * jax.random.normal(ks[13], (1, d_model), jnp.float32),
        "ln2_b": 0.1 * jax.random.normal(ks[14], (1, d_model), jnp.float32),
    }

    dk = jax.random.split(ks[15], 2)
    enc_inp = jax.random.normal(dk[0], (N, qlen, bsz, d_model), jnp.float32)
    r = jax.random.normal(dk[1], (rlen, d_model), jnp.float32)
    # mask layout (N, klen, bsz), 1 == masked; mask the last key of slab 0 only
    enc_attn_mask = jnp.zeros((N, qlen, bsz), jnp.int32).at[0, qlen - 1, :].set(1)

    out = rel_encoder_layer_pallas(enc_inp, r, enc_attn_mask, params,
                                   n_head=n_head, d_head=d_head)
    out = jax.block_until_ready(out)

    ref = reference_forward(enc_inp, r, enc_attn_mask, params,
                            n_head=n_head, d_head=d_head)
    ref = jax.block_until_ready(ref)

    assert out.shape == (N, qlen, bsz, d_model)
    assert bool(jnp.allclose(out, ref, rtol=2e-2, atol=2e-2)), "mismatch vs reference"

    print("KERNEL_OK")
</pallas_src>

<mosaic_0001>
module attributes {stable_mosaic.version = 11 : i64} {
  func.func @encoder_layer_kernel(%arg0: i32, %arg1: memref<1x16x128xf32, #tpu.memory_space<vmem>>, %arg2: memref<4x8x8xbf16, #tpu.memory_space<vmem>>, %arg3: memref<1x2x1x8xf32, #tpu.memory_space<vmem>>, %arg4: memref<128x96xbf16, #tpu.memory_space<vmem>>, %arg5: memref<4x8x128xbf16, #tpu.memory_space<vmem>>, %arg6: memref<1x32xf32, #tpu.memory_space<vmem>>, %arg7: memref<1x32xf32, #tpu.memory_space<vmem>>, %arg8: memref<1x128xf32, #tpu.memory_space<vmem>>, %arg9: memref<1x128xf32, #tpu.memory_space<vmem>>, %arg10: memref<128x128xbf16, #tpu.memory_space<vmem>>, %arg11: memref<1x128xf32, #tpu.memory_space<vmem>>, %arg12: memref<128x128xbf16, #tpu.memory_space<vmem>>, %arg13: memref<1x128xf32, #tpu.memory_space<vmem>>, %arg14: memref<1x128xf32, #tpu.memory_space<vmem>>, %arg15: memref<1x128xf32, #tpu.memory_space<vmem>>, %arg16: memref<1x16x128xf32, #tpu.memory_space<vmem>>) attributes {dimension_semantics = [#tpu.dimension_semantics<parallel>], iteration_bounds = array<i64: 2>, scalar_prefetch = 0 : i64, scratch_operands = 0 : i64, tpu.core_type = #tpu.core_type<tc>, window_params = [{transform_indices = @transform_0, window_bounds = array<i64: 1, 16, 128>}, {pipeline_mode = #tpu.pipeline_mode<synchronous>, transform_indices = @transform_1, window_bounds = array<i64: 4, 8, 8>}, {transform_indices = @transform_2, window_bounds = array<i64: 1, 2, 1, 8>}, {pipeline_mode = #tpu.pipeline_mode<synchronous>, transform_indices = @transform_3, window_bounds = array<i64: 128, 96>}, {pipeline_mode = #tpu.pipeline_mode<synchronous>, transform_indices = @transform_4, window_bounds = array<i64: 4, 8, 128>}, {pipeline_mode = #tpu.pipeline_mode<synchronous>, transform_indices = @transform_5, window_bounds = array<i64: 1, 32>}, {pipeline_mode = #tpu.pipeline_mode<synchronous>, transform_indices = @transform_6, window_bounds = array<i64: 1, 32>}, {pipeline_mode = #tpu.pipeline_mode<synchronous>, transform_indices = @transform_7, window_bounds = array<i64: 1, 128>}, {pipeline_mode = #tpu.pipeline_mode<synchronous>, transform_indices = @transform_8, window_bounds = array<i64: 1, 128>}, {pipeline_mode = #tpu.pipeline_mode<synchronous>, transform_indices = @transform_9, window_bounds = array<i64: 128, 128>}, {pipeline_mode = #tpu.pipeline_mode<synchronous>, transform_indices = @transform_10, window_bounds = array<i64: 1, 128>}, {pipeline_mode = #tpu.pipeline_mode<synchronous>, transform_indices = @transform_11, window_bounds = array<i64: 128, 128>}, {pipeline_mode = #tpu.pipeline_mode<synchronous>, transform_indices = @transform_12, window_bounds = array<i64: 1, 128>}, {pipeline_mode = #tpu.pipeline_mode<synchronous>, transform_indices = @transform_13, window_bounds = array<i64: 1, 128>}, {pipeline_mode = #tpu.pipeline_mode<synchronous>, transform_indices = @transform_14, window_bounds = array<i64: 1, 128>}, {transform_indices = @transform_15, window_bounds = array<i64: 1, 16, 128>}]} {
    %c0 = arith.constant 0 : index
    %c0_0 = arith.constant 0 : index
    %c0_1 = arith.constant 0 : index
    %0 = vector.load %arg1[%c0, %c0_0, %c0_1] : memref<1x16x128xf32, #tpu.memory_space<vmem>>, vector<1x16x128xf32>
    %1 = vector.shape_cast %0 : vector<1x16x128xf32> to vector<16x128xf32>
    %2 = arith.truncf %1 : vector<16x128xf32> to vector<16x128xbf16>
    %c0_2 = arith.constant 0 : index
    %c0_3 = arith.constant 0 : index
    %3 = vector.load %arg4[%c0_2, %c0_3] : memref<128x96xbf16, #tpu.memory_space<vmem>>, vector<128x96xbf16>
    %cst = arith.constant dense<0.000000e+00> : vector<16x96xf32>
    %4 = tpu.matmul %2, %3, %cst {dimension_numbers = #tpu.dot_dimension_numbers<[1], [0], [0], [1], [0, 0, 1, 1], [], []>} : vector<16x128xbf16>, vector<128x96xbf16>, vector<16x96xf32> -> vector<16x96xf32>
    %c0_4 = arith.constant 0 : index
    %c0_5 = arith.constant 0 : index
    %5 = vector.load %arg6[%c0_4, %c0_5] : memref<1x32xf32, #tpu.memory_space<vmem>>, vector<1x32xf32>
    %c0_6 = arith.constant 0 : index
    %c0_7 = arith.constant 0 : index
    %6 = vector.load %arg7[%c0_6, %c0_7] : memref<1x32xf32, #tpu.memory_space<vmem>>, vector<1x32xf32>
    %c0_8 = arith.constant 0 : index
    %c0_9 = arith.constant 0 : index
    %c0_10 = arith.constant 0 : index
    %c0_11 = arith.constant 0 : index
    %7 = vector.load %arg3[%c0_8, %c0_9, %c0_10, %c0_11] : memref<1x2x1x8xf32, #tpu.memory_space<vmem>>, vector<1x2x1x8xf32>
    %8 = vector.shape_cast %7 : vector<1x2x1x8xf32> to vector<2x1x8xf32>
    %9 = vector.extract_strided_slice %4 {offsets = [0, 0], sizes = [16, 8], strides = [1, 1]} : vector<16x96xf32> to vector<16x8xf32>
    %10 = vector.extract_strided_slice %4 {offsets = [0, 32], sizes = [16, 8], strides = [1, 1]} : vector<16x96xf32> to vector<16x8xf32>
    %11 = vector.extract_strided_slice %4 {offsets = [0, 64], sizes = [16, 8], strides = [1, 1]} : vector<16x96xf32> to vector<16x8xf32>
    %12 = vector.extract_strided_slice %5 {offsets = [0, 0], sizes = [1, 8], strides = [1, 1]} : vector<1x32xf32> to vector<1x8xf32>
    %13 = vector.broadcast %12 : vector<1x8xf32> to vector<16x8xf32>
    %14 = arith.addf %9, %13 : vector<16x8xf32>
    %cst_12 = arith.constant 0.353553385 : f32
    %15 = vector.broadcast %cst_12 : f32 to vector<16x8xf32>
    %16 = arith.mulf %14, %15 : vector<16x8xf32>
    %17 = arith.truncf %16 : vector<16x8xf32> to vector<16x8xbf16>
    %18 = vector.extract_strided_slice %6 {offsets = [0, 0], sizes = [1, 8], strides = [1, 1]} : vector<1x32xf32> to vector<1x8xf32>
    %19 = vector.broadcast %18 : vector<1x8xf32> to vector<16x8xf32>
    %20 = arith.addf %9, %19 : vector<16x8xf32>
    %cst_13 = arith.constant 0.353553385 : f32
    %21 = vector.broadcast %cst_13 : f32 to vector<16x8xf32>
    %22 = arith.mulf %20, %21 : vector<16x8xf32>
    %23 = arith.truncf %22 : vector<16x8xf32> to vector<16x8xbf16>
    %24 = vector.shape_cast %10 : vector<16x8xf32> to vector<2x8x8xf32>
    %25 = arith.truncf %24 : vector<2x8x8xf32> to vector<2x8x8xbf16>
    %26 = vector.shape_cast %17 : vector<16x8xbf16> to vector<2x8x8xbf16>
    "tpu.trace_start"() <{level = 10 : i32, message = "bqd,bkd->bqk"}> : () -> ()
    %cst_14 = arith.constant dense<0.000000e+00> : vector<2x8x8xf32>
    %27 = tpu.matmul %26, %25, %cst_14 {dimension_numbers = #tpu.dot_dimension_numbers<[2], [2], [1], [1], [0, 0, 0, 1, 1, 1], [0], [0]>} : vector<2x8x8xbf16>, vector<2x8x8xbf16>, vector<2x8x8xf32> -> vector<2x8x8xf32>
    "tpu.trace_stop"() : () -> ()
    %c0_15 = arith.constant 0 : index
    %c0_16 = arith.constant 0 : index
    %c0_17 = arith.constant 0 : index
    %28 = vector.load %arg2[%c0_15, %c0_16, %c0_17] : memref<4x8x8xbf16, #tpu.memory_space<vmem>>, vector<1x8x8xbf16>
    %29 = vector.shape_cast %28 : vector<1x8x8xbf16> to vector<8x8xbf16>
    %cst_18 = arith.constant dense<0.000000e+00> : vector<16x8xf32>
    %30 = tpu.matmul %23, %29, %cst_18 {dimension_numbers = #tpu.dot_dimension_numbers<[1], [1], [0], [0], [0, 0, 1, 0], [], []>} : vector<16x8xbf16>, vector<8x8xbf16>, vector<16x8xf32> -> vector<16x8xf32>
    %31 = vector.shape_cast %30 : vector<16x8xf32> to vector<2x8x8xf32>
    %32 = vector.shape_cast %11 : vector<16x8xf32> to vector<2x8x8xf32>
    %33 = arith.truncf %32 : vector<2x8x8xf32> to vector<2x8x8xbf16>
    %34 = vector.extract_strided_slice %4 {offsets = [0, 8], sizes = [16, 8], strides = [1, 1]} : vector<16x96xf32> to vector<16x8xf32>
    %35 = vector.extract_strided_slice %4 {offsets = [0, 40], sizes = [16, 8], strides = [1, 1]} : vector<16x96xf32> to vector<16x8xf32>
    %36 = vector.extract_strided_slice %4 {offsets = [0, 72], sizes = [16, 8], strides = [1, 1]} : vector<16x96xf32> to vector<16x8xf32>
    %37 = vector.extract_strided_slice %5 {offsets = [0, 8], sizes = [1, 8], strides = [1, 1]} : vector<1x32xf32> to vector<1x8xf32>
    %38 = vector.broadcast %37 : vector<1x8xf32> to vector<16x8xf32>
    %39 = arith.addf %34, %38 : vector<16x8xf32>
    %cst_19 = arith.constant 0.353553385 : f32
    %40 = vector.broadcast %cst_19 : f32 to vector<16x8xf32>
    %41 = arith.mulf %39, %40 : vector<16x8xf32>
    %42 = arith.truncf %41 : vector<16x8xf32> to vector<16x8xbf16>
    %43 = vector.extract_strided_slice %6 {offsets = [0, 8], sizes = [1, 8], strides = [1, 1]} : vector<1x32xf32> to vector<1x8xf32>
    %44 = vector.broadcast %43 : vector<1x8xf32> to vector<16x8xf32>
    %45 = arith.addf %34, %44 : vector<16x8xf32>
    %cst_20 = arith.constant 0.353553385 : f32
    %46 = vector.broadcast %cst_20 : f32 to vector<16x8xf32>
    %47 = arith.mulf %45, %46 : vector<16x8xf32>
    %48 = arith.truncf %47 : vector<16x8xf32> to vector<16x8xbf16>
    %49 = vector.shape_cast %35 : vector<16x8xf32> to vector<2x8x8xf32>
    %50 = arith.truncf %49 : vector<2x8x8xf32> to vector<2x8x8xbf16>
    %51 = vector.shape_cast %42 : vector<16x8xbf16> to vector<2x8x8xbf16>
    "tpu.trace_start"() <{level = 10 : i32, message = "bqd,bkd->bqk"}> : () -> ()
    %cst_21 = arith.constant dense<0.000000e+00> : vector<2x8x8xf32>
    %52 = tpu.matmul %51, %50, %cst_21 {dimension_numbers = #tpu.dot_dimension_numbers<[2], [2], [1], [1], [0, 0, 0, 1, 1, 1], [0], [0]>} : vector<2x8x8xbf16>, vector<2x8x8xbf16>, vector<2x8x8xf32> -> vector<2x8x8xf32>
    "tpu.trace_stop"() : () -> ()
    %c1 = arith.constant 1 : index
    %c0_22 = arith.constant 0 : index
    %c0_23 = arith.constant 0 : index
    %53 = vector.load %arg2[%c1, %c0_22, %c0_23] : memref<4x8x8xbf16, #tpu.memory_space<vmem>>, vector<1x8x8xbf16>
    %54 = vector.shape_cast %53 : vector<1x8x8xbf16> to vector<8x8xbf16>
    %cst_24 = arith.constant dense<0.000000e+00> : vector<16x8xf32>
    %55 = tpu.matmul %48, %54, %cst_24 {dimension_numbers = #tpu.dot_dimension_numbers<[1], [1], [0], [0], [0, 0, 1, 0], [], []>} : vector<16x8xbf16>, vector<8x8xbf16>, vector<16x8xf32> -> vector<16x8xf32>
    %56 = vector.shape_cast %55 : vector<16x8xf32> to vector<2x8x8xf32>
    %57 = vector.shape_cast %36 : vector<16x8xf32> to vector<2x8x8xf32>
    %58 = arith.truncf %57 : vector<2x8x8xf32> to vector<2x8x8xbf16>
    %59 = vector.extract_strided_slice %4 {offsets = [0, 16], sizes = [16, 8], strides = [1, 1]} : vector<16x96xf32> to vector<16x8xf32>
    %60 = vector.extract_strided_slice %4 {offsets = [0, 48], sizes = [16, 8], strides = [1, 1]} : vector<16x96xf32> to vector<16x8xf32>
    %61 = vector.extract_strided_slice %4 {offsets = [0, 80], sizes = [16, 8], strides = [1, 1]} : vector<16x96xf32> to vector<16x8xf32>
    %62 = vector.extract_strided_slice %5 {offsets = [0, 16], sizes = [1, 8], strides = [1, 1]} : vector<1x32xf32> to vector<1x8xf32>
    %63 = vector.broadcast %62 : vector<1x8xf32> to vector<16x8xf32>
    %64 = arith.addf %59, %63 : vector<16x8xf32>
    %cst_25 = arith.constant 0.353553385 : f32
    %65 = vector.broadcast %cst_25 : f32 to vector<16x8xf32>
    %66 = arith.mulf %64, %65 : vector<16x8xf32>
    %67 = arith.truncf %66 : vector<16x8xf32> to vector<16x8xbf16>
    %68 = vector.extract_strided_slice %6 {offsets = [0, 16], sizes = [1, 8], strides = [1, 1]} : vector<1x32xf32> to vector<1x8xf32>
    %69 = vector.broadcast %68 : vector<1x8xf32> to vector<16x8xf32>
    %70 = arith.addf %59, %69 : vector<16x8xf32>
    %cst_26 = arith.constant 0.353553385 : f32
    %71 = vector.broadcast %cst_26 : f32 to vector<16x8xf32>
    %72 = arith.mulf %70, %71 : vector<16x8xf32>
    %73 = arith.truncf %72 : vector<16x8xf32> to vector<16x8xbf16>
    %74 = vector.shape_cast %60 : vector<16x8xf32> to vector<2x8x8xf32>
    %75 = arith.truncf %74 : vector<2x8x8xf32> to vector<2x8x8xbf16>
    %76 = vector.shape_cast %67 : vector<16x8xbf16> to vector<2x8x8xbf16>
    "tpu.trace_start"() <{level = 10 : i32, message = "bqd,bkd->bqk"}> : () -> ()
    %cst_27 = arith.constant dense<0.000000e+00> : vector<2x8x8xf32>
    %77 = tpu.matmul %76, %75, %cst_27 {dimension_numbers = #tpu.dot_dimension_numbers<[2], [2], [1], [1], [0, 0, 0, 1, 1, 1], [0], [0]>} : vector<2x8x8xbf16>, vector<2x8x8xbf16>, vector<2x8x8xf32> -> vector<2x8x8xf32>
    "tpu.trace_stop"() : () -> ()
    %c2 = arith.constant 2 : index
    %c0_28 = arith.constant 0 : index
    %c0_29 = arith.constant 0 : index
    %78 = vector.load %arg2[%c2, %c0_28, %c0_29] : memref<4x8x8xbf16, #tpu.memory_space<vmem>>, vector<1x8x8xbf16>
    %79 = vector.shape_cast %78 : vector<1x8x8xbf16> to vector<8x8xbf16>
    %cst_30 = arith.constant dense<0.000000e+00> : vector<16x8xf32>
    %80 = tpu.matmul %73, %79, %cst_30 {dimension_numbers = #tpu.dot_dimension_numbers<[1], [1], [0], [0], [0, 0, 1, 0], [], []>} : vector<16x8xbf16>, vector<8x8xbf16>, vector<16x8xf32> -> vector<16x8xf32>
    %81 = vector.shape_cast %80 : vector<16x8xf32> to vector<2x8x8xf32>
    %82 = vector.shape_cast %61 : vector<16x8xf32> to vector<2x8x8xf32>
    %83 = arith.truncf %82 : vector<2x8x8xf32> to vector<2x8x8xbf16>
    %84 = vector.extract_strided_slice %4 {offsets = [0, 24], sizes = [16, 8], strides = [1, 1]} : vector<16x96xf32> to vector<16x8xf32>
    %85 = vector.extract_strided_slice %4 {offsets = [0, 56], sizes = [16, 8], strides = [1, 1]} : vector<16x96xf32> to vector<16x8xf32>
    %86 = vector.extract_strided_slice %4 {offsets = [0, 88], sizes = [16, 8], strides = [1, 1]} : vector<16x96xf32> to vector<16x8xf32>
    %87 = vector.extract_strided_slice %5 {offsets = [0, 24], sizes = [1, 8], strides = [1, 1]} : vector<1x32xf32> to vector<1x8xf32>
    %88 = vector.broadcast %87 : vector<1x8xf32> to vector<16x8xf32>
    %89 = arith.addf %84, %88 : vector<16x8xf32>
    %cst_31 = arith.constant 0.353553385 : f32
    %90 = vector.broadcast %cst_31 : f32 to vector<16x8xf32>
    %91 = arith.mulf %89, %90 : vector<16x8xf32>
    %92 = arith.truncf %91 : vector<16x8xf32> to vector<16x8xbf16>
    %93 = vector.extract_strided_slice %6 {offsets = [0, 24], sizes = [1, 8], strides = [1, 1]} : vector<1x32xf32> to vector<1x8xf32>
    %94 = vector.broadcast %93 : vector<1x8xf32> to vector<16x8xf32>
    %95 = arith.addf %84, %94 : vector<16x8xf32>
    %cst_32 = arith.constant 0.353553385 : f32
    %96 = vector.broadcast %cst_32 : f32 to vector<16x8xf32>
    %97 = arith.mulf %95, %96 : vector<16x8xf32>
    %98 = arith.truncf %97 : vector<16x8xf32> to vector<16x8xbf16>
    %99 = vector.shape_cast %85 : vector<16x8xf32> to vector<2x8x8xf32>
    %100 = arith.truncf %99 : vector<2x8x8xf32> to vector<2x8x8xbf16>
    %101 = vector.shape_cast %92 : vector<16x8xbf16> to vector<2x8x8xbf16>
    "tpu.trace_start"() <{level = 10 : i32, message = "bqd,bkd->bqk"}> : () -> ()
    %cst_33 = arith.constant dense<0.000000e+00> : vector<2x8x8xf32>
    %102 = tpu.matmul %101, %100, %cst_33 {dimension_numbers = #tpu.dot_dimension_numbers<[2], [2], [1], [1], [0, 0, 0, 1, 1, 1], [0], [0]>} : vector<2x8x8xbf16>, vector<2x8x8xbf16>, vector<2x8x8xf32> -> vector<2x8x8xf32>
    "tpu.trace_stop"() : () -> ()
    %c3 = arith.constant 3 : index
    %c0_34 = arith.constant 0 : index
    %c0_35 = arith.constant 0 : index
    %103 = vector.load %arg2[%c3, %c0_34, %c0_35] : memref<4x8x8xbf16, #tpu.memory_space<vmem>>, vector<1x8x8xbf16>
    %104 = vector.shape_cast %103 : vector<1x8x8xbf16> to vector<8x8xbf16>
    %cst_36 = arith.constant dense<0.000000e+00> : vector<16x8xf32>
    %105 = tpu.matmul %98, %104, %cst_36 {dimension_numbers = #tpu.dot_dimension_numbers<[1], [1], [0], [0], [0, 0, 1, 0], [], []>} : vector<16x8xbf16>, vector<8x8xbf16>, vector<16x8xf32> -> vector<16x8xf32>
    %106 = vector.shape_cast %105 : vector<16x8xf32> to vector<2x8x8xf32>
    %107 = vector.shape_cast %86 : vector<16x8xf32> to vector<2x8x8xf32>
    %108 = arith.truncf %107 : vector<2x8x8xf32> to vector<2x8x8xbf16>
    %109 = vector.shape_cast %27 : vector<2x8x8xf32> to vector<1x2x8x8xf32>
    %110 = vector.shape_cast %52 : vector<2x8x8xf32> to vector<1x2x8x8xf32>
    %111 = vector.shape_cast %77 : vector<2x8x8xf32> to vector<1x2x8x8xf32>
    %112 = vector.shape_cast %102 : vector<2x8x8xf32> to vector<1x2x8x8xf32>
    %113 = tpu.concatenate %109, %110, %111, %112 in 0 : vector<1x2x8x8xf32>, vector<1x2x8x8xf32>, vector<1x2x8x8xf32>, vector<1x2x8x8xf32> -> vector<4x2x8x8xf32>
    %114 = vector.shape_cast %31 : vector<2x8x8xf32> to vector<1x2x8x8xf32>
    %115 = vector.shape_cast %56 : vector<2x8x8xf32> to vector<1x2x8x8xf32>
    %116 = vector.shape_cast %81 : vector<2x8x8xf32> to vector<1x2x8x8xf32>
    %117 = vector.shape_cast %106 : vector<2x8x8xf32> to vector<1x2x8x8xf32>
    %118 = tpu.concatenate %114, %115, %116, %117 in 0 : vector<1x2x8x8xf32>, vector<1x2x8x8xf32>, vector<1x2x8x8xf32>, vector<1x2x8x8xf32> -> vector<4x2x8x8xf32>
    %119 = vector.extract_strided_slice %118 {offsets = [0, 0, 1, 0], sizes = [4, 2, 7, 8], strides = [1, 1, 1, 1]} : vector<4x2x8x8xf32> to vector<4x2x7x8xf32>
    %cst_37 = arith.constant 0.000000e+00 : f32
    %120 = vector.broadcast %cst_37 : f32 to vector<4x2x1x8xf32>
    %121 = tpu.concatenate %119, %120 in 2 : vector<4x2x7x8xf32>, vector<4x2x1x8xf32> -> vector<4x2x8x8xf32>
    %cst_38 = arith.constant 0.000000e+00 : f32
    %122 = vector.broadcast %cst_38 : f32 to vector<4x2x8x1xf32>
    %123 = tpu.concatenate %118, %122, %121 in 3 : vector<4x2x8x8xf32>, vector<4x2x8x1xf32>, vector<4x2x8x8xf32> -> vector<4x2x8x17xf32>
    %124 = vector.extract_strided_slice %123 {offsets = [0, 0, 0, 7], sizes = [4, 2, 1, 8], strides = [1, 1, 1, 1]} : vector<4x2x8x17xf32> to vector<4x2x1x8xf32>
    %125 = vector.extract_strided_slice %123 {offsets = [0, 0, 1, 6], sizes = [4, 2, 1, 8], strides = [1, 1, 1, 1]} : vector<4x2x8x17xf32> to vector<4x2x1x8xf32>
    %126 = vector.extract_strided_slice %123 {offsets = [0, 0, 2, 5], sizes = [4, 2, 1, 8], strides = [1, 1, 1, 1]} : vector<4x2x8x17xf32> to vector<4x2x1x8xf32>
    %127 = vector.extract_strided_slice %123 {offsets = [0, 0, 3, 4], sizes = [4, 2, 1, 8], strides = [1, 1, 1, 1]} : vector<4x2x8x17xf32> to vector<4x2x1x8xf32>
    %128 = vector.extract_strided_slice %123 {offsets = [0, 0, 4, 3], sizes = [4, 2, 1, 8], strides = [1, 1, 1, 1]} : vector<4x2x8x17xf32> to vector<4x2x1x8xf32>
    %129 = vector.extract_strided_slice %123 {offsets = [0, 0, 5, 2], sizes = [4, 2, 1, 8], strides = [1, 1, 1, 1]} : vector<4x2x8x17xf32> to vector<4x2x1x8xf32>
    %130 = vector.extract_strided_slice %123 {offsets = [0, 0, 6, 1], sizes = [4, 2, 1, 8], strides = [1, 1, 1, 1]} : vector<4x2x8x17xf32> to vector<4x2x1x8xf32>
    %131 = vector.extract_strided_slice %123 {offsets = [0, 0, 7, 0], sizes = [4, 2, 1, 8], strides = [1, 1, 1, 1]} : vector<4x2x8x17xf32> to vector<4x2x1x8xf32>
    %132 = tpu.concatenate %124, %125, %126, %127, %128, %129, %130, %131 in 2 : vector<4x2x1x8xf32>, vector<4x2x1x8xf32>, vector<4x2x1x8xf32>, vector<4x2x1x8xf32>, vector<4x2x1x8xf32>, vector<4x2x1x8xf32>, vector<4x2x1x8xf32>, vector<4x2x1x8xf32> -> vector<4x2x8x8xf32>
    %133 = arith.addf %113, %132 : vector<4x2x8x8xf32>
    %134 = vector.shape_cast %8 : vector<2x1x8xf32> to vector<1x2x1x8xf32>
    %135 = vector.broadcast %134 : vector<1x2x1x8xf32> to vector<4x2x8x8xf32>
    %136 = arith.addf %133, %135 : vector<4x2x8x8xf32>
    %cst_39 = arith.constant dense<0xFF800000> : vector<4x2x8xf32>
    %137 = vector.multi_reduction <maximumf>, %136, %cst_39 [3] : vector<4x2x8x8xf32> to vector<4x2x8xf32>
    %138 = vector.shape_cast %137 : vector<4x2x8xf32> to vector<4x2x8x1xf32>
    %139 = vector.broadcast %138 : vector<4x2x8x1xf32> to vector<4x2x8x8xf32>
    %140 = arith.subf %136, %139 : vector<4x2x8x8xf32>
    %141 = math.exp %140 : vector<4x2x8x8xf32>
    %cst_40 = arith.constant dense<0.000000e+00> : vector<4x2x8xf32>
    %142 = vector.multi_reduction <add>, %141, %cst_40 [3] : vector<4x2x8x8xf32> to vector<4x2x8xf32>
    %143 = vector.shape_cast %142 : vector<4x2x8xf32> to vector<4x2x8x1xf32>
    %144 = tpu.reciprocal %143 {approx = true} : vector<4x2x8x1xf32> -> vector<4x2x8x1xf32>
    %145 = vector.broadcast %144 : vector<4x2x8x1xf32> to vector<4x2x8x8xf32>
    %146 = arith.mulf %141, %145 : vector<4x2x8x8xf32>
    %cst_41 = arith.constant 0.000000e+00 : f32
    %147 = vector.broadcast %cst_41 : f32 to vector<16x128xf32>
    %148 = vector.extract_strided_slice %146 {offsets = [0, 0, 0, 0], sizes = [1, 2, 8, 8], strides = [1, 1, 1, 1]} : vector<4x2x8x8xf32> to vector<1x2x8x8xf32>
    %149 = vector.shape_cast %148 : vector<1x2x8x8xf32> to vector<2x8x8xf32>
    %150 = arith.truncf %149 : vector<2x8x8xf32> to vector<2x8x8xbf16>
    "tpu.trace_start"() <{level = 10 : i32, message = "bqk,bkd->bqd"}> : () -> ()
    %cst_42 = arith.constant dense<0.000000e+00> : vector<2x8x8xf32>
    %151 = tpu.matmul %150, %33, %cst_42 {dimension_numbers = #tpu.dot_dimension_numbers<[2], [1], [1], [2], [0, 0, 0, 1, 1, 2], [0], [0]>} : vector<2x8x8xbf16>, vector<2x8x8xbf16>, vector<2x8x8xf32> -> vector<2x8x8xf32>
    "tpu.trace_stop"() : () -> ()
    %152 = vector.shape_cast %151 : vector<2x8x8xf32> to vector<16x8xf32>
    %153 = arith.truncf %152 : vector<16x8xf32> to vector<16x8xbf16>
    %c0_43 = arith.constant 0 : index
    %c0_44 = arith.constant 0 : index
    %c0_45 = arith.constant 0 : index
    %154 = vector.load %arg5[%c0_43, %c0_44, %c0_45] : memref<4x8x128xbf16, #tpu.memory_space<vmem>>, vector<1x8x128xbf16>
    %155 = vector.shape_cast %154 : vector<1x8x128xbf16> to vector<8x128xbf16>
    %cst_46 = arith.constant dense<0.000000e+00> : vector<16x128xf32>
    %156 = tpu.matmul %153, %155, %cst_46 {dimension_numbers = #tpu.dot_dimension_numbers<[1], [0], [0], [1], [0, 0, 1, 1], [], []>} : vector<16x8xbf16>, vector<8x128xbf16>, vector<16x128xf32> -> vector<16x128xf32>
    %157 = arith.addf %147, %156 : vector<16x128xf32>
    %158 = vector.extract_strided_slice %146 {offsets = [1, 0, 0, 0], sizes = [1, 2, 8, 8], strides = [1, 1, 1, 1]} : vector<4x2x8x8xf32> to vector<1x2x8x8xf32>
    %159 = vector.shape_cast %158 : vector<1x2x8x8xf32> to vector<2x8x8xf32>
    %160 = arith.truncf %159 : vector<2x8x8xf32> to vector<2x8x8xbf16>
    "tpu.trace_start"() <{level = 10 : i32, message = "bqk,bkd->bqd"}> : () -> ()
    %cst_47 = arith.constant dense<0.000000e+00> : vector<2x8x8xf32>
    %161 = tpu.matmul %160, %58, %cst_47 {dimension_numbers = #tpu.dot_dimension_numbers<[2], [1], [1], [2], [0, 0, 0, 1, 1, 2], [0], [0]>} : vector<2x8x8xbf16>, vector<2x8x8xbf16>, vector<2x8x8xf32> -> vector<2x8x8xf32>
    "tpu.trace_stop"() : () -> ()
    %162 = vector.shape_cast %161 : vector<2x8x8xf32> to vector<16x8xf32>
    %163 = arith.truncf %162 : vector<16x8xf32> to vector<16x8xbf16>
    %c1_48 = arith.constant 1 : index
    %c0_49 = arith.constant 0 : index
    %c0_50 = arith.constant 0 : index
    %164 = vector.load %arg5[%c1_48, %c0_49, %c0_50] : memref<4x8x128xbf16, #tpu.memory_space<vmem>>, vector<1x8x128xbf16>
    %165 = vector.shape_cast %164 : vector<1x8x128xbf16> to vector<8x128xbf16>
    %cst_51 = arith.constant dense<0.000000e+00> : vector<16x128xf32>
    %166 = tpu.matmul %163, %165, %cst_51 {dimension_numbers = #tpu.dot_dimension_numbers<[1], [0], [0], [1], [0, 0, 1, 1], [], []>} : vector<16x8xbf16>, vector<8x128xbf16>, vector<16x128xf32> -> vector<16x128xf32>
    %167 = arith.addf %157, %166 : vector<16x128xf32>
    %168 = vector.extract_strided_slice %146 {offsets = [2, 0, 0, 0], sizes = [1, 2, 8, 8], strides = [1, 1, 1, 1]} : vector<4x2x8x8xf32> to vector<1x2x8x8xf32>
    %169 = vector.shape_cast %168 : vector<1x2x8x8xf32> to vector<2x8x8xf32>
    %170 = arith.truncf %169 : vector<2x8x8xf32> to vector<2x8x8xbf16>
    "tpu.trace_start"() <{level = 10 : i32, message = "bqk,bkd->bqd"}> : () -> ()
    %cst_52 = arith.constant dense<0.000000e+00> : vector<2x8x8xf32>
    %171 = tpu.matmul %170, %83, %cst_52 {dimension_numbers = #tpu.dot_dimension_numbers<[2], [1], [1], [2], [0, 0, 0, 1, 1, 2], [0], [0]>} : vector<2x8x8xbf16>, vector<2x8x8xbf16>, vector<2x8x8xf32> -> vector<2x8x8xf32>
    "tpu.trace_stop"() : () -> ()
    %172 = vector.shape_cast %171 : vector<2x8x8xf32> to vector<16x8xf32>
    %173 = arith.truncf %172 : vector<16x8xf32> to vector<16x8xbf16>
    %c2_53 = arith.constant 2 : index
    %c0_54 = arith.constant 0 : index
    %c0_55 = arith.constant 0 : index
    %174 = vector.load %arg5[%c2_53, %c0_54, %c0_55] : memref<4x8x128xbf16, #tpu.memory_space<vmem>>, vector<1x8x128xbf16>
    %175 = vector.shape_cast %174 : vector<1x8x128xbf16> to vector<8x128xbf16>
    %cst_56 = arith.constant dense<0.000000e+00> : vector<16x128xf32>
    %176 = tpu.matmul %173, %175, %cst_56 {dimension_numbers = #tpu.dot_dimension_numbers<[1], [0], [0], [1], [0, 0, 1, 1], [], []>} : vector<16x8xbf16>, vector<8x128xbf16>, vector<16x128xf32> -> vector<16x128xf32>
    %177 = arith.addf %167, %176 : vector<16x128xf32>
    %178 = vector.extract_strided_slice %146 {offsets = [3, 0, 0, 0], sizes = [1, 2, 8, 8], strides = [1, 1, 1, 1]} : vector<4x2x8x8xf32> to vector<1x2x8x8xf32>
    %179 = vector.shape_cast %178 : vector<1x2x8x8xf32> to vector<2x8x8xf32>
    %180 = arith.truncf %179 : vector<2x8x8xf32> to vector<2x8x8xbf16>
    "tpu.trace_start"() <{level = 10 : i32, message = "bqk,bkd->bqd"}> : () -> ()
    %cst_57 = arith.constant dense<0.000000e+00> : vector<2x8x8xf32>
    %181 = tpu.matmul %180, %108, %cst_57 {dimension_numbers = #tpu.dot_dimension_numbers<[2], [1], [1], [2], [0, 0, 0, 1, 1, 2], [0], [0]>} : vector<2x8x8xbf16>, vector<2x8x8xbf16>, vector<2x8x8xf32> -> vector<2x8x8xf32>
    "tpu.trace_stop"() : () -> ()
    %182 = vector.shape_cast %181 : vector<2x8x8xf32> to vector<16x8xf32>
    %183 = arith.truncf %182 : vector<16x8xf32> to vector<16x8xbf16>
    %c3_58 = arith.constant 3 : index
    %c0_59 = arith.constant 0 : index
    %c0_60 = arith.constant 0 : index
    %184 = vector.load %arg5[%c3_58, %c0_59, %c0_60] : memref<4x8x128xbf16, #tpu.memory_space<vmem>>, vector<1x8x128xbf16>
    %185 = vector.shape_cast %184 : vector<1x8x128xbf16> to vector<8x128xbf16>
    %cst_61 = arith.constant dense<0.000000e+00> : vector<16x128xf32>
    %186 = tpu.matmul %183, %185, %cst_61 {dimension_numbers = #tpu.dot_dimension_numbers<[1], [0], [0], [1], [0, 0, 1, 1], [], []>} : vector<16x8xbf16>, vector<8x128xbf16>, vector<16x128xf32> -> vector<16x128xf32>
    %187 = arith.addf %177, %186 : vector<16x128xf32>
    %188 = tpu.iota {dimensions = array<i32: 1>} : vector<1x128xi32>
    %c32_i32 = arith.constant 32 : i32
    %189 = vector.broadcast %c32_i32 : i32 to vector<1x128xi32>
    %190 = arith.cmpi slt, %188, %189 : vector<1x128xi32>
    %191 = arith.extui %190 : vector<1x128xi1> to vector<1x128xi32>
    %192 = arith.sitofp %191 : vector<1x128xi32> to vector<1x128xf32>
    %193 = arith.addf %1, %187 : vector<16x128xf32>
    %c0_62 = arith.constant 0 : index
    %c0_63 = arith.constant 0 : index
    %194 = vector.load %arg8[%c0_62, %c0_63] : memref<1x128xf32, #tpu.memory_space<vmem>>, vector<1x128xf32>
    %c0_64 = arith.constant 0 : index
    %c0_65 = arith.constant 0 : index
    %195 = vector.load %arg9[%c0_64, %c0_65] : memref<1x128xf32, #tpu.memory_space<vmem>>, vector<1x128xf32>
    %cst_66 = arith.constant dense<0.000000e+00> : vector<16xf32>
    %196 = vector.multi_reduction <add>, %193, %cst_66 [1] : vector<16x128xf32> to vector<16xf32>
    %197 = vector.shape_cast %196 : vector<16xf32> to vector<16x1xf32>
    %cst_67 = arith.constant 3.125000e-02 : f32
    %198 = vector.broadcast %cst_67 : f32 to vector<16x1xf32>
    %199 = arith.mulf %197, %198 : vector<16x1xf32>
    %200 = vector.broadcast %199 : vector<16x1xf32> to vector<16x128xf32>
    %201 = arith.subf %193, %200 : vector<16x128xf32>
    %202 = vector.broadcast %192 : vector<1x128xf32> to vector<16x128xf32>
    %203 = arith.mulf %201, %202 : vector<16x128xf32>
    %204 = arith.mulf %203, %203 : vector<16x128xf32>
    %cst_68 = arith.constant dense<0.000000e+00> : vector<16xf32>
    %205 = vector.multi_reduction <add>, %204, %cst_68 [1] : vector<16x128xf32> to vector<16xf32>
    %206 = vector.shape_cast %205 : vector<16xf32> to vector<16x1xf32>
    %cst_69 = arith.constant 3.125000e-02 : f32
    %207 = vector.broadcast %cst_69 : f32 to vector<16x1xf32>
    %208 = arith.mulf %206, %207 : vector<16x1xf32>
    %cst_70 = arith.constant 9.99999974E-6 : f32
    %209 = vector.broadcast %cst_70 : f32 to vector<16x1xf32>
    %210 = arith.addf %208, %209 : vector<16x1xf32>
    %211 = math.rsqrt %210 : vector<16x1xf32>
    %212 = vector.broadcast %211 : vector<16x1xf32> to vector<16x128xf32>
    %213 = arith.mulf %203, %212 : vector<16x128xf32>
    %214 = vector.broadcast %194 : vector<1x128xf32> to vector<16x128xf32>
    %215 = arith.mulf %213, %214 : vector<16x128xf32>
    %216 = vector.broadcast %195 : vector<1x128xf32> to vector<16x128xf32>
    %217 = arith.addf %215, %216 : vector<16x128xf32>
    %218 = arith.truncf %217 : vector<16x128xf32> to vector<16x128xbf16>
    %c0_71 = arith.constant 0 : index
    %c0_72 = arith.constant 0 : index
    %219 = vector.load %arg10[%c0_71, %c0_72] : memref<128x128xbf16, #tpu.memory_space<vmem>>, vector<128x128xbf16>
    %cst_73 = arith.constant dense<0.000000e+00> : vector<16x128xf32>
    %220 = tpu.matmul %218, %219, %cst_73 {dimension_numbers = #tpu.dot_dimension_numbers<[1], [0], [0], [1], [0, 0, 1, 1], [], []>} : vector<16x128xbf16>, vector<128x128xbf16>, vector<16x128xf32> -> vector<16x128xf32>
    %c0_74 = arith.constant 0 : index
    %c0_75 = arith.constant 0 : index
    %221 = vector.load %arg11[%c0_74, %c0_75] : memref<1x128xf32, #tpu.memory_space<vmem>>, vector<1x128xf32>
    %222 = vector.broadcast %221 : vector<1x128xf32> to vector<16x128xf32>
    %223 = arith.addf %220, %222 : vector<16x128xf32>
    %cst_76 = arith.constant 0.000000e+00 : f32
    %224 = vector.broadcast %cst_76 : f32 to vector<16x128xf32>
    %225 = arith.maximumf %223, %224 : vector<16x128xf32>
    %226 = arith.truncf %225 : vector<16x128xf32> to vector<16x128xbf16>
    %c0_77 = arith.constant 0 : index
    %c0_78 = arith.constant 0 : index
    %227 = vector.load %arg12[%c0_77, %c0_78] : memref<128x128xbf16, #tpu.memory_space<vmem>>, vector<128x128xbf16>
    %cst_79 = arith.constant dense<0.000000e+00> : vector<16x128xf32>
    %228 = tpu.matmul %226, %227, %cst_79 {dimension_numbers = #tpu.dot_dimension_numbers<[1], [0], [0], [1], [0, 0, 1, 1], [], []>} : vector<16x128xbf16>, vector<128x128xbf16>, vector<16x128xf32> -> vector<16x128xf32>
    %c0_80 = arith.constant 0 : index
    %c0_81 = arith.constant 0 : index
    %229 = vector.load %arg13[%c0_80, %c0_81] : memref<1x128xf32, #tpu.memory_space<vmem>>, vector<1x128xf32>
    %230 = vector.broadcast %229 : vector<1x128xf32> to vector<16x128xf32>
    %231 = arith.addf %228, %230 : vector<16x128xf32>
    %232 = arith.addf %217, %231 : vector<16x128xf32>
    %c0_82 = arith.constant 0 : index
    %c0_83 = arith.constant 0 : index
    %233 = vector.load %arg14[%c0_82, %c0_83] : memref<1x128xf32, #tpu.memory_space<vmem>>, vector<1x128xf32>
    %c0_84 = arith.constant 0 : index
    %c0_85 = arith.constant 0 : index
    %234 = vector.load %arg15[%c0_84, %c0_85] : memref<1x128xf32, #tpu.memory_space<vmem>>, vector<1x128xf32>
    %cst_86 = arith.constant dense<0.000000e+00> : vector<16xf32>
    %235 = vector.multi_reduction <add>, %232, %cst_86 [1] : vector<16x128xf32> to vector<16xf32>
    %236 = vector.shape_cast %235 : vector<16xf32> to vector<16x1xf32>
    %cst_87 = arith.constant 3.125000e-02 : f32
    %237 = vector.broadcast %cst_87 : f32 to vector<16x1xf32>
    %238 = arith.mulf %236, %237 : vector<16x1xf32>
    %239 = vector.broadcast %238 : vector<16x1xf32> to vector<16x128xf32>
    %240 = arith.subf %232, %239 : vector<16x128xf32>
    %241 = vector.broadcast %192 : vector<1x128xf32> to vector<16x128xf32>
    %242 = arith.mulf %240, %241 : vector<16x128xf32>
    %243 = arith.mulf %242, %242 : vector<16x128xf32>
    %cst_88 = arith.constant dense<0.000000e+00> : vector<16xf32>
    %244 = vector.multi_reduction <add>, %243, %cst_88 [1] : vector<16x128xf32> to vector<16xf32>
    %245 = vector.shape_cast %244 : vector<16xf32> to vector<16x1xf32>
    %cst_89 = arith.constant 3.125000e-02 : f32
    %246 = vector.broadcast %cst_89 : f32 to vector<16x1xf32>
    %247 = arith.mulf %245, %246 : vector<16x1xf32>
    %cst_90 = arith.constant 9.99999974E-6 : f32
    %248 = vector.broadcast %cst_90 : f32 to vector<16x1xf32>
    %249 = arith.addf %247, %248 : vector<16x1xf32>
    %250 = math.rsqrt %249 : vector<16x1xf32>
    %251 = vector.broadcast %250 : vector<16x1xf32> to vector<16x128xf32>
    %252 = arith.mulf %242, %251 : vector<16x128xf32>
    %253 = vector.broadcast %233 : vector<1x128xf32> to vector<16x128xf32>
    %254 = arith.mulf %252, %253 : vector<16x128xf32>
    %255 = vector.broadcast %234 : vector<1x128xf32> to vector<16x128xf32>
    %256 = arith.addf %254, %255 : vector<16x128xf32>
    %c0_91 = arith.constant 0 : index
    %c0_92 = arith.constant 0 : index
    %c0_93 = arith.constant 0 : index
    %257 = vector.load %arg16[%c0_91, %c0_92, %c0_93] : memref<1x16x128xf32, #tpu.memory_space<vmem>>, vector<1x16x128xf32>
    %258 = vector.shape_cast %257 : vector<1x16x128xf32> to vector<16x128xf32>
    %259 = vector.shape_cast %256 : vector<16x128xf32> to vector<1x16x128xf32>
    tpu.vector_store %arg16[%c0_91, %c0_92, %c0_93], %259 {strides = array<i32>} : memref<1x16x128xf32, #tpu.memory_space<vmem>>, vector<1x16x128xf32>,
    return
  }
  func.func @transform_0(%arg0: i32) -> (i32, i32, i32) {
    %c0_i32 = arith.constant 0 : i32
    %c0_i32_0 = arith.constant 0 : i32
    %c0_i32_1 = arith.constant 0 : i32
    return %arg0, %c0_i32, %c0_i32_0 : i32, i32, i32
  }
  func.func @transform_1(%arg0: i32) -> (i32, i32, i32) {
    %c0_i32 = arith.constant 0 : i32
    %c0_i32_0 = arith.constant 0 : i32
    %c0_i32_1 = arith.constant 0 : i32
    %c0_i32_2 = arith.constant 0 : i32
    return %c0_i32, %c0_i32_0, %c0_i32_1 : i32, i32, i32
  }
  func.func @transform_2(%arg0: i32) -> (i32, i32, i32, i32) {
    %c0_i32 = arith.constant 0 : i32
    %c0_i32_0 = arith.constant 0 : i32
    %c0_i32_1 = arith.constant 0 : i32
    %c0_i32_2 = arith.constant 0 : i32
    return %arg0, %c0_i32, %c0_i32_0, %c0_i32_1 : i32, i32, i32, i32
  }
  func.func @transform_3(%arg0: i32) -> (i32, i32) {
    %c0_i32 = arith.constant 0 : i32
    %c0_i32_0 = arith.constant 0 : i32
    %c0_i32_1 = arith.constant 0 : i32
    return %c0_i32, %c0_i32_0 : i32, i32
  }
  func.func @transform_4(%arg0: i32) -> (i32, i32, i32) {
    %c0_i32 = arith.constant 0 : i32
    %c0_i32_0 = arith.constant 0 : i32
    %c0_i32_1 = arith.constant 0 : i32
    %c0_i32_2 = arith.constant 0 : i32
    return %c0_i32, %c0_i32_0, %c0_i32_1 : i32, i32, i32
  }
  func.func @transform_5(%arg0: i32) -> (i32, i32) {
    %c0_i32 = arith.constant 0 : i32
    %c0_i32_0 = arith.constant 0 : i32
    %c0_i32_1 = arith.constant 0 : i32
    return %c0_i32, %c0_i32_0 : i32, i32
  }
  func.func @transform_6(%arg0: i32) -> (i32, i32) {
    %c0_i32 = arith.constant 0 : i32
    %c0_i32_0 = arith.constant 0 : i32
    %c0_i32_1 = arith.constant 0 : i32
    return %c0_i32, %c0_i32_0 : i32, i32
  }
  func.func @transform_7(%arg0: i32) -> (i32, i32) {
    %c0_i32 = arith.constant 0 : i32
    %c0_i32_0 = arith.constant 0 : i32
    %c0_i32_1 = arith.constant 0 : i32
    return %c0_i32, %c0_i32_0 : i32, i32
  }
  func.func @transform_8(%arg0: i32) -> (i32, i32) {
    %c0_i32 = arith.constant 0 : i32
    %c0_i32_0 = arith.constant 0 : i32
    %c0_i32_1 = arith.constant 0 : i32
    return %c0_i32, %c0_i32_0 : i32, i32
  }
  func.func @transform_9(%arg0: i32) -> (i32, i32) {
    %c0_i32 = arith.constant 0 : i32
    %c0_i32_0 = arith.constant 0 : i32
    %c0_i32_1 = arith.constant 0 : i32
    return %c0_i32, %c0_i32_0 : i32, i32
  }
  func.func @transform_10(%arg0: i32) -> (i32, i32) {
    %c0_i32 = arith.constant 0 : i32
    %c0_i32_0 = arith.constant 0 : i32
    %c0_i32_1 = arith.constant 0 : i32
    return %c0_i32, %c0_i32_0 : i32, i32
  }
  func.func @transform_11(%arg0: i32) -> (i32, i32) {
    %c0_i32 = arith.constant 0 : i32
    %c0_i32_0 = arith.constant 0 : i32
    %c0_i32_1 = arith.constant 0 : i32
    return %c0_i32, %c0_i32_0 : i32, i32
  }
  func.func @transform_12(%arg0: i32) -> (i32, i32) {
    %c0_i32 = arith.constant 0 : i32
    %c0_i32_0 = arith.constant 0 : i32
    %c0_i32_1 = arith.constant 0 : i32
    return %c0_i32, %c0_i32_0 : i32, i32
  }
  func.func @transform_13(%arg0: i32) -> (i32, i32) {
    %c0_i32 = arith.constant 0 : i32
    %c0_i32_0 = arith.constant 0 : i32
    %c0_i32_1 = arith.constant 0 : i32
    return %c0_i32, %c0_i32_0 : i32, i32
  }
  func.func @transform_14(%arg0: i32) -> (i32, i32) {
    %c0_i32 = arith.constant 0 : i32
    %c0_i32_0 = arith.constant 0 : i32
    %c0_i32_1 = arith.constant 0 : i32
    return %c0_i32, %c0_i32_0 : i32, i32
  }
  func.func @transform_15(%arg0: i32) -> (i32, i32, i32) {
    %c0_i32 = arith.constant 0 : i32
    %c0_i32_0 = arith.constant 0 : i32
    %c0_i32_1 = arith.constant 0 : i32
    return %arg0, %c0_i32, %c0_i32_0 : i32, i32, i32
  }
}

</mosaic_0001>

<llo_original>
// kernel: tpu_custom_call.1
$region0: #{tpu_custom_call.1}
  #allocation0 [shape = 'u32[]', space=smem, size = 0x4, offset = 0x4, fixed_abs, tag = 'smem constant byte address 0x4 - core index']
  #allocation1 [shape = 'u32[144,128]{1,0:T(1,128)}', space=vmem, size = 0x12000, scoped, tag = 'internal scratch']
  %s0 = inlined_call_operand.hbm [shape: f32[2,16,128], index: 0, kind: input, shape index: {}]
  %s1 = inlined_call_operand.hbm [shape: bf16[4,8,8], index: 1, kind: input, shape index: {}]
  %s2 = inlined_call_operand.hbm [shape: f32[2,2,1,8], index: 2, kind: input, shape index: {}]
  %s3 = inlined_call_operand.vmem [shape: bf16[128,96], index: 3, kind: input, shape index: {}]
  %s4 = inlined_call_operand.hbm [shape: bf16[4,8,128], index: 4, kind: input, shape index: {}]
  %s5 = inlined_call_operand.vmem [shape: f32[1,32], index: 5, kind: input, shape index: {}]
  %s6 = inlined_call_operand.vmem [shape: f32[1,32], index: 6, kind: input, shape index: {}]
  %s7 = inlined_call_operand.vmem [shape: f32[1,128], index: 7, kind: input, shape index: {}]
  %s8 = inlined_call_operand.vmem [shape: f32[1,128], index: 8, kind: input, shape index: {}]
  %s9 = inlined_call_operand.vmem [shape: bf16[128,128], index: 9, kind: input, shape index: {}]
  %s10 = inlined_call_operand.vmem [shape: f32[1,128], index: 10, kind: input, shape index: {}]
  %s11 = inlined_call_operand.vmem [shape: bf16[128,128], index: 11, kind: input, shape index: {}]
  %s12 = inlined_call_operand.vmem [shape: f32[1,128], index: 12, kind: input, shape index: {}]
  %s13 = inlined_call_operand.vmem [shape: f32[1,128], index: 13, kind: input, shape index: {}]
  %s14 = inlined_call_operand.vmem [shape: f32[1,128], index: 14, kind: input, shape index: {}]
  %s15 = inlined_call_operand.hbm [shape: f32[2,16,128], index: 15, kind: output, shape index: {}]
  %s16 = sld [smem:[#allocation0]]
  $region109: #{tpu_custom_call.1} parent=0
    _
  %s18 = ssub.s32 1, %s16
  %s19 = scalar_select 0, %s18, %s16
  $region1: #{tpu_custom_call.1} parent=0
    #allocation2 [shape = 'u8[16384]{0}', space=vmem, size = 0x4000, scoped, tag = 'input window, operand 0']
    #allocation3 [shape = 's32[2]{0}', space=sflag, size = 0x8, scoped, tag = 'scoped memory for tpu_custom_call.1']
    #allocation4 [shape = 's32[2]{0}', space=sflag, size = 0x8, scoped, tag = 'scoped memory for tpu_custom_call.1']
    #allocation5 [shape = 'u8[8192]{0}', space=vmem, size = 0x2000, scoped, tag = 'input window, operand 1, single buffered']
    #allocation6 [shape = 's32[1]{0}', space=sflag, size = 0x4, scoped, tag = 'scoped memory for tpu_custom_call.1']
    #allocation7 [shape = 'u8[2048]{0}', space=vmem, size = 0x800, scoped, tag = 'input window, operand 2']
    #allocation8 [shape = 'u8[8192]{0}', space=vmem, size = 0x2000, scoped, tag = 'input window, operand 4, single buffered']
    #allocation9 [shape = 'u8[16384]{0}', space=vmem, size = 0x4000, scoped, tag = 'output window, operand 0']
    %20 = vsyncpa [#allocation3], 0
    %s21 = scalar_lea.sflag [#allocation3], 1
    %22 = vsyncpa %s21, 0
    %23 = vsyncpa [#allocation6], 0
    %24 = vsyncpa [#allocation4], 0
    %s25 = scalar_lea.sflag [#allocation4], 1
    %26 = vsyncpa %s25, 0
    loop: start=0, step=1, limit=4
    $region2: #{tpu_custom_call.1} parent=1 // loop_pre_header
      _
    $region3: #{tpu_custom_call.1} parent=1 // loop_header
      %s28 = sphi 0, %s32
      %p29 = scmp.ge.s32.totalorder %s28, 4
      %s38 = sphi 0, %s40
      %s41 = sphi 0, %s38
      %s42 = sphi 0, %s41
      %s58 = sphi 0, %s42
      %s62 = sphi 0, %s62
      %s64 = sphi 0, %s62
      %s65 = sphi 0, %s64
      %s79 = sphi 0, %s65
      %s85 = sphi 0, %s87
      %s88 = sphi 0, %s85
      %s89 = sphi 0, %s88
      %s105 = sphi 0, %s89
      %s109 = sphi 0, %s109
      %s111 = sphi 0, %s109
      %s112 = sphi 0, %s111
      %s126 = sphi 0, %s112
      %s130 = sphi 0, %s130
      %s132 = sphi 0, %s130
      %s133 = sphi 0, %s132
      %s147 = sphi 0, %s133
      %s151 = sphi 0, %s151
      %s153 = sphi 0, %s151
      %s154 = sphi 0, %s153
      %s168 = sphi 0, %s154
      %s172 = sphi 0, %s172
      %s174 = sphi 0, %s172
      %s175 = sphi 0, %s174
      %s189 = sphi 0, %s175
      %s193 = sphi 0, %s193
      %s195 = sphi 0, %s193
      %s196 = sphi 0, %s195
      %s210 = sphi 0, %s196
      %s214 = sphi 0, %s214
      %s216 = sphi 0, %s214
      %s217 = sphi 0, %s216
      %s231 = sphi 0, %s217
      %s235 = sphi 0, %s235
      %s237 = sphi 0, %s235
      %s238 = sphi 0, %s237
      %s252 = sphi 0, %s238
      %s256 = sphi 0, %s256
      %s258 = sphi 0, %s256
      %s259 = sphi 0, %s258
      %s273 = sphi 0, %s259
      %s277 = sphi 0, %s277
      %s279 = sphi 0, %s277
      %s280 = sphi 0, %s279
      %s294 = sphi 0, %s280
      %s298 = sphi 0, %s298
      %s300 = sphi 0, %s298
      %s301 = sphi 0, %s300
      %s315 = sphi 0, %s301
      %s319 = sphi 0, %s319
      %s321 = sphi 0, %s319
      %s322 = sphi 0, %s321
      %s336 = sphi 0, %s322
      %s340 = sphi 0, %s340
      %s342 = sphi 0, %s340
      %s343 = sphi 0, %s342
      %s357 = sphi 0, %s343
      %s363 = sphi 0, %s365
      %s366 = sphi 0, %s363
      %s367 = sphi 0, %s366
      %s383 = sphi 0, %s367
    $region4: #{tpu_custom_call.1} parent=1 // loop_header_branch
      %31 = sbr.rel (%p29) target = $region8
    $region5: #{tpu_custom_call.1} parent=1 // loop_body
      %s33 = ssub.s32 %s28, 1
      %s34 = ssub.s32 %s28, 2
      %s35 = sadd.s32 %s28, 1
      %s36 = ssub.s32 %s28, %s35
      %p37 = scmp.eq.s32.totalorder %s36, 0
      %s39 = sadd.s32 %s38, 1
      %s40 = scalar_select %p37, %s38, %s39
      %p43 = pneg %p37
      %p44 = scmp.eq.s32.totalorder %s28, 1
      %p45 = por %p43, %p44
      %p46 = scmp.ne.s32.totalorder %s38, %s41
      %p47 = scmp.eq.s32.totalorder %s28, 0
      %p48 = por %p46, %p47
      %p49 = scmp.ne.s32.totalorder %s38, %s41
      %p50 = scmp.eq.s32.totalorder %s33, 1
      %p51 = por %p49, %p50
      %p52 = scmp.ne.s32.totalorder %s41, %s42
      %p53 = scmp.eq.s32.totalorder %s33, 0
      %p54 = por %p52, %p53
      %p55 = scmp.ne.s32.totalorder %s41, %s42
      %p56 = scmp.eq.s32.totalorder %s34, 1
      %p57 = por %p55, %p56
      %p59 = scmp.ne.s32.totalorder %s42, %s58
      %p60 = scmp.eq.s32.totalorder %s34, 0
      %p61 = por %p59, %p60
      %s63 = sadd.s32 %s62, 1
      %p66 = scmp.eq.s32.totalorder %s28, 1
      %p67 = scmp.ne.s32.totalorder %s62, %s64
      %p68 = scmp.eq.s32.totalorder %s28, 0
      %p69 = por %p67, %p68
      %p70 = scmp.ne.s32.totalorder %s62, %s64
      %p71 = scmp.eq.s32.totalorder %s33, 1
      %p72 = por %p70, %p71
      %p73 = scmp.ne.s32.totalorder %s64, %s65
      %p74 = scmp.eq.s32.totalorder %s33, 0
      %p75 = por %p73, %p74
      %p76 = scmp.ne.s32.totalorder %s64, %s65
      %p77 = scmp.eq.s32.totalorder %s34, 1
      %p78 = por %p76, %p77
      %p80 = scmp.ne.s32.totalorder %s65, %s79
      %p81 = scmp.eq.s32.totalorder %s34, 0
      %p82 = por %p80, %p81
      %s83 = ssub.s32 %s28, %s35
      %p84 = scmp.eq.s32.totalorder %s83, 0
      %s86 = sadd.s32 %s85, 1
      %s87 = scalar_select %p84, %s85, %s86
      %p90 = pneg %p84
      %p91 = scmp.eq.s32.totalorder %s28, 1
      %p92 = por %p90, %p91
      %p93 = scmp.ne.s32.totalorder %s85, %s88
      %p94 = scmp.eq.s32.totalorder %s28, 0
      %p95 = por %p93, %p94
      %p96 = scmp.ne.s32.totalorder %s85, %s88
      %p97 = scmp.eq.s32.totalorder %s33, 1
      %p98 = por %p96, %p97
      %p99 = scmp.ne.s32.totalorder %s88, %s89
      %p100 = scmp.eq.s32.totalorder %s33, 0
      %p101 = por %p99, %p100
      %p102 = scmp.ne.s32.totalorder %s88, %s89
      %p103 = scmp.eq.s32.totalorder %s34, 1
      %p104 = por %p102, %p103
      %p106 = scmp.ne.s32.totalorder %s89, %s105
      %p107 = scmp.eq.s32.totalorder %s34, 0
      %p108 = por %p106, %p107
      %s110 = sadd.s32 %s109, 1
      %p113 = scmp.eq.s32.totalorder %s28, 1
      %p114 = scmp.ne.s32.totalorder %s109, %s111
      %p115 = scmp.eq.s32.totalorder %s28, 0
      %p116 = por %p114, %p115
      %p117 = scmp.ne.s32.totalorder %s109, %s111
      %p118 = scmp.eq.s32.totalorder %s33, 1
      %p119 = por %p117, %p118
      %p120 = scmp.ne.s32.totalorder %s111, %s112
      %p121 = scmp.eq.s32.totalorder %s33, 0
      %p122 = por %p120, %p121
      %p123 = scmp.ne.s32.totalorder %s111, %s112
      %p124 = scmp.eq.s32.totalorder %s34, 1
      %p125 = por %p123, %p124
      %p127 = scmp.ne.s32.totalorder %s112, %s126
      %p128 = scmp.eq.s32.totalorder %s34, 0
      %p129 = por %p127, %p128
      %s131 = sadd.s32 %s130, 1
      %p134 = scmp.eq.s32.totalorder %s28, 1
      %p135 = scmp.ne.s32.totalorder %s130, %s132
      %p136 = scmp.eq.s32.totalorder %s28, 0
      %p137 = por %p135, %p136
      %p138 = scmp.ne.s32.totalorder %s130, %s132
      %p139 = scmp.eq.s32.totalorder %s33, 1
      %p140 = por %p138, %p139
      %p141 = scmp.ne.s32.totalorder %s132, %s133
      %p142 = scmp.eq.s32.totalorder %s33, 0
      %p143 = por %p141, %p142
      %p144 = scmp.ne.s32.totalorder %s132, %s133
      %p145 = scmp.eq.s32.totalorder %s34, 1
      %p146 = por %p144, %p145
      %p148 = scmp.ne.s32.totalorder %s133, %s147
      %p149 = scmp.eq.s32.totalorder %s34, 0
      %p150 = por %p148, %p149
      %s152 = sadd.s32 %s151, 1
      %p155 = scmp.eq.s32.totalorder %s28, 1
      %p156 = scmp.ne.s32.totalorder %s151, %s153
      %p157 = scmp.eq.s32.totalorder %s28, 0
      %p158 = por %p156, %p157
      %p159 = scmp.ne.s32.totalorder %s151, %s153
      %p160 = scmp.eq.s32.totalorder %s33, 1
      %p161 = por %p159, %p160
      %p162 = scmp.ne.s32.totalorder %s153, %s154
      %p163 = scmp.eq.s32.totalorder %s33, 0
      %p164 = por %p162, %p163
      %p165 = scmp.ne.s32.totalorder %s153, %s154
      %p166 = scmp.eq.s32.totalorder %s34, 1
      %p167 = por %p165, %p166
      %p169 = scmp.ne.s32.totalorder %s154, %s168
      %p170 = scmp.eq.s32.totalorder %s34, 0
      %p171 = por %p169, %p170
      %s173 = sadd.s32 %s172, 1
      %p176 = scmp.eq.s32.totalorder %s28, 1
      %p177 = scmp.ne.s32.totalorder %s172, %s174
      %p178 = scmp.eq.s32.totalorder %s28, 0
      %p179 = por %p177, %p178
      %p180 = scmp.ne.s32.totalorder %s172, %s174
      %p181 = scmp.eq.s32.totalorder %s33, 1
      %p182 = por %p180, %p181
      %p183 = scmp.ne.s32.totalorder %s174, %s175
      %p184 = scmp.eq.s32.totalorder %s33, 0
      %p185 = por %p183, %p184
      %p186 = scmp.ne.s32.totalorder %s174, %s175
      %p187 = scmp.eq.s32.totalorder %s34, 1
      %p188 = por %p186, %p187
      %p190 = scmp.ne.s32.totalorder %s175, %s189
      %p191 = scmp.eq.s32.totalorder %s34, 0
      %p192 = por %p190, %p191
      %s194 = sadd.s32 %s193, 1
      %p197 = scmp.eq.s32.totalorder %s28, 1
      %p198 = scmp.ne.s32.totalorder %s193, %s195
      %p199 = scmp.eq.s32.totalorder %s28, 0
      %p200 = por %p198, %p199
      %p201 = scmp.ne.s32.totalorder %s193, %s195
      %p202 = scmp.eq.s32.totalorder %s33, 1
      %p203 = por %p201, %p202
      %p204 = scmp.ne.s32.totalorder %s195, %s196
      %p205 = scmp.eq.s32.totalorder %s33, 0
      %p206 = por %p204, %p205
      %p207 = scmp.ne.s32.totalorder %s195, %s196
      %p208 = scmp.eq.s32.totalorder %s34, 1
      %p209 = por %p207, %p208
      %p211 = scmp.ne.s32.totalorder %s196, %s210
      %p212 = scmp.eq.s32.totalorder %s34, 0
      %p213 = por %p211, %p212
      %s215 = sadd.s32 %s214, 1
      %p218 = scmp.eq.s32.totalorder %s28, 1
      %p219 = scmp.ne.s32.totalorder %s214, %s216
      %p220 = scmp.eq.s32.totalorder %s28, 0
      %p221 = por %p219, %p220
      %p222 = scmp.ne.s32.totalorder %s214, %s216
      %p223 = scmp.eq.s32.totalorder %s33, 1
      %p224 = por %p222, %p223
      %p225 = scmp.ne.s32.totalorder %s216, %s217
      %p226 = scmp.eq.s32.totalorder %s33, 0
      %p227 = por %p225, %p226
      %p228 = scmp.ne.s32.totalorder %s216, %s217
      %p229 = scmp.eq.s32.totalorder %s34, 1
      %p230 = por %p228, %p229
      %p232 = scmp.ne.s32.totalorder %s217, %s231
      %p233 = scmp.eq.s32.totalorder %s34, 0
      %p234 = por %p232, %p233
      %s236 = sadd.s32 %s235, 1
      %p239 = scmp.eq.s32.totalorder %s28, 1
      %p240 = scmp.ne.s32.totalorder %s235, %s237
      %p241 = scmp.eq.s32.totalorder %s28, 0
      %p242 = por %p240, %p241
      %p243 = scmp.ne.s32.totalorder %s235, %s237
      %p244 = scmp.eq.s32.totalorder %s33, 1
      %p245 = por %p243, %p244
      %p246 = scmp.ne.s32.totalorder %s237, %s238
      %p247 = scmp.eq.s32.totalorder %s33, 0
      %p248 = por %p246, %p247
      %p249 = scmp.ne.s32.totalorder %s237, %s238
      %p250 = scmp.eq.s32.totalorder %s34, 1
      %p251 = por %p249, %p250
      %p253 = scmp.ne.s32.totalorder %s238, %s252
      %p254 = scmp.eq.s32.totalorder %s34, 0
      %p255 = por %p253, %p254
      %s257 = sadd.s32 %s256, 1
      %p260 = scmp.eq.s32.totalorder %s28, 1
      %p261 = scmp.ne.s32.totalorder %s256, %s258
      %p262 = scmp.eq.s32.totalorder %s28, 0
      %p263 = por %p261, %p262
      %p264 = scmp.ne.s32.totalorder %s256, %s258
      %p265 = scmp.eq.s32.totalorder %s33, 1
      %p266 = por %p264, %p265
      %p267 = scmp.ne.s32.totalorder %s258, %s259
      %p268 = scmp.eq.s32.totalorder %s33, 0
      %p269 = por %p267, %p268
      %p270 = scmp.ne.s32.totalorder %s258, %s259
      %p271 = scmp.eq.s32.totalorder %s34, 1
      %p272 = por %p270, %p271
      %p274 = scmp.ne.s32.totalorder %s259, %s273
      %p275 = scmp.eq.s32.totalorder %s34, 0
      %p276 = por %p274, %p275
      %s278 = sadd.s32 %s277, 1
      %p281 = scmp.eq.s32.totalorder %s28, 1
      %p282 = scmp.ne.s32.totalorder %s277, %s279
      %p283 = scmp.eq.s32.totalorder %s28, 0
      %p284 = por %p282, %p283
      %p285 = scmp.ne.s32.totalorder %s277, %s279
      %p286 = scmp.eq.s32.totalorder %s33, 1
      %p287 = por %p285, %p286
      %p288 = scmp.ne.s32.totalorder %s279, %s280
      %p289 = scmp.eq.s32.totalorder %s33, 0
      %p290 = por %p288, %p289
      %p291 = scmp.ne.s32.totalorder %s279, %s280
      %p292 = scmp.eq.s32.totalorder %s34, 1
      %p293 = por %p291, %p292
      %p295 = scmp.ne.s32.totalorder %s280, %s294
      %p296 = scmp.eq.s32.totalorder %s34, 0
      %p297 = por %p295, %p296
      %s299 = sadd.s32 %s298, 1
      %p302 = scmp.eq.s32.totalorder %s28, 1
      %p303 = scmp.ne.s32.totalorder %s298, %s300
      %p304 = scmp.eq.s32.totalorder %s28, 0
      %p305 = por %p303, %p304
      %p306 = scmp.ne.s32.totalorder %s298, %s300
      %p307 = scmp.eq.s32.totalorder %s33, 1
      %p308 = por %p306, %p307
      %p309 = scmp.ne.s32.totalorder %s300, %s301
      %p310 = scmp.eq.s32.totalorder %s33, 0
      %p311 = por %p309, %p310
      %p312 = scmp.ne.s32.totalorder %s300, %s301
      %p313 = scmp.eq.s32.totalorder %s34, 1
      %p314 = por %p312, %p313
      %p316 = scmp.ne.s32.totalorder %s301, %s315
      %p317 = scmp.eq.s32.totalorder %s34, 0
      %p318 = por %p316, %p317
      %s320 = sadd.s32 %s319, 1
      %p323 = scmp.eq.s32.totalorder %s28, 1
      %p324 = scmp.ne.s32.totalorder %s319, %s321
      %p325 = scmp.eq.s32.totalorder %s28, 0
      %p326 = por %p324, %p325
      %p327 = scmp.ne.s32.totalorder %s319, %s321
      %p328 = scmp.eq.s32.totalorder %s33, 1
      %p329 = por %p327, %p328
      %p330 = scmp.ne.s32.totalorder %s321, %s322
      %p331 = scmp.eq.s32.totalorder %s33, 0
      %p332 = por %p330, %p331
      %p333 = scmp.ne.s32.totalorder %s321, %s322
      %p334 = scmp.eq.s32.totalorder %s34, 1
      %p335 = por %p333, %p334
      %p337 = scmp.ne.s32.totalorder %s322, %s336
      %p338 = scmp.eq.s32.totalorder %s34, 0
      %p339 = por %p337, %p338
      %s341 = sadd.s32 %s340, 1
      %p344 = scmp.eq.s32.totalorder %s28, 1
      %p345 = scmp.ne.s32.totalorder %s340, %s342
      %p346 = scmp.eq.s32.totalorder %s28, 0
      %p347 = por %p345, %p346
      %p348 = scmp.ne.s32.totalorder %s340, %s342
      %p349 = scmp.eq.s32.totalorder %s33, 1
      %p350 = por %p348, %p349
      %p351 = scmp.ne.s32.totalorder %s342, %s343
      %p352 = scmp.eq.s32.totalorder %s33, 0
      %p353 = por %p351, %p352
      %p354 = scmp.ne.s32.totalorder %s342, %s343
      %p355 = scmp.eq.s32.totalorder %s34, 1
      %p356 = por %p354, %p355
      %p358 = scmp.ne.s32.totalorder %s343, %s357
      %p359 = scmp.eq.s32.totalorder %s34, 0
      %p360 = por %p358, %p359
      %s361 = ssub.s32 %s28, %s35
      %p362 = scmp.eq.s32.totalorder %s361, 0
      %s364 = sadd.s32 %s363, 1
      %s365 = scalar_select %p362, %s363, %s364
      %p368 = pneg %p362
      %p369 = scmp.eq.s32.totalorder %s28, 1
      %p370 = por %p368, %p369
      %p371 = scmp.ne.s32.totalorder %s363, %s366
      %p372 = scmp.eq.s32.totalorder %s28, 0
      %p373 = por %p371, %p372
      %p374 = scmp.ne.s32.totalorder %s363, %s366
      %p375 = scmp.eq.s32.totalorder %s33, 1
      %p376 = por %p374, %p375
      %p377 = scmp.ne.s32.totalorder %s366, %s367
      %p378 = scmp.eq.s32.totalorder %s33, 0
      %p379 = por %p377, %p378
      %p380 = scmp.ne.s32.totalorder %s366, %s367
      %p381 = scmp.eq.s32.totalorder %s34, 1
      %p382 = por %p380, %p381
      %p384 = scmp.ne.s32.totalorder %s367, %s383
      %p385 = scmp.eq.s32.totalorder %s34, 0
      %p386 = por %p384, %p385
      %p387 = scmp.le.s32.totalorder 1, %s28
      %p388 = scmp.lt.s32.totalorder %s28, 3
      %p389 = pnand %p387, %p388
      %p390 = pneg %p389
      // Predicated region
      $region9: #{tpu_custom_call.1} parent=5 // pred_check
        _
      $region10: #{tpu_custom_call.1} parent=5 // pred_check_branch
        %392 = sbr.rel (%p389) target = $region12
      $region11: #{tpu_custom_call.1} parent=5 // pred_region
        %s393 = ssub.s32 %s28, 1
        // Predicated region
        $region13: #{tpu_custom_call.1} parent=11 // pred_check
          %p394 = pneg %p75
        $region14: #{tpu_custom_call.1} parent=11 // pred_check_branch
          %396 = sbr.rel (%p394) target = $region16
        $region15: #{tpu_custom_call.1} parent=11 // pred_region
          %s398 = ssub.s32 256, 256
          %399 = vsyncadd [#allocation6], %s398
          %s400 = sshll.u32 [#allocation5], 4
          %s401 = int_to_ptr.vmem [resolvable:$true] %s400
          %406 = dma.hbm_to_vmem [thread:$0]  %s1, 256, %s401, [#allocation6], 64, 64, 4
        $region16: #{tpu_custom_call.1} parent=11 // pred_fallthru
          _
        // Predicated region
        $region17: #{tpu_custom_call.1} parent=11 // pred_check
          %p407 = pneg %p122
        $region18: #{tpu_custom_call.1} parent=11 // pred_check_branch
          %409 = sbr.rel (%p407) target = $region20
        $region19: #{tpu_custom_call.1} parent=11 // pred_region
          _
        $region20: #{tpu_custom_call.1} parent=11 // pred_fallthru
          _
        // Predicated region
        $region21: #{tpu_custom_call.1} parent=11 // pred_check
          %p410 = pneg %p143
        $region22: #{tpu_custom_call.1} parent=11 // pred_check_branch
          %412 = sbr.rel (%p410) target = $region24
        $region23: #{tpu_custom_call.1} parent=11 // pred_region
          %s414 = ssub.s32 256, 256
          %415 = vsyncadd [#allocation6], %s414
          %s416 = sshll.u32 [#allocation8], 4
          %s417 = int_to_ptr.vmem [resolvable:$true] %s416
          %422 = dma.hbm_to_vmem [thread:$0]  %s4, 256, %s417, [#allocation6], 64, 64, 4
        $region24: #{tpu_custom_call.1} parent=11 // pred_fallthru
          _
        // Predicated region
        $region25: #{tpu_custom_call.1} parent=11 // pred_check
          %p423 = pneg %p164
        $region26: #{tpu_custom_call.1} parent=11 // pred_check_branch
          %425 = sbr.rel (%p423) target = $region28
        $region27: #{tpu_custom_call.1} parent=11 // pred_region
          _
        $region28: #{tpu_custom_call.1} parent=11 // pred_fallthru
          _
        // Predicated region
        $region29: #{tpu_custom_call.1} parent=11 // pred_check
          %p426 = pneg %p185
        $region30: #{tpu_custom_call.1} parent=11 // pred_check_branch
          %428 = sbr.rel (%p426) target = $region32
        $region31: #{tpu_custom_call.1} parent=11 // pred_region
          _
        $region32: #{tpu_custom_call.1} parent=11 // pred_fallthru
          _
        // Predicated region
        $region33: #{tpu_custom_call.1} parent=11 // pred_check
          %p429 = pneg %p206
        $region34: #{tpu_custom_call.1} parent=11 // pred_check_branch
          %431 = sbr.rel (%p429) target = $region36
        $region35: #{tpu_custom_call.1} parent=11 // pred_region
          _
        $region36: #{tpu_custom_call.1} parent=11 // pred_fallthru
          _
        // Predicated region
        $region37: #{tpu_custom_call.1} parent=11 // pred_check
          %p432 = pneg %p227
        $region38: #{tpu_custom_call.1} parent=11 // pred_check_branch
          %434 = sbr.rel (%p432) target = $region40
        $region39: #{tpu_custom_call.1} parent=11 // pred_region
          _
        $region40: #{tpu_custom_call.1} parent=11 // pred_fallthru
          _
        // Predicated region
        $region41: #{tpu_custom_call.1} parent=11 // pred_check
          %p435 = pneg %p248
        $region42: #{tpu_custom_call.1} parent=11 // pred_check_branch
          %437 = sbr.rel (%p435) target = $region44
        $region43: #{tpu_custom_call.1} parent=11 // pred_region
          _
        $region44: #{tpu_custom_call.1} parent=11 // pred_fallthru
          _
        // Predicated region
        $region45: #{tpu_custom_call.1} parent=11 // pred_check
          %p438 = pneg %p269
        $region46: #{tpu_custom_call.1} parent=11 // pred_check_branch
          %440 = sbr.rel (%p438) target = $region48
        $region47: #{tpu_custom_call.1} parent=11 // pred_region
          _
        $region48: #{tpu_custom_call.1} parent=11 // pred_fallthru
          _
        // Predicated region
        $region49: #{tpu_custom_call.1} parent=11 // pred_check
          %p441 = pneg %p290
        $region50: #{tpu_custom_call.1} parent=11 // pred_check_branch
          %443 = sbr.rel (%p441) target = $region52
        $region51: #{tpu_custom_call.1} parent=11 // pred_region
          _
        $region52: #{tpu_custom_call.1} parent=11 // pred_fallthru
          _
        // Predicated region
        $region53: #{tpu_custom_call.1} parent=11 // pred_check
          %p444 = pneg %p311
        $region54: #{tpu_custom_call.1} parent=11 // pred_check_branch
          %446 = sbr.rel (%p444) target = $region56
        $region55: #{tpu_custom_call.1} parent=11 // pred_region
          _
        $region56: #{tpu_custom_call.1} parent=11 // pred_fallthru
          _
        // Predicated region
        $region57: #{tpu_custom_call.1} parent=11 // pred_check
          %p447 = pneg %p332
        $region58: #{tpu_custom_call.1} parent=11 // pred_check_branch
          %449 = sbr.rel (%p447) target = $region60
        $region59: #{tpu_custom_call.1} parent=11 // pred_region
          _
        $region60: #{tpu_custom_call.1} parent=11 // pred_fallthru
          _
        // Predicated region
        $region61: #{tpu_custom_call.1} parent=11 // pred_check
          %p450 = pneg %p353
        $region62: #{tpu_custom_call.1} parent=11 // pred_check_branch
          %452 = sbr.rel (%p450) target = $region64
        $region63: #{tpu_custom_call.1} parent=11 // pred_region
          _
        $region64: #{tpu_custom_call.1} parent=11 // pred_fallthru
          _
      $region12: #{tpu_custom_call.1} parent=5 // pred_fallthru
        _
      %p453 = scmp.lt.s32.totalorder %s28, 2
      // Predicated region
      $region65: #{tpu_custom_call.1} parent=5 // pred_check
        %p454 = pneg %p453
      $region66: #{tpu_custom_call.1} parent=5 // pred_check_branch
        %456 = sbr.rel (%p454) target = $region68
      $region67: #{tpu_custom_call.1} parent=5 // pred_region
        // Predicated region
        $region69: #{tpu_custom_call.1} parent=67 // pred_check
          %p457 = pneg %p48
        $region70: #{tpu_custom_call.1} parent=67 // pred_check_branch
          %459 = sbr.rel (%p457) target = $region72
        $region71: #{tpu_custom_call.1} parent=67 // pred_region
          %s460 = sand.u32 %s28, 1
          %s461 = scalar_lea.sflag [#allocation3], %s460
          %s462 = sand.u32 %s38, 1
          %s463 = smul.addr %s462, 16
          %s464 = scalar_lea.vmem [#allocation2], %s463
          %s466 = ssub.s32 256, 256
          %467 = vsyncadd %s461, %s466
          %s468 = smul.addr %s28, 2
          %s469 = smul.addr %s468, 128
          %s470 = scalar_lea.hbm %s0, %s469
          %s471 = sshll.u32 %s464, 4
          %s472 = int_to_ptr.vmem [resolvable:$true] %s471
          %477 = dma.hbm_to_vmem [thread:$0]  %s470, 256, %s472, %s461, 128, 128, 8
        $region72: #{tpu_custom_call.1} parent=67 // pred_fallthru
          _
        // Predicated region
        $region73: #{tpu_custom_call.1} parent=67 // pred_check
          %p478 = pneg %p95
        $region74: #{tpu_custom_call.1} parent=67 // pred_check_branch
          %480 = sbr.rel (%p478) target = $region76
        $region75: #{tpu_custom_call.1} parent=67 // pred_region
          %s481 = sand.u32 %s28, 1
          %s482 = scalar_lea.sflag [#allocation3], %s481
          %s483 = sand.u32 %s85, 1
          %s484 = smul.addr %s483, 2
          %s485 = scalar_lea.vmem [#allocation7], %s484
          %s487 = ssub.s32 32, 32
          %488 = vsyncadd %s482, %s487
          %s489 = smul.addr %s28, 2
          %s490 = smul.addr %s489, 16
          %s491 = scalar_lea.hbm %s2, %s490
          %s492 = sshll.u32 %s485, 4
          %s493 = int_to_ptr.vmem [resolvable:$true] %s492
          %498 = dma.hbm_to_vmem [thread:$0]  %s491, 32, %s493, %s482, 16, 16, 1
        $region76: #{tpu_custom_call.1} parent=67 // pred_fallthru
          _
      $region68: #{tpu_custom_call.1} parent=5 // pred_fallthru
        _
      %p499 = scmp.le.s32.totalorder 1, %s28
      %p500 = scmp.lt.s32.totalorder %s28, 3
      %p501 = pnand %p499, %p500
      %p502 = pneg %p501
      // Predicated region
      $region77: #{tpu_custom_call.1} parent=5 // pred_check
        _
      $region78: #{tpu_custom_call.1} parent=5 // pred_check_branch
        %504 = sbr.rel (%p501) target = $region80
      $region79: #{tpu_custom_call.1} parent=5 // pred_region
        %s505 = ssub.s32 %s28, 1
        %s506 = sand.u32 %s33, 1
        %s507 = scalar_lea.sflag [#allocation3], %s506
        %s508 = sand.u32 %s41, 1
        %s509 = smul.addr %s508, 16
        %s510 = scalar_lea.vmem [#allocation2], %s509
        // Predicated region
        $region81: #{tpu_custom_call.1} parent=79 // pred_check
          %p511 = pneg %p54
        $region82: #{tpu_custom_call.1} parent=79 // pred_check_branch
          %513 = sbr.rel (%p511) target = $region84
        $region83: #{tpu_custom_call.1} parent=79 // pred_region
          %514 = dma.done %s507, 256
        $region84: #{tpu_custom_call.1} parent=79 // pred_fallthru
          _
        // Predicated region
        $region85: #{tpu_custom_call.1} parent=79 // pred_check
          %p515 = pneg %p75
        $region86: #{tpu_custom_call.1} parent=79 // pred_check_branch
          %517 = sbr.rel (%p515) target = $region88
        $region87: #{tpu_custom_call.1} parent=79 // pred_region
          %518 = dma.done [#allocation6], 256
        $region88: #{tpu_custom_call.1} parent=79 // pred_fallthru
          _
        %s519 = sand.u32 %s33, 1
        %s520 = scalar_lea.sflag [#allocation3], %s519
        %s521 = sand.u32 %s88, 1
        %s522 = smul.addr %s521, 2
        %s523 = scalar_lea.vmem [#allocation7], %s522
        // Predicated region
        $region89: #{tpu_custom_call.1} parent=79 // pred_check
          %p524 = pneg %p101
        $region90: #{tpu_custom_call.1} parent=79 // pred_check_branch
          %526 = sbr.rel (%p524) target = $region92
        $region91: #{tpu_custom_call.1} parent=79 // pred_region
          %527 = dma.done %s520, 32
        $region92: #{tpu_custom_call.1} parent=79 // pred_fallthru
          _
        // Predicated region
        $region93: #{tpu_custom_call.1} parent=79 // pred_check
          %p528 = pneg %p143
        $region94: #{tpu_custom_call.1} parent=79 // pred_check_branch
          %530 = sbr.rel (%p528) target = $region96
        $region95: #{tpu_custom_call.1} parent=79 // pred_region
          %531 = dma.done [#allocation6], 256
        $region96: #{tpu_custom_call.1} parent=79 // pred_fallthru
          _
        %s532 = sand.u32 %s33, 1
        %s533 = scalar_lea.sflag [#allocation3], %s532
        %s534 = sand.u32 %s41, 1
        %s535 = smul.addr %s534, 16
        %s536 = scalar_lea.vmem [#allocation2], %s535
        %p537 = pneg %p54
        %p538 = pneg %p51
        %p539 = pneg %p75
        %p540 = pneg %p72
        %s541 = sand.u32 %s33, 1
        %s542 = scalar_lea.sflag [#allocation3], %s541
        %s543 = sand.u32 %s88, 1
        %s544 = smul.addr %s543, 2
        %s545 = scalar_lea.vmem [#allocation7], %s544
        %p546 = pneg %p101
        %p547 = pneg %p98
        %p548 = pneg %p122
        %p549 = pneg %p119
        %p550 = pneg %p143
        %p551 = pneg %p140
        %p552 = pneg %p164
        %p553 = pneg %p161
        %p554 = pneg %p185
        %p555 = pneg %p182
        %p556 = pneg %p206
        %p557 = pneg %p203
        %p558 = pneg %p227
        %p559 = pneg %p224
        %p560 = pneg %p248
        %p561 = pneg %p245
        %p562 = pneg %p269
        %p563 = pneg %p266
        %p564 = pneg %p290
        %p565 = pneg %p287
        %p566 = pneg %p311
        %p567 = pneg %p308
        %p568 = pneg %p332
        %p569 = pneg %p329
        %p570 = pneg %p353
        %p571 = pneg %p350
        %p572 = pneg %p379
        %p573 = pneg %p376
        %s574 = sand.u32 %s366, 1
        %s575 = scalar_lea.sflag [#allocation4], %s574
        %s576 = sand.u32 %s366, 1
        %s577 = smul.addr %s576, 16
        %s578 = scalar_lea.vmem [#allocation9], %s577
        %v580 = vld [vmem:[%s510] sm:$0xff]
        %v581 = vld [vmem:[%s510 + $0x8] sm:$0xff]
        %v582 = vpack.c.bf16 %v581, %v580
        %v583 = vld [vmem:[%s3] sm:$0xf]
        %v584 = vld [vmem:[%s3 + $0x4] sm:$0xf]
        %v585 = vld [vmem:[%s3 + $0x8] sm:$0xf]
        %v586 = vld [vmem:[%s3 + $0xc] sm:$0xf]
        %v587 = vld [vmem:[%s3 + $0x10] sm:$0xf]
        %v588 = vld [vmem:[%s3 + $0x14] sm:$0xf]
        %v589 = vld [vmem:[%s3 + $0x18] sm:$0xf]
        %v590 = vld [vmem:[%s3 + $0x1c] sm:$0xf]
        %v591 = vld [vmem:[%s3 + $0x20] sm:$0xf]
        %v592 = vld [vmem:[%s3 + $0x24] sm:$0xf]
        %v593 = vld [vmem:[%s3 + $0x28] sm:$0xf]
        %v594 = vld [vmem:[%s3 + $0x2c] sm:$0xf]
        %v595 = vld [vmem:[%s3 + $0x30] sm:$0xf]
        %v596 = vld [vmem:[%s3 + $0x34] sm:$0xf]
        %v597 = vld [vmem:[%s3 + $0x38] sm:$0xf]
        %v598 = vld [vmem:[%s3 + $0x3c] sm:$0xf]
        %v615 = vunpack.c.l.b16 %v583
        %v616 = vunpack.c.l.b16 %v584
        %v617 = vunpack.c.l.b16 %v585
        %v618 = vunpack.c.l.b16 %v586
        %v619 = vunpack.c.l.b16 %v587
        %v620 = vunpack.c.l.b16 %v588
        %v621 = vunpack.c.l.b16 %v589
        %v622 = vunpack.c.l.b16 %v590
        %v623 = vunpack.c.l.b16 %v591
        %v624 = vunpack.c.l.b16 %v592
        %v625 = vunpack.c.l.b16 %v593
        %v626 = vunpack.c.l.b16 %v594
        %v627 = vunpack.c.l.b16 %v595
        %v628 = vunpack.c.l.b16 %v596
        %v629 = vunpack.c.l.b16 %v597
        %v630 = vunpack.c.l.b16 %v598
        %v631 = vpack.c.b16 %v616, %v615
        %v632 = vpack.c.b16 %v618, %v617
        %v633 = vpack.c.b16 %v620, %v619
        %v634 = vpack.c.b16 %v622, %v621
        %v635 = vpack.c.b16 %v624, %v623
        %v636 = vpack.c.b16 %v626, %v625
        %v637 = vpack.c.b16 %v628, %v627
        %v638 = vpack.c.b16 %v630, %v629
        %647 = vmatprep.subr.bf16.mxu0 0
        %648 = vmatpush1.bf16.msra.mxu0 %v631
        %649 = vmatprep.subr.bf16.mxu0 0
        %650 = vmatpush1.bf16.msra.mxu0 %v632
        %651 = vmatprep.subr.bf16.mxu0 0
        %652 = vmatpush1.bf16.msra.mxu0 %v633
        %653 = vmatprep.subr.bf16.mxu0 0
        %654 = vmatpush1.bf16.msra.mxu0 %v634
        %655 = vmatprep.subr.bf16.mxu0 0
        %656 = vmatpush1.bf16.msra.mxu0 %v635
        %657 = vmatprep.subr.bf16.mxu0 0
        %658 = vmatpush1.bf16.msra.mxu0 %v636
        %659 = vmatprep.subr.bf16.mxu0 0
        %660 = vmatpush1.bf16.msra.mxu0 %v637
        %661 = vmatprep.subr.bf16.mxu0 0
        %662 = vmatpush1.bf16.msra.mxu0 %v638
        %663 = vmatprep.subr.bf16.mxu0 0
        %664 = vmatpush1.bf16.msra.mxu0 0
        %665 = vmatprep.subr.bf16.mxu0 0
        %666 = vmatpush1.bf16.msra.mxu0 0
        %667 = vmatprep.subr.bf16.mxu0 0
        %668 = vmatpush1.bf16.msra.mxu0 0
        %669 = vmatprep.subr.bf16.mxu0 0
        %670 = vmatpush1.bf16.msra.mxu0 0
        %671 = vmatprep.subr.bf16.mxu0 0
        %672 = vmatpush1.bf16.msra.mxu0 0
        %673 = vmatprep.subr.bf16.mxu0 0
        %674 = vmatpush1.bf16.msra.mxu0 0
        %675 = vmatprep.subr.bf16.mxu0 0
        %676 = vmatpush1.bf16.msra.mxu0 0
        %677 = vmatprep.subr.bf16.mxu0 0
        %678 = vmatpush1.bf16.msra.mxu0 0
        %679 = vmatprep.mubr.bf16.mxu0 0
        %680 = vmatmul.mubr.bf16.gmra.mrb[0].mxu0 %v582
        %v681 = vpop.f32.mrb[0].mxu0
        %v682 = vadd.f32 0.0, %v681
        %v683 = vpop.f32.mrb[0].mxu0
        %v684 = vpop.f32.mrb[0].mxu0
        %v685 = vadd.f32 0.0, %v684
        %v686 = vpop.f32.mrb[0].mxu0
        %687 = vdwg.mxu0
        %v688 = vld [vmem:[%s5] sm:$0x1]
        %v689 = vld [vmem:[%s6] sm:$0x1]
        %v690 = vld [vmem:[%s523] sm:$0x1]
        %v691 = vld [vmem:[%s523 + $0x1] sm:$0x1]
        %v693 = vlaneseq
        %v694 = vshrl.u32 %v693, 7
        %v695 = vsub.s32 0, %v694
        %v696 = vrot.slane %v688, %v695
        %v698 = vadd.f32 %v682, %v696
        %v699 = vadd.f32 %v685, %v696
        %v700 = vmul.f32 %v698, 0.35355338
        %v701 = vmul.f32 %v699, 0.35355338
        %v702 = vpack.c.bf16 %v701, %v700
        %v704 = vlaneseq
        %v705 = vshrl.u32 %v704, 7
        %v706 = vsub.s32 0, %v705
        %v707 = vrot.slane %v689, %v706
        %v709 = vadd.f32 %v682, %v707
        %v710 = vadd.f32 %v685, %v707
        %v711 = vmul.f32 %v709, 0.35355338
        %v712 = vmul.f32 %v710, 0.35355338
        %v713 = vpack.c.bf16 %v712, %v711
        %v714 = vpack.c.bf16 %v682, %v682
        %v715 = vpack.c.bf16 %v685, %v685
        %v717 = vunpack.c.l.b16 %v702
        %v718 = vunpack.c.h.b16 %v702
        %v719 = vpack.c.b16 %v717, %v717
        %v720 = vpack.c.b16 %v718, %v718
        %722 = vrot.lane.b32.xlu0 %v714, 96
        %v723 = vpop.permute.xlu0 %722
        %vm724 = vcmask 64512
        %v726 = vsel %vm724, %v719, 0
        %v729 = vsel %vm724, %v723, 0
        %731 = vmatprep.subr.bf16.mxu0 0
        %732 = vmatpush1.bf16.xpose.msra.mxu0 %v729
        %733 = vmatprep.subr.bf16.mxu0 0
        %734 = vmatpush1.bf16.xpose.msra.mxu0 0
        %735 = vmatprep.subr.bf16.mxu0 0
        %736 = vmatpush1.bf16.xpose.msra.mxu0 0
        %737 = vmatprep.subr.bf16.mxu0 0
        %738 = vmatpush1.bf16.xpose.msra.mxu0 0
        %739 = vmatprep.subr.bf16.mxu0 0
        %740 = vmatpush1.bf16.xpose.msra.mxu0 0
        %741 = vmatprep.subr.bf16.mxu0 0
        %742 = vmatpush1.bf16.xpose.msra.mxu0 0
        %743 = vmatprep.subr.bf16.mxu0 0
        %744 = vmatpush1.bf16.xpose.msra.mxu0 0
        %745 = vmatprep.subr.bf16.mxu0 0
        %746 = vmatpush1.bf16.xpose.msra.mxu0 0
        %747 = vmatprep.subr.bf16.mxu0 0
        %748 = vmatpush1.bf16.xpose.msra.mxu0 0
        %749 = vmatprep.subr.bf16.mxu0 0
        %750 = vmatpush1.bf16.xpose.msra.mxu0 0
        %751 = vmatprep.subr.bf16.mxu0 0
        %752 = vmatpush1.bf16.xpose.msra.mxu0 0
        %753 = vmatprep.subr.bf16.mxu0 0
        %754 = vmatpush1.bf16.xpose.msra.mxu0 0
        %755 = vmatprep.subr.bf16.mxu0 0
        %756 = vmatpush1.bf16.xpose.msra.mxu0 0
        %757 = vmatprep.subr.bf16.mxu0 0
        %758 = vmatpush1.bf16.xpose.msra.mxu0 0
        %759 = vmatprep.subr.bf16.mxu0 0
        %760 = vmatpush1.bf16.xpose.msra.mxu0 0
        %761 = vmatprep.subr.bf16.mxu0 0
        %762 = vmatpush1.bf16.xpose.msra.mxu0 0
        %763 = vmatprep.mubr.bf16.mxu0 0
        %764 = vmatmul.mubr.bf16.gmra.mrb[0].mxu0 %v726
        %v765 = vpop.f32.mrb[0].mxu0
        %v766 = vadd.f32 0.0, %v765
        %v767 = vpop.f32.mrb[0].mxu0
        %v768 = vpop.f32.mrb[0].mxu0
        %v769 = vpop.f32.mrb[0].mxu0
        %770 = vdwg.mxu0
        %772 = vrot.lane.b32.xlu0 %v715, 96
        %v773 = vpop.permute.xlu0 %772
        %v775 = vsel %vm724, %v720, 0
        %v778 = vsel %vm724, %v773, 0
        %780 = vmatprep.subr.bf16.mxu0 0
        %781 = vmatpush1.bf16.xpose.msra.mxu0 %v778
        %782 = vmatprep.subr.bf16.mxu0 0
        %783 = vmatpush1.bf16.xpose.msra.mxu0 0
        %784 = vmatprep.subr.bf16.mxu0 0
        %785 = vmatpush1.bf16.xpose.msra.mxu0 0
        %786 = vmatprep.subr.bf16.mxu0 0
        %787 = vmatpush1.bf16.xpose.msra.mxu0 0
        %788 = vmatprep.subr.bf16.mxu0 0
        %789 = vmatpush1.bf16.xpose.msra.mxu0 0
        %790 = vmatprep.subr.bf16.mxu0 0
        %791 = vmatpush1.bf16.xpose.msra.mxu0 0
        %792 = vmatprep.subr.bf16.mxu0 0
        %793 = vmatpush1.bf16.xpose.msra.mxu0 0
        %794 = vmatprep.subr.bf16.mxu0 0
        %795 = vmatpush1.bf16.xpose.msra.mxu0 0
        %796 = vmatprep.subr.bf16.mxu0 0
        %797 = vmatpush1.bf16.xpose.msra.mxu0 0
        %798 = vmatprep.subr.bf16.mxu0 0
        %799 = vmatpush1.bf16.xpose.msra.mxu0 0
        %800 = vmatprep.subr.bf16.mxu0 0
        %801 = vmatpush1.bf16.xpose.msra.mxu0 0
        %802 = vmatprep.subr.bf16.mxu0 0
        %803 = vmatpush1.bf16.xpose.msra.mxu0 0
        %804 = vmatprep.subr.bf16.mxu0 0
        %805 = vmatpush1.bf16.xpose.msra.mxu0 0
        %806 = vmatprep.subr.bf16.mxu0 0
        %807 = vmatpush1.bf16.xpose.msra.mxu0 0
        %808 = vmatprep.subr.bf16.mxu0 0
        %809 = vmatpush1.bf16.xpose.msra.mxu0 0
        %810 = vmatprep.subr.bf16.mxu0 0
        %811 = vmatpush1.bf16.xpose.msra.mxu0 0
        %812 = vmatprep.mubr.bf16.mxu0 0
        %813 = vmatmul.mubr.bf16.gmra.mrb[0].mxu0 %v775
        %v814 = vpop.f32.mrb[0].mxu0
        %v815 = vadd.f32 0.0, %v814
        %v816 = vpop.f32.mrb[0].mxu0
        %v817 = vpop.f32.mrb[0].mxu0
        %v818 = vpop.f32.mrb[0].mxu0
        %819 = vdwg.mxu0
        %v820 = vld [vmem:[#allocation5] sm:$0xf]
        %v822 = vsel %vm724, %v713, 0
        %v825 = vsel %vm724, %v820, 0
        %827 = vmatprep.subr.bf16.mxu0 0
        %828 = vmatpush1.bf16.xpose.msra.mxu0 %v825
        %829 = vmatprep.subr.bf16.mxu0 0
        %830 = vmatpush1.bf16.xpose.msra.mxu0 0
        %831 = vmatprep.subr.bf16.mxu0 0
        %832 = vmatpush1.bf16.xpose.msra.mxu0 0
        %833 = vmatprep.subr.bf16.mxu0 0
        %834 = vmatpush1.bf16.xpose.msra.mxu0 0
        %835 = vmatprep.subr.bf16.mxu0 0
        %836 = vmatpush1.bf16.xpose.msra.mxu0 0
        %837 = vmatprep.subr.bf16.mxu0 0
        %838 = vmatpush1.bf16.xpose.msra.mxu0 0
        %839 = vmatprep.subr.bf16.mxu0 0
        %840 = vmatpush1.bf16.xpose.msra.mxu0 0
        %841 = vmatprep.subr.bf16.mxu0 0
        %842 = vmatpush1.bf16.xpose.msra.mxu0 0
        %843 = vmatprep.subr.bf16.mxu0 0
        %844 = vmatpush1.bf16.xpose.msra.mxu0 0
        %845 = vmatprep.subr.bf16.mxu0 0
        %846 = vmatpush1.bf16.xpose.msra.mxu0 0
        %847 = vmatprep.subr.bf16.mxu0 0
        %848 = vmatpush1.bf16.xpose.msra.mxu0 0
        %849 = vmatprep.subr.bf16.mxu0 0
        %850 = vmatpush1.bf16.xpose.msra.mxu0 0
        %851 = vmatprep.subr.bf16.mxu0 0
        %852 = vmatpush1.bf16.xpose.msra.mxu0 0
        %853 = vmatprep.subr.bf16.mxu0 0
        %854 = vmatpush1.bf16.xpose.msra.mxu0 0
        %855 = vmatprep.subr.bf16.mxu0 0
        %856 = vmatpush1.bf16.xpose.msra.mxu0 0
        %857 = vmatprep.subr.bf16.mxu0 0
        %858 = vmatpush1.bf16.xpose.msra.mxu0 0
        %859 = vmatprep.mubr.bf16.mxu0 0
        %860 = vmatmul.mubr.bf16.gmra.mrb[0].mxu0 %v822
        %v861 = vpop.f32.mrb[0].mxu0
        %v862 = vadd.f32 0.0, %v861
        %v863 = vpop.f32.mrb[0].mxu0
        %v864 = vpop.f32.mrb[0].mxu0
        %v865 = vadd.f32 0.0, %v864
        %v866 = vpop.f32.mrb[0].mxu0
        %867 = vdwg.mxu0
        %868 = vrot.lane.b32.xlu0 %v719, 120
        %v869 = vpop.permute.xlu0 %868
        %870 = vrot.lane.b32.xlu0 %v714, 88
        %v871 = vpop.permute.xlu0 %870
        %v873 = vsel %vm724, %v869, 0
        %v876 = vsel %vm724, %v871, 0
        %878 = vmatprep.subr.bf16.mxu0 0
        %879 = vmatpush1.bf16.xpose.msra.mxu0 %v876
        %880 = vmatprep.subr.bf16.mxu0 0
        %881 = vmatpush1.bf16.xpose.msra.mxu0 0
        %882 = vmatprep.subr.bf16.mxu0 0
        %883 = vmatpush1.bf16.xpose.msra.mxu0 0
        %884 = vmatprep.subr.bf16.mxu0 0
        %885 = vmatpush1.bf16.xpose.msra.mxu0 0
        %886 = vmatprep.subr.bf16.mxu0 0
        %887 = vmatpush1.bf16.xpose.msra.mxu0 0
        %888 = vmatprep.subr.bf16.mxu0 0
        %889 = vmatpush1.bf16.xpose.msra.mxu0 0
        %890 = vmatprep.subr.bf16.mxu0 0
        %891 = vmatpush1.bf16.xpose.msra.mxu0 0
        %892 = vmatprep.subr.bf16.mxu0 0
        %893 = vmatpush1.bf16.xpose.msra.mxu0 0
        %894 = vmatprep.subr.bf16.mxu0 0
        %895 = vmatpush1.bf16.xpose.msra.mxu0 0
        %896 = vmatprep.subr.bf16.mxu0 0
        %897 = vmatpush1.bf16.xpose.msra.mxu0 0
        %898 = vmatprep.subr.bf16.mxu0 0
        %899 = vmatpush1.bf16.xpose.msra.mxu0 0
        %900 = vmatprep.subr.bf16.mxu0 0
        %901 = vmatpush1.bf16.xpose.msra.mxu0 0
        %902 = vmatprep.subr.bf16.mxu0 0
        %903 = vmatpush1.bf16.xpose.msra.mxu0 0
        %904 = vmatprep.subr.bf16.mxu0 0
        %905 = vmatpush1.bf16.xpose.msra.mxu0 0
        %906 = vmatprep.subr.bf16.mxu0 0
        %907 = vmatpush1.bf16.xpose.msra.mxu0 0
        %908 = vmatprep.subr.bf16.mxu0 0
        %909 = vmatpush1.bf16.xpose.msra.mxu0 0
        %910 = vmatprep.mubr.bf16.mxu0 0
        %911 = vmatmul.mubr.bf16.gmra.mrb[0].mxu0 %v873
        %v912 = vpop.f32.mrb[0].mxu0
        %v913 = vadd.f32 0.0, %v912
        %v914 = vpop.f32.mrb[0].mxu0
        %v915 = vpop.f32.mrb[0].mxu0
        %v916 = vpop.f32.mrb[0].mxu0
        %917 = vdwg.mxu0
        %918 = vrot.lane.b32.xlu0 %v720, 120
        %v919 = vpop.permute.xlu0 %918
        %920 = vrot.lane.b32.xlu0 %v715, 88
        %v921 = vpop.permute.xlu0 %920
        %v923 = vsel %vm724, %v919, 0
        %v926 = vsel %vm724, %v921, 0
        %928 = vmatprep.subr.bf16.mxu0 0
        %929 = vmatpush1.bf16.xpose.msra.mxu0 %v926
        %930 = vmatprep.subr.bf16.mxu0 0
        %931 = vmatpush1.bf16.xpose.msra.mxu0 0
        %932 = vmatprep.subr.bf16.mxu0 0
        %933 = vmatpush1.bf16.xpose.msra.mxu0 0
        %934 = vmatprep.subr.bf16.mxu0 0
        %935 = vmatpush1.bf16.xpose.msra.mxu0 0
        %936 = vmatprep.subr.bf16.mxu0 0
        %937 = vmatpush1.bf16.xpose.msra.mxu0 0
        %938 = vmatprep.subr.bf16.mxu0 0
        %939 = vmatpush1.bf16.xpose.msra.mxu0 0
        %940 = vmatprep.subr.bf16.mxu0 0
        %941 = vmatpush1.bf16.xpose.msra.mxu0 0
        %942 = vmatprep.subr.bf16.mxu0 0
        %943 = vmatpush1.bf16.xpose.msra.mxu0 0
        %944 = vmatprep.subr.bf16.mxu0 0
        %945 = vmatpush1.bf16.xpose.msra.mxu0 0
        %946 = vmatprep.subr.bf16.mxu0 0
        %947 = vmatpush1.bf16.xpose.msra.mxu0 0
        %948 = vmatprep.subr.bf16.mxu0 0
        %949 = vmatpush1.bf16.xpose.msra.mxu0 0
        %950 = vmatprep.subr.bf16.mxu0 0
        %951 = vmatpush1.bf16.xpose.msra.mxu0 0
        %952 = vmatprep.subr.bf16.mxu0 0
        %953 = vmatpush1.bf16.xpose.msra.mxu0 0
        %954 = vmatprep.subr.bf16.mxu0 0
        %955 = vmatpush1.bf16.xpose.msra.mxu0 0
        %956 = vmatprep.subr.bf16.mxu0 0
        %957 = vmatpush1.bf16.xpose.msra.mxu0 0
        %958 = vmatprep.subr.bf16.mxu0 0
        %959 = vmatpush1.bf16.xpose.msra.mxu0 0
        %960 = vmatprep.mubr.bf16.mxu0 0
        %961 = vmatmul.mubr.bf16.gmra.mrb[0].mxu0 %v923
        %v962 = vpop.f32.mrb[0].mxu0
        %v963 = vadd.f32 0.0, %v962
        %v964 = vpop.f32.mrb[0].mxu0
        %v965 = vpop.f32.mrb[0].mxu0
        %v966 = vpop.f32.mrb[0].mxu0
        %967 = vdwg.mxu0
        %s968 = scalar_lea.vmem [#allocation5], 4
        %v969 = vld [vmem:[%s968] sm:$0xf]
        %971 = vrot.lane.b32.xlu0 %v713, 120
        %v972 = vpop.permute.xlu0 %971
        %v974 = vsel %vm724, %v972, 0
        %v977 = vsel %vm724, %v969, 0
        %979 = vmatprep.subr.bf16.mxu0 0
        %980 = vmatpush1.bf16.xpose.msra.mxu0 %v977
        %981 = vmatprep.subr.bf16.mxu0 0
        %982 = vmatpush1.bf16.xpose.msra.mxu0 0
        %983 = vmatprep.subr.bf16.mxu0 0
        %984 = vmatpush1.bf16.xpose.msra.mxu0 0
        %985 = vmatprep.subr.bf16.mxu0 0
        %986 = vmatpush1.bf16.xpose.msra.mxu0 0
        %987 = vmatprep.subr.bf16.mxu0 0
        %988 = vmatpush1.bf16.xpose.msra.mxu0 0
        %989 = vmatprep.subr.bf16.mxu0 0
        %990 = vmatpush1.bf16.xpose.msra.mxu0 0
        %991 = vmatprep.subr.bf16.mxu0 0
        %992 = vmatpush1.bf16.xpose.msra.mxu0 0
        %993 = vmatprep.subr.bf16.mxu0 0
        %994 = vmatpush1.bf16.xpose.msra.mxu0 0
        %995 = vmatprep.subr.bf16.mxu0 0
        %996 = vmatpush1.bf16.xpose.msra.mxu0 0
        %997 = vmatprep.subr.bf16.mxu0 0
        %998 = vmatpush1.bf16.xpose.msra.mxu0 0
        %999 = vmatprep.subr.bf16.mxu0 0
        %1000 = vmatpush1.bf16.xpose.msra.mxu0 0
        %1001 = vmatprep.subr.bf16.mxu0 0
        %1002 = vmatpush1.bf16.xpose.msra.mxu0 0
        %1003 = vmatprep.subr.bf16.mxu0 0
        %1004 = vmatpush1.bf16.xpose.msra.mxu0 0
        %1005 = vmatprep.subr.bf16.mxu0 0
        %1006 = vmatpush1.bf16.xpose.msra.mxu0 0
        %1007 = vmatprep.subr.bf16.mxu0 0
        %1008 = vmatpush1.bf16.xpose.msra.mxu0 0
        %1009 = vmatprep.subr.bf16.mxu0 0
        %1010 = vmatpush1.bf16.xpose.msra.mxu0 0
        %1011 = vmatprep.mubr.bf16.mxu0 0
        %1012 = vmatmul.mubr.bf16.gmra.mrb[0].mxu0 %v974
        %v1013 = vpop.f32.mrb[0].mxu0
        %v1014 = vadd.f32 0.0, %v1013
        %v1015 = vpop.f32.mrb[0].mxu0
        %v1016 = vpop.f32.mrb[0].mxu0
        %v1017 = vadd.f32 0.0, %v1016
        %v1018 = vpop.f32.mrb[0].mxu0
        %1019 = vdwg.mxu0
        %1020 = vrot.lane.b32.xlu0 %v719, 112
        %v1021 = vpop.permute.xlu0 %1020
        %1022 = vrot.lane.b32.xlu0 %v714, 80
        %v1023 = vpop.permute.xlu0 %1022
        %v1025 = vsel %vm724, %v1021, 0
        %v1028 = vsel %vm724, %v1023, 0
        %1030 = vmatprep.subr.bf16.mxu0 0
        %1031 = vmatpush1.bf16.xpose.msra.mxu0 %v1028
        %1032 = vmatprep.subr.bf16.mxu0 0
        %1033 = vmatpush1.bf16.xpose.msra.mxu0 0
        %1034 = vmatprep.subr.bf16.mxu0 0
        %1035 = vmatpush1.bf16.xpose.msra.mxu0 0
        %1036 = vmatprep.subr.bf16.mxu0 0
        %1037 = vmatpush1.bf16.xpose.msra.mxu0 0
        %1038 = vmatprep.subr.bf16.mxu0 0
        %1039 = vmatpush1.bf16.xpose.msra.mxu0 0
        %1040 = vmatprep.subr.bf16.mxu0 0
        %1041 = vmatpush1.bf16.xpose.msra.mxu0 0
        %1042 = vmatprep.subr.bf16.mxu0 0
        %1043 = vmatpush1.bf16.xpose.msra.mxu0 0
        %1044 = vmatprep.subr.bf16.mxu0 0
        %1045 = vmatpush1.bf16.xpose.msra.mxu0 0
        %1046 = vmatprep.subr.bf16.mxu0 0
        %1047 = vmatpush1.bf16.xpose.msra.mxu0 0
        %1048 = vmatprep.subr.bf16.mxu0 0
        %1049 = vmatpush1.bf16.xpose.msra.mxu0 0
        %1050 = vmatprep.subr.bf16.mxu0 0
        %1051 = vmatpush1.bf16.xpose.msra.mxu0 0
        %1052 = vmatprep.subr.bf16.mxu0 0
        %1053 = vmatpush1.bf16.xpose.msra.mxu0 0
        %1054 = vmatprep.subr.bf16.mxu0 0
        %1055 = vmatpush1.bf16.xpose.msra.mxu0 0
        %1056 = vmatprep.subr.bf16.mxu0 0
        %1057 = vmatpush1.bf16.xpose.msra.mxu0 0
        %1058 = vmatprep.subr.bf16.mxu0 0
        %1059 = vmatpush1.bf16.xpose.msra.mxu0 0
        %1060 = vmatprep.subr.bf16.mxu0 0
        %1061 = vmatpush1.bf16.xpose.msra.mxu0 0
        %1062 = vmatprep.mubr.bf16.mxu0 0
        %1063 = vmatmul.mubr.bf16.gmra.mrb[0].mxu0 %v1025
        %v1064 = vpop.f32.mrb[0].mxu0
        %v1065 = vadd.f32 0.0, %v1064
        %v1066 = vpop.f32.mrb[0].mxu0
        %v1067 = vpop.f32.mrb[0].mxu0
        %v1068 = vpop.f32.mrb[0].mxu0
        %1069 = vdwg.mxu0
        %1070 = vrot.lane.b32.xlu0 %v720, 112
        %v1071 = vpop.permute.xlu0 %1070
        %1072 = vrot.lane.b32.xlu0 %v715, 80
        %v1073 = vpop.permute.xlu0 %1072
        %v1075 = vsel %vm724, %v1071, 0
        %v1078 = vsel %vm724, %v1073, 0
        %1080 = vmatprep.subr.bf16.mxu0 0
        %1081 = vmatpush1.bf16.xpose.msra.mxu0 %v1078
        %1082 = vmatprep.subr.bf16.mxu0 0
        %1083 = vmatpush1.bf16.xpose.msra.mxu0 0
        %1084 = vmatprep.subr.bf16.mxu0 0
        %1085 = vmatpush1.bf16.xpose.msra.mxu0 0
        %1086 = vmatprep.subr.bf16.mxu0 0
        %1087 = vmatpush1.bf16.xpose.msra.mxu0 0
        %1088 = vmatprep.subr.bf16.mxu0 0
        %1089 = vmatpush1.bf16.xpose.msra.mxu0 0
        %1090 = vmatprep.subr.bf16.mxu0 0
        %1091 = vmatpush1.bf16.xpose.msra.mxu0 0
        %1092 = vmatprep.subr.bf16.mxu0 0
        %1093 = vmatpush1.bf16.xpose.msra.mxu0 0
        %1094 = vmatprep.subr.bf16.mxu0 0
        %1095 = vmatpush1.bf16.xpose.msra.mxu0 0
        %1096 = vmatprep.subr.bf16.mxu0 0
        %1097 = vmatpush1.bf16.xpose.msra.mxu0 0
        %1098 = vmatprep.subr.bf16.mxu0 0
        %1099 = vmatpush1.bf16.xpose.msra.mxu0 0
        %1100 = vmatprep.subr.bf16.mxu0 0
        %1101 = vmatpush1.bf16.xpose.msra.mxu0 0
        %1102 = vmatprep.subr.bf16.mxu0 0
        %1103 = vmatpush1.bf16.xpose.msra.mxu0 0
        %1104 = vmatprep.subr.bf16.mxu0 0
        %1105 = vmatpush1.bf16.xpose.msra.mxu0 0
        %1106 = vmatprep.subr.bf16.mxu0 0
        %1107 = vmatpush1.bf16.xpose.msra.mxu0 0
        %1108 = vmatprep.subr.bf16.mxu0 0
        %1109 = vmatpush1.bf16.xpose.msra.mxu0 0
        %1110 = vmatprep.subr.bf16.mxu0 0
        %1111 = vmatpush1.bf16.xpose.msra.mxu0 0
        %1112 = vmatprep.mubr.bf16.mxu0 0
        %1113 = vmatmul.mubr.bf16.gmra.mrb[0].mxu0 %v1075
        %v1114 = vpop.f32.mrb[0].mxu0
        %v1115 = vadd.f32 0.0, %v1114
        %v1116 = vpop.f32.mrb[0].mxu0
        %v1117 = vpop.f32.mrb[0].mxu0
        %v1118 = vpop.f32.mrb[0].mxu0
        %1119 = vdwg.mxu0
        %s1120 = scalar_lea.vmem [#allocation5], 8
        %v1121 = vld [vmem:[%s1120] sm:$0xf]
        %1122 = vrot.lane.b32.xlu0 %v713, 112
        %v1123 = vpop.permute.xlu0 %1122
        %v1125 = vsel %vm724, %v1123, 0
        %v1128 = vsel %vm724, %v1121, 0
        %1130 = vmatprep.subr.bf16.mxu0 0
        %1131 = vmatpush1.bf16.xpose.msra.mxu0 %v1128
        %1132 = vmatprep.subr.bf16.mxu0 0
        %1133 = vmatpush1.bf16.xpose.msra.mxu0 0
        %1134 = vmatprep.subr.bf16.mxu0 0
        %1135 = vmatpush1.bf16.xpose.msra.mxu0 0
        %1136 = vmatprep.subr.bf16.mxu0 0
        %1137 = vmatpush1.bf16.xpose.msra.mxu0 0
        %1138 = vmatprep.subr.bf16.mxu0 0
        %1139 = vmatpush1.bf16.xpose.msra.mxu0 0
        %1140 = vmatprep.subr.bf16.mxu0 0
        %1141 = vmatpush1.bf16.xpose.msra.mxu0 0
        %1142 = vmatprep.subr.bf16.mxu0 0
        %1143 = vmatpush1.bf16.xpose.msra.mxu0 0
        %1144 = vmatprep.subr.bf16.mxu0 0
        %1145 = vmatpush1.bf16.xpose.msra.mxu0 0
        %1146 = vmatprep.subr.bf16.mxu0 0
        %1147 = vmatpush1.bf16.xpose.msra.mxu0 0
        %1148 = vmatprep.subr.bf16.mxu0 0
        %1149 = vmatpush1.bf16.xpose.msra.mxu0 0
        %1150 = vmatprep.subr.bf16.mxu0 0
        %1151 = vmatpush1.bf16.xpose.msra.mxu0 0
        %1152 = vmatprep.subr.bf16.mxu0 0
        %1153 = vmatpush1.bf16.xpose.msra.mxu0 0
        %1154 = vmatprep.subr.bf16.mxu0 0
        %1155 = vmatpush1.bf16.xpose.msra.mxu0 0
        %1156 = vmatprep.subr.bf16.mxu0 0
        %1157 = vmatpush1.bf16.xpose.msra.mxu0 0
        %1158 = vmatprep.subr.bf16.mxu0 0
        %1159 = vmatpush1.bf16.xpose.msra.mxu0 0
        %1160 = vmatprep.subr.bf16.mxu0 0
        %1161 = vmatpush1.bf16.xpose.msra.mxu0 0
        %1162 = vmatprep.mubr.bf16.mxu0 0
        %1163 = vmatmul.mubr.bf16.gmra.mrb[0].mxu0 %v1125
        %v1164 = vpop.f32.mrb[0].mxu0
        %v1165 = vadd.f32 0.0, %v1164
        %v1166 = vpop.f32.mrb[0].mxu0
        %v1167 = vpop.f32.mrb[0].mxu0
        %v1168 = vadd.f32 0.0, %v1167
        %v1169 = vpop.f32.mrb[0].mxu0
        %1170 = vdwg.mxu0
        %1171 = vrot.lane.b32.xlu0 %v719, 104
        %v1172 = vpop.permute.xlu0 %1171
        %1173 = vrot.lane.b32.xlu0 %v714, 72
        %v1174 = vpop.permute.xlu0 %1173
        %v1176 = vsel %vm724, %v1172, 0
        %v1179 = vsel %vm724, %v1174, 0
        %1181 = vmatprep.subr.bf16.mxu0 0
        %1182 = vmatpush1.bf16.xpose.msra.mxu0 %v1179
        %1183 = vmatprep.subr.bf16.mxu0 0
        %1184 = vmatpush1.bf16.xpose.msra.mxu0 0
        %1185 = vmatprep.subr.bf16.mxu0 0
        %1186 = vmatpush1.bf16.xpose.msra.mxu0 0
        %1187 = vmatprep.subr.bf16.mxu0 0
        %1188 = vmatpush1.bf16.xpose.msra.mxu0 0
        %1189 = vmatprep.subr.bf16.mxu0 0
        %1190 = vmatpush1.bf16.xpose.msra.mxu0 0
        %1191 = vmatprep.subr.bf16.mxu0 0
        %1192 = vmatpush1.bf16.xpose.msra.mxu0 0
        %1193 = vmatprep.subr.bf16.mxu0 0
        %1194 = vmatpush1.bf16.xpose.msra.mxu0 0
        %1195 = vmatprep.subr.bf16.mxu0 0
        %1196 = vmatpush1.bf16.xpose.msra.mxu0 0
        %1197 = vmatprep.subr.bf16.mxu0 0
        %1198 = vmatpush1.bf16.xpose.msra.mxu0 0
        %1199 = vmatprep.subr.bf16.mxu0 0
        %1200 = vmatpush1.bf16.xpose.msra.mxu0 0
        %1201 = vmatprep.subr.bf16.mxu0 0
        %1202 = vmatpush1.bf16.xpose.msra.mxu0 0
        %1203 = vmatprep.subr.bf16.mxu0 0
        %1204 = vmatpush1.bf16.xpose.msra.mxu0 0
        %1205 = vmatprep.subr.bf16.mxu0 0
        %1206 = vmatpush1.bf16.xpose.msra.mxu0 0
        %1207 = vmatprep.subr.bf16.mxu0 0
        %1208 = vmatpush1.bf16.xpose.msra.mxu0 0
        %1209 = vmatprep.subr.bf16.mxu0 0
        %1210 = vmatpush1.bf16.xpose.msra.mxu0 0
        %1211 = vmatprep.subr.bf16.mxu0 0
        %1212 = vmatpush1.bf16.xpose.msra.mxu0 0
        %1213 = vmatprep.mubr.bf16.mxu0 0
        %1214 = vmatmul.mubr.bf16.gmra.mrb[0].mxu0 %v1176
        %v1215 = vpop.f32.mrb[0].mxu0
        %v1216 = vadd.f32 0.0, %v1215
        %v1217 = vpop.f32.mrb[0].mxu0
        %v1218 = vpop.f32.mrb[0].mxu0
        %v1219 = vpop.f32.mrb[0].mxu0
        %1220 = vdwg.mxu0
        %1221 = vrot.lane.b32.xlu0 %v720, 104
        %v1222 = vpop.permute.xlu0 %1221
        %1223 = vrot.lane.b32.xlu0 %v715, 72
        %v1224 = vpop.permute.xlu0 %1223
        %v1226 = vsel %vm724, %v1222, 0
        %v1229 = vsel %vm724, %v1224, 0
        %1231 = vmatprep.subr.bf16.mxu0 0
        %1232 = vmatpush1.bf16.xpose.msra.mxu0 %v1229
        %1233 = vmatprep.subr.bf16.mxu0 0
        %1234 = vmatpush1.bf16.xpose.msra.mxu0 0
        %1235 = vmatprep.subr.bf16.mxu0 0
        %1236 = vmatpush1.bf16.xpose.msra.mxu0 0
        %1237 = vmatprep.subr.bf16.mxu0 0
        %1238 = vmatpush1.bf16.xpose.msra.mxu0 0
        %1239 = vmatprep.subr.bf16.mxu0 0
        %1240 = vmatpush1.bf16.xpose.msra.mxu0 0
        %1241 = vmatprep.subr.bf16.mxu0 0
        %1242 = vmatpush1.bf16.xpose.msra.mxu0 0
        %1243 = vmatprep.subr.bf16.mxu0 0
        %1244 = vmatpush1.bf16.xpose.msra.mxu0 0
        %1245 = vmatprep.subr.bf16.mxu0 0
        %1246 = vmatpush1.bf16.xpose.msra.mxu0 0
        %1247 = vmatprep.subr.bf16.mxu0 0
        %1248 = vmatpush1.bf16.xpose.msra.mxu0 0
        %1249 = vmatprep.subr.bf16.mxu0 0
        %1250 = vmatpush1.bf16.xpose.msra.mxu0 0
        %1251 = vmatprep.subr.bf16.mxu0 0
        %1252 = vmatpush1.bf16.xpose.msra.mxu0 0
        %1253 = vmatprep.subr.bf16.mxu0 0
        %1254 = vmatpush1.bf16.xpose.msra.mxu0 0
        %1255 = vmatprep.subr.bf16.mxu0 0
        %1256 = vmatpush1.bf16.xpose.msra.mxu0 0
        %1257 = vmatprep.subr.bf16.mxu0 0
        %1258 = vmatpush1.bf16.xpose.msra.mxu0 0
        %1259 = vmatprep.subr.bf16.mxu0 0
        %1260 = vmatpush1.bf16.xpose.msra.mxu0 0
        %1261 = vmatprep.subr.bf16.mxu0 0
        %1262 = vmatpush1.bf16.xpose.msra.mxu0 0
        %1263 = vmatprep.mubr.bf16.mxu0 0
        %1264 = vmatmul.mubr.bf16.gmra.mrb[0].mxu0 %v1226
        %v1265 = vpop.f32.mrb[0].mxu0
        %v1266 = vadd.f32 0.0, %v1265
        %v1267 = vpop.f32.mrb[0].mxu0
        %v1268 = vpop.f32.mrb[0].mxu0
        %v1269 = vpop.f32.mrb[0].mxu0
        %1270 = vdwg.mxu0
        %s1271 = scalar_lea.vmem [#allocation5], 12
        %v1272 = vld [vmem:[%s1271] sm:$0xf]
        %1273 = vrot.lane.b32.xlu0 %v713, 104
        %v1274 = vpop.permute.xlu0 %1273
        %v1276 = vsel %vm724, %v1274, 0
        %v1279 = vsel %vm724, %v1272, 0
        %1281 = vmatprep.subr.bf16.mxu0 0
        %1282 = vmatpush1.bf16.xpose.msra.mxu0 %v1279
        %1283 = vmatprep.subr.bf16.mxu0 0
        %1284 = vmatpush1.bf16.xpose.msra.mxu0 0
        %1285 = vmatprep.subr.bf16.mxu0 0
        %1286 = vmatpush1.bf16.xpose.msra.mxu0 0
        %1287 = vmatprep.subr.bf16.mxu0 0
        %1288 = vmatpush1.bf16.xpose.msra.mxu0 0
        %1289 = vmatprep.subr.bf16.mxu0 0
        %1290 = vmatpush1.bf16.xpose.msra.mxu0 0
        %1291 = vmatprep.subr.bf16.mxu0 0
        %1292 = vmatpush1.bf16.xpose.msra.mxu0 0
        %1293 = vmatprep.subr.bf16.mxu0 0
        %1294 = vmatpush1.bf16.xpose.msra.mxu0 0
        %1295 = vmatprep.subr.bf16.mxu0 0
        %1296 = vmatpush1.bf16.xpose.msra.mxu0 0
        %1297 = vmatprep.subr.bf16.mxu0 0
        %1298 = vmatpush1.bf16.xpose.msra.mxu0 0
        %1299 = vmatprep.subr.bf16.mxu0 0
        %1300 = vmatpush1.bf16.xpose.msra.mxu0 0
        %1301 = vmatprep.subr.bf16.mxu0 0
        %1302 = vmatpush1.bf16.xpose.msra.mxu0 0
        %1303 = vmatprep.subr.bf16.mxu0 0
        %1304 = vmatpush1.bf16.xpose.msra.mxu0 0
        %1305 = vmatprep.subr.bf16.mxu0 0
        %1306 = vmatpush1.bf16.xpose.msra.mxu0 0
        %1307 = vmatprep.subr.bf16.mxu0 0
        %1308 = vmatpush1.bf16.xpose.msra.mxu0 0
        %1309 = vmatprep.subr.bf16.mxu0 0
        %1310 = vmatpush1.bf16.xpose.msra.mxu0 0
        %1311 = vmatprep.subr.bf16.mxu0 0
        %1312 = vmatpush1.bf16.xpose.msra.mxu0 0
        %1313 = vmatprep.mubr.bf16.mxu0 0
        %1314 = vmatmul.mubr.bf16.gmra.mrb[0].mxu0 %v1276
        %v1315 = vpop.f32.mrb[0].mxu0
        %v1316 = vadd.f32 0.0, %v1315
        %v1317 = vpop.f32.mrb[0].mxu0
        %v1318 = vpop.f32.mrb[0].mxu0
        %v1319 = vadd.f32 0.0, %v1318
        %v1320 = vpop.f32.mrb[0].mxu0
        %1321 = vdwg.mxu0
        %v1330 = vrot.slane %v862, 1
        %v1331 = vrot.slane %v865, 1
        %v1332 = vrot.slane %v1014, 1
        %v1333 = vrot.slane %v1017, 1
        %v1334 = vrot.slane %v1165, 1
        %v1335 = vrot.slane %v1168, 1
        %v1336 = vrot.slane %v1316, 1
        %v1337 = vrot.slane %v1319, 1
        %vm1346 = vcmask 1046528
        %v1347 = vsel %vm1346, %v1330, 0.0
        %v1348 = vsel %vm1346, %v1331, 0.0
        %v1349 = vsel %vm1346, %v1332, 0.0
        %v1350 = vsel %vm1346, %v1333, 0.0
        %v1351 = vsel %vm1346, %v1334, 0.0
        %v1352 = vsel %vm1346, %v1335, 0.0
        %v1353 = vsel %vm1346, %v1336, 0.0
        %v1354 = vsel %vm1346, %v1337, 0.0
        %1363 = vrot.lane.b32.xlu0 %v1347, 9
        %v1364 = vpop.permute.xlu0 %1363
        %1365 = vrot.lane.b32.xlu0 %v1348, 9
        %v1366 = vpop.permute.xlu0 %1365
        %1367 = vrot.lane.b32.xlu0 %v1349, 9
        %v1368 = vpop.permute.xlu0 %1367
        %1369 = vrot.lane.b32.xlu0 %v1350, 9
        %v1370 = vpop.permute.xlu0 %1369
        %1371 = vrot.lane.b32.xlu0 %v1351, 9
        %v1372 = vpop.permute.xlu0 %1371
        %1373 = vrot.lane.b32.xlu0 %v1352, 9
        %v1374 = vpop.permute.xlu0 %1373
        %1375 = vrot.lane.b32.xlu0 %v1353, 9
        %v1376 = vpop.permute.xlu0 %1375
        %1377 = vrot.lane.b32.xlu0 %v1354, 9
        %v1378 = vpop.permute.xlu0 %1377
        %v1387 = vsel %vm724, %v862, 0.0
        %v1388 = vsel %vm724, %v865, 0.0
        %v1389 = vsel %vm724, %v1014, 0.0
        %v1390 = vsel %vm724, %v1017, 0.0
        %v1391 = vsel %vm724, %v1165, 0.0
        %v1392 = vsel %vm724, %v1168, 0.0
        %v1393 = vsel %vm724, %v1316, 0.0
        %v1394 = vsel %vm724, %v1319, 0.0
        %vm1395 = vcmask 72704
        %v1396 = vsel %vm1395, %v1387, %v1364
        %v1397 = vsel %vm1395, %v1388, %v1366
        %v1398 = vsel %vm1395, %v1389, %v1368
        %v1399 = vsel %vm1395, %v1390, %v1370
        %v1400 = vsel %vm1395, %v1391, %v1372
        %v1401 = vsel %vm1395, %v1392, %v1374
        %v1402 = vsel %vm1395, %v1393, %v1376
        %v1403 = vsel %vm1395, %v1394, %v1378
        %1412 = vrot.lane.b32.xlu0 %v1396, 1
        %v1413 = vpop.permute.xlu0 %1412
        %1414 = vrot.lane.b32.xlu0 %v1397, 1
        %v1415 = vpop.permute.xlu0 %1414
        %1416 = vrot.lane.b32.xlu0 %v1398, 1
        %v1417 = vpop.permute.xlu0 %1416
        %1418 = vrot.lane.b32.xlu0 %v1399, 1
        %v1419 = vpop.permute.xlu0 %1418
        %1420 = vrot.lane.b32.xlu0 %v1400, 1
        %v1421 = vpop.permute.xlu0 %1420
        %1422 = vrot.lane.b32.xlu0 %v1401, 1
        %v1423 = vpop.permute.xlu0 %1422
        %1424 = vrot.lane.b32.xlu0 %v1402, 1
        %v1425 = vpop.permute.xlu0 %1424
        %1426 = vrot.lane.b32.xlu0 %v1403, 1
        %v1427 = vpop.permute.xlu0 %1426
        %1436 = vrot.lane.b32.xlu0 %v1396, 2
        %v1437 = vpop.permute.xlu0 %1436
        %1438 = vrot.lane.b32.xlu0 %v1397, 2
        %v1439 = vpop.permute.xlu0 %1438
        %1440 = vrot.lane.b32.xlu0 %v1398, 2
        %v1441 = vpop.permute.xlu0 %1440
        %1442 = vrot.lane.b32.xlu0 %v1399, 2
        %v1443 = vpop.permute.xlu0 %1442
        %1444 = vrot.lane.b32.xlu0 %v1400, 2
        %v1445 = vpop.permute.xlu0 %1444
        %1446 = vrot.lane.b32.xlu0 %v1401, 2
        %v1447 = vpop.permute.xlu0 %1446
        %1448 = vrot.lane.b32.xlu0 %v1402, 2
        %v1449 = vpop.permute.xlu0 %1448
        %1450 = vrot.lane.b32.xlu0 %v1403, 2
        %v1451 = vpop.permute.xlu0 %1450
        %1460 = vrot.lane.b32.xlu0 %v1396, 3
        %v1461 = vpop.permute.xlu0 %1460
        %1462 = vrot.lane.b32.xlu0 %v1397, 3
        %v1463 = vpop.permute.xlu0 %1462
        %1464 = vrot.lane.b32.xlu0 %v1398, 3
        %v1465 = vpop.permute.xlu0 %1464
        %1466 = vrot.lane.b32.xlu0 %v1399, 3
        %v1467 = vpop.permute.xlu0 %1466
        %1468 = vrot.lane.b32.xlu0 %v1400, 3
        %v1469 = vpop.permute.xlu0 %1468
        %1470 = vrot.lane.b32.xlu0 %v1401, 3
        %v1471 = vpop.permute.xlu0 %1470
        %1472 = vrot.lane.b32.xlu0 %v1402, 3
        %v1473 = vpop.permute.xlu0 %1472
        %1474 = vrot.lane.b32.xlu0 %v1403, 3
        %v1475 = vpop.permute.xlu0 %1474
        %1484 = vrot.lane.b32.xlu0 %v1396, 4
        %v1485 = vpop.permute.xlu0 %1484
        %1486 = vrot.lane.b32.xlu0 %v1397, 4
        %v1487 = vpop.permute.xlu0 %1486
        %1488 = vrot.lane.b32.xlu0 %v1398, 4
        %v1489 = vpop.permute.xlu0 %1488
        %1490 = vrot.lane.b32.xlu0 %v1399, 4
        %v1491 = vpop.permute.xlu0 %1490
        %1492 = vrot.lane.b32.xlu0 %v1400, 4
        %v1493 = vpop.permute.xlu0 %1492
        %1494 = vrot.lane.b32.xlu0 %v1401, 4
        %v1495 = vpop.permute.xlu0 %1494
        %1496 = vrot.lane.b32.xlu0 %v1402, 4
        %v1497 = vpop.permute.xlu0 %1496
        %1498 = vrot.lane.b32.xlu0 %v1403, 4
        %v1499 = vpop.permute.xlu0 %1498
        %1508 = vrot.lane.b32.xlu0 %v1396, 5
        %v1509 = vpop.permute.xlu0 %1508
        %1510 = vrot.lane.b32.xlu0 %v1397, 5
        %v1511 = vpop.permute.xlu0 %1510
        %1512 = vrot.lane.b32.xlu0 %v1398, 5
        %v1513 = vpop.permute.xlu0 %1512
        %1514 = vrot.lane.b32.xlu0 %v1399, 5
        %v1515 = vpop.permute.xlu0 %1514
        %1516 = vrot.lane.b32.xlu0 %v1400, 5
        %v1517 = vpop.permute.xlu0 %1516
        %1518 = vrot.lane.b32.xlu0 %v1401, 5
        %v1519 = vpop.permute.xlu0 %1518
        %1520 = vrot.lane.b32.xlu0 %v1402, 5
        %v1521 = vpop.permute.xlu0 %1520
        %1522 = vrot.lane.b32.xlu0 %v1403, 5
        %v1523 = vpop.permute.xlu0 %1522
        %1532 = vrot.lane.b32.xlu0 %v1396, 6
        %v1533 = vpop.permute.xlu0 %1532
        %1534 = vrot.lane.b32.xlu0 %v1397, 6
        %v1535 = vpop.permute.xlu0 %1534
        %1536 = vrot.lane.b32.xlu0 %v1398, 6
        %v1537 = vpop.permute.xlu0 %1536
        %1538 = vrot.lane.b32.xlu0 %v1399, 6
        %v1539 = vpop.permute.xlu0 %1538
        %1540 = vrot.lane.b32.xlu0 %v1400, 6
        %v1541 = vpop.permute.xlu0 %1540
        %1542 = vrot.lane.b32.xlu0 %v1401, 6
        %v1543 = vpop.permute.xlu0 %1542
        %1544 = vrot.lane.b32.xlu0 %v1402, 6
        %v1545 = vpop.permute.xlu0 %1544
        %1546 = vrot.lane.b32.xlu0 %v1403, 6
        %v1547 = vpop.permute.xlu0 %1546
        %1556 = vrot.lane.b32.xlu0 %v1396, 7
        %v1557 = vpop.permute.xlu0 %1556
        %1558 = vrot.lane.b32.xlu0 %v1397, 7
        %v1559 = vpop.permute.xlu0 %1558
        %1560 = vrot.lane.b32.xlu0 %v1398, 7
        %v1561 = vpop.permute.xlu0 %1560
        %1562 = vrot.lane.b32.xlu0 %v1399, 7
        %v1563 = vpop.permute.xlu0 %1562
        %1564 = vrot.lane.b32.xlu0 %v1400, 7
        %v1565 = vpop.permute.xlu0 %1564
        %1566 = vrot.lane.b32.xlu0 %v1401, 7
        %v1567 = vpop.permute.xlu0 %1566
        %1568 = vrot.lane.b32.xlu0 %v1402, 7
        %v1569 = vpop.permute.xlu0 %1568
        %1570 = vrot.lane.b32.xlu0 %v1403, 7
        %v1571 = vpop.permute.xlu0 %1570
        %vm1580 = vcmask 1040384
        %v1581 = vsel %vm1580, %v1396, %v1413
        %v1582 = vsel %vm1580, %v1397, %v1415
        %v1583 = vsel %vm1580, %v1398, %v1417
        %v1584 = vsel %vm1580, %v1399, %v1419
        %v1585 = vsel %vm1580, %v1400, %v1421
        %v1586 = vsel %vm1580, %v1401, %v1423
        %v1587 = vsel %vm1580, %v1402, %v1425
        %v1588 = vsel %vm1580, %v1403, %v1427
        %vm1589 = vcmask 1041408
        %v1590 = vsel %vm1589, %v1581, %v1437
        %v1591 = vsel %vm1589, %v1582, %v1439
        %v1592 = vsel %vm1589, %v1583, %v1441
        %v1593 = vsel %vm1589, %v1584, %v1443
        %v1594 = vsel %vm1589, %v1585, %v1445
        %v1595 = vsel %vm1589, %v1586, %v1447
        %v1596 = vsel %vm1589, %v1587, %v1449
        %v1597 = vsel %vm1589, %v1588, %v1451
        %vm1598 = vcmask 1042432
        %v1599 = vsel %vm1598, %v1590, %v1461
        %v1600 = vsel %vm1598, %v1591, %v1463
        %v1601 = vsel %vm1598, %v1592, %v1465
        %v1602 = vsel %vm1598, %v1593, %v1467
        %v1603 = vsel %vm1598, %v1594, %v1469
        %v1604 = vsel %vm1598, %v1595, %v1471
        %v1605 = vsel %vm1598, %v1596, %v1473
        %v1606 = vsel %vm1598, %v1597, %v1475
        %vm1607 = vcmask 1043456
        %v1608 = vsel %vm1607, %v1599, %v1485
        %v1609 = vsel %vm1607, %v1600, %v1487
        %v1610 = vsel %vm1607, %v1601, %v1489
        %v1611 = vsel %vm1607, %v1602, %v1491
        %v1612 = vsel %vm1607, %v1603, %v1493
        %v1613 = vsel %vm1607, %v1604, %v1495
        %v1614 = vsel %vm1607, %v1605, %v1497
        %v1615 = vsel %vm1607, %v1606, %v1499
        %vm1616 = vcmask 1044480
        %v1617 = vsel %vm1616, %v1608, %v1509
        %v1618 = vsel %vm1616, %v1609, %v1511
        %v1619 = vsel %vm1616, %v1610, %v1513
        %v1620 = vsel %vm1616, %v1611, %v1515
        %v1621 = vsel %vm1616, %v1612, %v1517
        %v1622 = vsel %vm1616, %v1613, %v1519
        %v1623 = vsel %vm1616, %v1614, %v1521
        %v1624 = vsel %vm1616, %v1615, %v1523
        %vm1625 = vcmask 1045504
        %v1626 = vsel %vm1625, %v1617, %v1533
        %v1627 = vsel %vm1625, %v1618, %v1535
        %v1628 = vsel %vm1625, %v1619, %v1537
        %v1629 = vsel %vm1625, %v1620, %v1539
        %v1630 = vsel %vm1625, %v1621, %v1541
        %v1631 = vsel %vm1625, %v1622, %v1543
        %v1632 = vsel %vm1625, %v1623, %v1545
        %v1633 = vsel %vm1625, %v1624, %v1547
        %v1634 = vsel %vm1346, %v1626, %v1557
        %v1635 = vsel %vm1346, %v1627, %v1559
        %v1636 = vsel %vm1346, %v1628, %v1561
        %v1637 = vsel %vm1346, %v1629, %v1563
        %v1638 = vsel %vm1346, %v1630, %v1565
        %v1639 = vsel %vm1346, %v1631, %v1567
        %v1640 = vsel %vm1346, %v1632, %v1569
        %v1641 = vsel %vm1346, %v1633, %v1571
        %1650 = vrot.lane.b32.xlu0 %v1634, 121
        %v1651 = vpop.permute.xlu0 %1650
        %1652 = vrot.lane.b32.xlu0 %v1635, 121
        %v1653 = vpop.permute.xlu0 %1652
        %1654 = vrot.lane.b32.xlu0 %v1636, 121
        %v1655 = vpop.permute.xlu0 %1654
        %1656 = vrot.lane.b32.xlu0 %v1637, 121
        %v1657 = vpop.permute.xlu0 %1656
        %1658 = vrot.lane.b32.xlu0 %v1638, 121
        %v1659 = vpop.permute.xlu0 %1658
        %1660 = vrot.lane.b32.xlu0 %v1639, 121
        %v1661 = vpop.permute.xlu0 %1660
        %1662 = vrot.lane.b32.xlu0 %v1640, 121
        %v1663 = vpop.permute.xlu0 %1662
        %1664 = vrot.lane.b32.xlu0 %v1641, 121
        %v1665 = vpop.permute.xlu0 %1664
        %v1674 = vadd.f32 %v766, %v1651
        %v1675 = vadd.f32 %v815, %v1653
        %v1676 = vadd.f32 %v913, %v1655
        %v1677 = vadd.f32 %v963, %v1657
        %v1678 = vadd.f32 %v1065, %v1659
        %v1679 = vadd.f32 %v1115, %v1661
        %v1680 = vadd.f32 %v1216, %v1663
        %v1681 = vadd.f32 %v1266, %v1665
        %v1684 = vlaneseq
        %v1685 = vshrl.u32 %v1684, 7
        %v1686 = vsub.s32 0, %v1685
        %v1687 = vrot.slane %v690, %v1686
        %v1688 = vlaneseq
        %v1689 = vshrl.u32 %v1688, 7
        %v1690 = vsub.s32 0, %v1689
        %v1691 = vrot.slane %v691, %v1690
        %v1694 = vadd.f32 %v1674, %v1687
        %v1695 = vadd.f32 %v1675, %v1691
        %v1696 = vadd.f32 %v1676, %v1687
        %v1697 = vadd.f32 %v1677, %v1691
        %v1698 = vadd.f32 %v1678, %v1687
        %v1699 = vadd.f32 %v1679, %v1691
        %v1700 = vadd.f32 %v1680, %v1687
        %v1701 = vadd.f32 %v1681, %v1691
        %v1702 = vsel %vm724, %v1694, -inf
        %1703 = vmax.xlane.f32.xlu0 %v1702
        %v1704 = vpop.xlane.xlu0 %1703
        %v1705 = vsel %vm724, %v1695, -inf
        %1706 = vmax.xlane.f32.xlu0 %v1705
        %v1707 = vpop.xlane.xlu0 %1706
        %v1708 = vsel %vm724, %v1696, -inf
        %1709 = vmax.xlane.f32.xlu0 %v1708
        %v1710 = vpop.xlane.xlu0 %1709
        %v1711 = vsel %vm724, %v1697, -inf
        %1712 = vmax.xlane.f32.xlu0 %v1711
        %v1713 = vpop.xlane.xlu0 %1712
        %v1714 = vsel %vm724, %v1698, -inf
        %1715 = vmax.xlane.f32.xlu0 %v1714
        %v1716 = vpop.xlane.xlu0 %1715
        %v1717 = vsel %vm724, %v1699, -inf
        %1718 = vmax.xlane.f32.xlu0 %v1717
        %v1719 = vpop.xlane.xlu0 %1718
        %v1720 = vsel %vm724, %v1700, -inf
        %1721 = vmax.xlane.f32.xlu0 %v1720
        %v1722 = vpop.xlane.xlu0 %1721
        %v1723 = vsel %vm724, %v1701, -inf
        %1724 = vmax.xlane.f32.xlu0 %v1723
        %v1725 = vpop.xlane.xlu0 %1724
        %v1726 = vsub.f32 %v1694, %v1704
        %v1727 = vsub.f32 %v1695, %v1707
        %v1728 = vsub.f32 %v1696, %v1710
        %v1729 = vsub.f32 %v1697, %v1713
        %v1730 = vsub.f32 %v1698, %v1716
        %v1731 = vsub.f32 %v1699, %v1719
        %v1732 = vsub.f32 %v1700, %v1722
        %v1733 = vsub.f32 %v1701, %v1725
        %v1734 = vmul.f32 %v1726, 1.442695
        %v1735 = vpow.pop %v1734
        %v1736 = vmul.f32 %v1727, 1.442695
        %v1737 = vpow.pop %v1736
        %v1738 = vmul.f32 %v1728, 1.442695
        %v1739 = vpow.pop %v1738
        %v1740 = vmul.f32 %v1729, 1.442695
        %v1741 = vpow.pop %v1740
        %v1742 = vmul.f32 %v1730, 1.442695
        %v1743 = vpow.pop %v1742
        %v1744 = vmul.f32 %v1731, 1.442695
        %v1745 = vpow.pop %v1744
        %v1746 = vmul.f32 %v1732, 1.442695
        %v1747 = vpow.pop %v1746
        %v1748 = vmul.f32 %v1733, 1.442695
        %v1749 = vpow.pop %v1748
        %v1750 = vsel %vm724, %v1735, 0.0
        %1751 = vadd.xlane.f32.xlu0 %v1750
        %v1752 = vpop.xlane.xlu0 %1751
        %v1753 = vsel %vm724, %v1737, 0.0
        %1754 = vadd.xlane.f32.xlu0 %v1753
        %v1755 = vpop.xlane.xlu0 %1754
        %v1756 = vsel %vm724, %v1739, 0.0
        %1757 = vadd.xlane.f32.xlu0 %v1756
        %v1758 = vpop.xlane.xlu0 %1757
        %v1759 = vsel %vm724, %v1741, 0.0
        %1760 = vadd.xlane.f32.xlu0 %v1759
        %v1761 = vpop.xlane.xlu0 %1760
        %v1762 = vsel %vm724, %v1743, 0.0
        %1763 = vadd.xlane.f32.xlu0 %v1762
        %v1764 = vpop.xlane.xlu0 %1763
        %v1765 = vsel %vm724, %v1745, 0.0
        %1766 = vadd.xlane.f32.xlu0 %v1765
        %v1767 = vpop.xlane.xlu0 %1766
        %v1768 = vsel %vm724, %v1747, 0.0
        %1769 = vadd.xlane.f32.xlu0 %v1768
        %v1770 = vpop.xlane.xlu0 %1769
        %v1771 = vsel %vm724, %v1749, 0.0
        %1772 = vadd.xlane.f32.xlu0 %v1771
        %v1773 = vpop.xlane.xlu0 %1772
        %v1774 = vrcp.pop %v1752
        %v1775 = vrcp.pop %v1755
        %v1776 = vrcp.pop %v1758
        %v1777 = vrcp.pop %v1761
        %v1778 = vrcp.pop %v1764
        %v1779 = vrcp.pop %v1767
        %v1780 = vrcp.pop %v1770
        %v1781 = vrcp.pop %v1773
        %v1782 = vmul.f32 %v1735, %v1774
        %v1783 = vmul.f32 %v1737, %v1775
        %v1784 = vmul.f32 %v1739, %v1776
        %v1785 = vmul.f32 %v1741, %v1777
        %v1786 = vmul.f32 %v1743, %v1778
        %v1787 = vmul.f32 %v1745, %v1779
        %v1788 = vmul.f32 %v1747, %v1780
        %v1789 = vmul.f32 %v1749, %v1781
        %v1790 = vpack.c.bf16 %v1782, %v1782
        %v1791 = vpack.c.bf16 %v1783, %v1783
        %1792 = vrot.lane.b32.xlu0 %v714, 64
        %v1793 = vpop.permute.xlu0 %1792
        %v1795 = vsel %vm724, %v1790, 0
        %v1798 = vsel %vm1607, %v1793, 0
        %1800 = vmatprep.subr.bf16.mxu0 0
        %1801 = vmatpush1.bf16.msra.mxu0 %v1798
        %1802 = vmatprep.subr.bf16.mxu0 0
        %1803 = vmatpush1.bf16.msra.mxu0 0
        %1804 = vmatprep.subr.bf16.mxu0 0
        %1805 = vmatpush1.bf16.msra.mxu0 0
        %1806 = vmatprep.subr.bf16.mxu0 0
        %1807 = vmatpush1.bf16.msra.mxu0 0
        %1808 = vmatprep.subr.bf16.mxu0 0
        %1809 = vmatpush1.bf16.msra.mxu0 0
        %1810 = vmatprep.subr.bf16.mxu0 0
        %1811 = vmatpush1.bf16.msra.mxu0 0
        %1812 = vmatprep.subr.bf16.mxu0 0
        %1813 = vmatpush1.bf16.msra.mxu0 0
        %1814 = vmatprep.subr.bf16.mxu0 0
        %1815 = vmatpush1.bf16.msra.mxu0 0
        %1816 = vmatprep.subr.bf16.mxu0 0
        %1817 = vmatpush1.bf16.msra.mxu0 0
        %1818 = vmatprep.subr.bf16.mxu0 0
        %1819 = vmatpush1.bf16.msra.mxu0 0
        %1820 = vmatprep.subr.bf16.mxu0 0
        %1821 = vmatpush1.bf16.msra.mxu0 0
        %1822 = vmatprep.subr.bf16.mxu0 0
        %1823 = vmatpush1.bf16.msra.mxu0 0
        %1824 = vmatprep.subr.bf16.mxu0 0
        %1825 = vmatpush1.bf16.msra.mxu0 0
        %1826 = vmatprep.subr.bf16.mxu0 0
        %1827 = vmatpush1.bf16.msra.mxu0 0
        %1828 = vmatprep.subr.bf16.mxu0 0
        %1829 = vmatpush1.bf16.msra.mxu0 0
        %1830 = vmatprep.subr.bf16.mxu0 0
        %1831 = vmatpush1.bf16.msra.mxu0 0
        %1832 = vmatprep.mubr.bf16.mxu0 0
        %1833 = vmatmul.mubr.bf16.gmra.mrb[0].mxu0 %v1795
        %v1834 = vpop.f32.mrb[0].mxu0
        %v1835 = vadd.f32 0.0, %v1834
        %v1836 = vpop.f32.mrb[0].mxu0
        %v1837 = vpop.f32.mrb[0].mxu0
        %v1838 = vpop.f32.mrb[0].mxu0
        %1839 = vdwg.mxu0
        %1840 = vrot.lane.b32.xlu0 %v715, 64
        %v1841 = vpop.permute.xlu0 %1840
        %v1843 = vsel %vm724, %v1791, 0
        %v1846 = vsel %vm1607, %v1841, 0
        %1848 = vmatprep.subr.bf16.mxu0 0
        %1849 = vmatpush1.bf16.msra.mxu0 %v1846
        %1850 = vmatprep.subr.bf16.mxu0 0
        %1851 = vmatpush1.bf16.msra.mxu0 0
        %1852 = vmatprep.subr.bf16.mxu0 0
        %1853 = vmatpush1.bf16.msra.mxu0 0
        %1854 = vmatprep.subr.bf16.mxu0 0
        %1855 = vmatpush1.bf16.msra.mxu0 0
        %1856 = vmatprep.subr.bf16.mxu0 0
        %1857 = vmatpush1.bf16.msra.mxu0 0
        %1858 = vmatprep.subr.bf16.mxu0 0
        %1859 = vmatpush1.bf16.msra.mxu0 0
        %1860 = vmatprep.subr.bf16.mxu0 0
        %1861 = vmatpush1.bf16.msra.mxu0 0
        %1862 = vmatprep.subr.bf16.mxu0 0
        %1863 = vmatpush1.bf16.msra.mxu0 0
        %1864 = vmatprep.subr.bf16.mxu0 0
        %1865 = vmatpush1.bf16.msra.mxu0 0
        %1866 = vmatprep.subr.bf16.mxu0 0
        %1867 = vmatpush1.bf16.msra.mxu0 0
        %1868 = vmatprep.subr.bf16.mxu0 0
        %1869 = vmatpush1.bf16.msra.mxu0 0
        %1870 = vmatprep.subr.bf16.mxu0 0
        %1871 = vmatpush1.bf16.msra.mxu0 0
        %1872 = vmatprep.subr.bf16.mxu0 0
        %1873 = vmatpush1.bf16.msra.mxu0 0
        %1874 = vmatprep.subr.bf16.mxu0 0
        %1875 = vmatpush1.bf16.msra.mxu0 0
        %1876 = vmatprep.subr.bf16.mxu0 0
        %1877 = vmatpush1.bf16.msra.mxu0 0
        %1878 = vmatprep.subr.bf16.mxu0 0
        %1879 = vmatpush1.bf16.msra.mxu0 0
        %1880 = vmatprep.mubr.bf16.mxu0 0
        %1881 = vmatmul.mubr.bf16.gmra.mrb[0].mxu0 %v1843
        %v1882 = vpop.f32.mrb[0].mxu0
        %v1883 = vadd.f32 0.0, %v1882
        %v1884 = vpop.f32.mrb[0].mxu0
        %v1885 = vpop.f32.mrb[0].mxu0
        %v1886 = vpop.f32.mrb[0].mxu0
        %1887 = vdwg.mxu0
        %v1888 = vpack.c.bf16 %v1883, %v1835
        %v1889 = vld [vmem:[#allocation8] sm:$0xf]
        %v1890 = vpack.c.bf16 %v1784, %v1784
        %v1891 = vpack.c.bf16 %v1785, %v1785
        %1892 = vrot.lane.b32.xlu0 %v714, 56
        %v1893 = vpop.permute.xlu0 %1892
        %v1895 = vsel %vm724, %v1890, 0
        %v1898 = vsel %vm1607, %v1893, 0
        %1900 = vmatprep.subr.bf16.mxu0 0
        %1901 = vmatpush1.bf16.msra.mxu0 %v1898
        %1902 = vmatprep.subr.bf16.mxu0 0
        %1903 = vmatpush1.bf16.msra.mxu0 0
        %1904 = vmatprep.subr.bf16.mxu0 0
        %1905 = vmatpush1.bf16.msra.mxu0 0
        %1906 = vmatprep.subr.bf16.mxu0 0
        %1907 = vmatpush1.bf16.msra.mxu0 0
        %1908 = vmatprep.subr.bf16.mxu0 0
        %1909 = vmatpush1.bf16.msra.mxu0 0
        %1910 = vmatprep.subr.bf16.mxu0 0
        %1911 = vmatpush1.bf16.msra.mxu0 0
        %1912 = vmatprep.subr.bf16.mxu0 0
        %1913 = vmatpush1.bf16.msra.mxu0 0
        %1914 = vmatprep.subr.bf16.mxu0 0
        %1915 = vmatpush1.bf16.msra.mxu0 0
        %1916 = vmatprep.subr.bf16.mxu0 0
        %1917 = vmatpush1.bf16.msra.mxu0 0
        %1918 = vmatprep.subr.bf16.mxu0 0
        %1919 = vmatpush1.bf16.msra.mxu0 0
        %1920 = vmatprep.subr.bf16.mxu0 0
        %1921 = vmatpush1.bf16.msra.mxu0 0
        %1922 = vmatprep.subr.bf16.mxu0 0
        %1923 = vmatpush1.bf16.msra.mxu0 0
        %1924 = vmatprep.subr.bf16.mxu0 0
        %1925 = vmatpush1.bf16.msra.mxu0 0
        %1926 = vmatprep.subr.bf16.mxu0 0
        %1927 = vmatpush1.bf16.msra.mxu0 0
        %1928 = vmatprep.subr.bf16.mxu0 0
        %1929 = vmatpush1.bf16.msra.mxu0 0
        %1930 = vmatprep.subr.bf16.mxu0 0
        %1931 = vmatpush1.bf16.msra.mxu0 0
        %1932 = vmatprep.mubr.bf16.mxu0 0
        %1933 = vmatmul.mubr.bf16.gmra.mrb[0].mxu0 %v1895
        %v1934 = vpop.f32.mrb[0].mxu0
        %v1935 = vadd.f32 0.0, %v1934
        %v1936 = vpop.f32.mrb[0].mxu0
        %v1937 = vpop.f32.mrb[0].mxu0
        %v1938 = vpop.f32.mrb[0].mxu0
        %1939 = vdwg.mxu0
        %1940 = vrot.lane.b32.xlu0 %v715, 56
        %v1941 = vpop.permute.xlu0 %1940
        %v1943 = vsel %vm724, %v1891, 0
        %v1946 = vsel %vm1607, %v1941, 0
        %1948 = vmatprep.subr.bf16.mxu0 0
        %1949 = vmatpush1.bf16.msra.mxu0 %v1946
        %1950 = vmatprep.subr.bf16.mxu0 0
        %1951 = vmatpush1.bf16.msra.mxu0 0
        %1952 = vmatprep.subr.bf16.mxu0 0
        %1953 = vmatpush1.bf16.msra.mxu0 0
        %1954 = vmatprep.subr.bf16.mxu0 0
        %1955 = vmatpush1.bf16.msra.mxu0 0
        %1956 = vmatprep.subr.bf16.mxu0 0
        %1957 = vmatpush1.bf16.msra.mxu0 0
        %1958 = vmatprep.subr.bf16.mxu0 0
        %1959 = vmatpush1.bf16.msra.mxu0 0
        %1960 = vmatprep.subr.bf16.mxu0 0
        %1961 = vmatpush1.bf16.msra.mxu0 0
        %1962 = vmatprep.subr.bf16.mxu0 0
        %1963 = vmatpush1.bf16.msra.mxu0 0
        %1964 = vmatprep.subr.bf16.mxu0 0
        %1965 = vmatpush1.bf16.msra.mxu0 0
        %1966 = vmatprep.subr.bf16.mxu0 0
        %1967 = vmatpush1.bf16.msra.mxu0 0
        %1968 = vmatprep.subr.bf16.mxu0 0
        %1969 = vmatpush1.bf16.msra.mxu0 0
        %1970 = vmatprep.subr.bf16.mxu0 0
        %1971 = vmatpush1.bf16.msra.mxu0 0
        %1972 = vmatprep.subr.bf16.mxu0 0
        %1973 = vmatpush1.bf16.msra.mxu0 0
        %1974 = vmatprep.subr.bf16.mxu0 0
        %1975 = vmatpush1.bf16.msra.mxu0 0
        %1976 = vmatprep.subr.bf16.mxu0 0
        %1977 = vmatpush1.bf16.msra.mxu0 0
        %1978 = vmatprep.subr.bf16.mxu0 0
        %1979 = vmatpush1.bf16.msra.mxu0 0
        %1980 = vmatprep.mubr.bf16.mxu0 0
        %1981 = vmatmul.mubr.bf16.gmra.mrb[0].mxu0 %v1943
        %v1982 = vpop.f32.mrb[0].mxu0
        %v1983 = vadd.f32 0.0, %v1982
        %v1984 = vpop.f32.mrb[0].mxu0
        %v1985 = vpop.f32.mrb[0].mxu0
        %v1986 = vpop.f32.mrb[0].mxu0
        %1987 = vdwg.mxu0
        %v1988 = vpack.c.bf16 %v1983, %v1935
        %s1989 = scalar_lea.vmem [#allocation8], 4
        %v1990 = vld [vmem:[%s1989] sm:$0xf]
        %v1992 = vsel %vm724, %v1988, 0
        %v1995 = vsel %vm1607, %v1990, 0
        %1997 = vmatprep.subr.bf16.mxu0 0
        %1998 = vmatpush1.bf16.msra.mxu0 %v1995
        %1999 = vmatprep.subr.bf16.mxu0 0
        %2000 = vmatpush1.bf16.msra.mxu0 0
        %2001 = vmatprep.subr.bf16.mxu0 0
        %2002 = vmatpush1.bf16.msra.mxu0 0
        %2003 = vmatprep.subr.bf16.mxu0 0
        %2004 = vmatpush1.bf16.msra.mxu0 0
        %2005 = vmatprep.subr.bf16.mxu0 0
        %2006 = vmatpush1.bf16.msra.mxu0 0
        %2007 = vmatprep.subr.bf16.mxu0 0
        %2008 = vmatpush1.bf16.msra.mxu0 0
        %2009 = vmatprep.subr.bf16.mxu0 0
        %2010 = vmatpush1.bf16.msra.mxu0 0
        %2011 = vmatprep.subr.bf16.mxu0 0
        %2012 = vmatpush1.bf16.msra.mxu0 0
        %2013 = vmatprep.subr.bf16.mxu0 0
        %2014 = vmatpush1.bf16.msra.mxu0 0
        %2015 = vmatprep.subr.bf16.mxu0 0
        %2016 = vmatpush1.bf16.msra.mxu0 0
        %2017 = vmatprep.subr.bf16.mxu0 0
        %2018 = vmatpush1.bf16.msra.mxu0 0
        %2019 = vmatprep.subr.bf16.mxu0 0
        %2020 = vmatpush1.bf16.msra.mxu0 0
        %2021 = vmatprep.subr.bf16.mxu0 0
        %2022 = vmatpush1.bf16.msra.mxu0 0
        %2023 = vmatprep.subr.bf16.mxu0 0
        %2024 = vmatpush1.bf16.msra.mxu0 0
        %2025 = vmatprep.subr.bf16.mxu0 0
        %2026 = vmatpush1.bf16.msra.mxu0 0
        %2027 = vmatprep.subr.bf16.mxu0 0
        %2028 = vmatpush1.bf16.msra.mxu0 0
        %2029 = vmatprep.mubr.bf16.mxu0 0
        %2030 = vmatmul.mubr.bf16.gmra.mrb[0].mxu0 %v1992
        %v2031 = vpop.f32.mrb[0].mxu0
        %v2032 = vadd.f32 0.0, %v2031
        %v2033 = vpop.f32.mrb[0].mxu0
        %v2034 = vpop.f32.mrb[0].mxu0
        %v2035 = vadd.f32 0.0, %v2034
        %v2036 = vpop.f32.mrb[0].mxu0
        %2037 = vdwg.mxu0
        %v2039 = vsel %vm724, %v1888, 0
        %v2042 = vsel %vm1607, %v1889, 0
        %2044 = vmatprep.subr.bf16.mxu0 0
        %2045 = vmatpush1.bf16.msra.mxu0 %v2042
        %2046 = vmatprep.subr.bf16.mxu0 0
        %2047 = vmatpush1.bf16.msra.mxu0 0
        %2048 = vmatprep.subr.bf16.mxu0 0
        %2049 = vmatpush1.bf16.msra.mxu0 0
        %2050 = vmatprep.subr.bf16.mxu0 0
        %2051 = vmatpush1.bf16.msra.mxu0 0
        %2052 = vmatprep.subr.bf16.mxu0 0
        %2053 = vmatpush1.bf16.msra.mxu0 0
        %2054 = vmatprep.subr.bf16.mxu0 0
        %2055 = vmatpush1.bf16.msra.mxu0 0
        %2056 = vmatprep.subr.bf16.mxu0 0
        %2057 = vmatpush1.bf16.msra.mxu0 0
        %2058 = vmatprep.subr.bf16.mxu0 0
        %2059 = vmatpush1.bf16.msra.mxu0 0
        %2060 = vmatprep.subr.bf16.mxu0 0
        %2061 = vmatpush1.bf16.msra.mxu0 0
        %2062 = vmatprep.subr.bf16.mxu0 0
        %2063 = vmatpush1.bf16.msra.mxu0 0
        %2064 = vmatprep.subr.bf16.mxu0 0
        %2065 = vmatpush1.bf16.msra.mxu0 0
        %2066 = vmatprep.subr.bf16.mxu0 0
        %2067 = vmatpush1.bf16.msra.mxu0 0
        %2068 = vmatprep.subr.bf16.mxu0 0
        %2069 = vmatpush1.bf16.msra.mxu0 0
        %2070 = vmatprep.subr.bf16.mxu0 0
        %2071 = vmatpush1.bf16.msra.mxu0 0
        %2072 = vmatprep.subr.bf16.mxu0 0
        %2073 = vmatpush1.bf16.msra.mxu0 0
        %2074 = vmatprep.subr.bf16.mxu0 0
        %2075 = vmatpush1.bf16.msra.mxu0 0
        %2076 = vmatprep.mubr.bf16.mxu0 0
        %2077 = vmatmul.mubr.bf16.gmra.mrb[0].mxu0 %v2039
        %v2078 = vpop.f32.mrb[0].mxu0
        %v2079 = vadd.f32 %v2032, %v2078
        %v2080 = vpop.f32.mrb[0].mxu0
        %v2081 = vpop.f32.mrb[0].mxu0
        %v2082 = vadd.f32 %v2035, %v2081
        %v2083 = vpop.f32.mrb[0].mxu0
        %2084 = vdwg.mxu0
        %v2085 = vpack.c.bf16 %v1786, %v1786
        %v2086 = vpack.c.bf16 %v1787, %v1787
        %2087 = vrot.lane.b32.xlu0 %v714, 48
        %v2088 = vpop.permute.xlu0 %2087
        %v2090 = vsel %vm724, %v2085, 0
        %v2093 = vsel %vm1607, %v2088, 0
        %2095 = vmatprep.subr.bf16.mxu0 0
        %2096 = vmatpush1.bf16.msra.mxu0 %v2093
        %2097 = vmatprep.subr.bf16.mxu0 0
        %2098 = vmatpush1.bf16.msra.mxu0 0
        %2099 = vmatprep.subr.bf16.mxu0 0
        %2100 = vmatpush1.bf16.msra.mxu0 0
        %2101 = vmatprep.subr.bf16.mxu0 0
        %2102 = vmatpush1.bf16.msra.mxu0 0
        %2103 = vmatprep.subr.bf16.mxu0 0
        %2104 = vmatpush1.bf16.msra.mxu0 0
        %2105 = vmatprep.subr.bf16.mxu0 0
        %2106 = vmatpush1.bf16.msra.mxu0 0
        %2107 = vmatprep.subr.bf16.mxu0 0
        %2108 = vmatpush1.bf16.msra.mxu0 0
        %2109 = vmatprep.subr.bf16.mxu0 0
        %2110 = vmatpush1.bf16.msra.mxu0 0
        %2111 = vmatprep.subr.bf16.mxu0 0
        %2112 = vmatpush1.bf16.msra.mxu0 0
        %2113 = vmatprep.subr.bf16.mxu0 0
        %2114 = vmatpush1.bf16.msra.mxu0 0
        %2115 = vmatprep.subr.bf16.mxu0 0
        %2116 = vmatpush1.bf16.msra.mxu0 0
        %2117 = vmatprep.subr.bf16.mxu0 0
        %2118 = vmatpush1.bf16.msra.mxu0 0
        %2119 = vmatprep.subr.bf16.mxu0 0
        %2120 = vmatpush1.bf16.msra.mxu0 0
        %2121 = vmatprep.subr.bf16.mxu0 0
        %2122 = vmatpush1.bf16.msra.mxu0 0
        %2123 = vmatprep.subr.bf16.mxu0 0
        %2124 = vmatpush1.bf16.msra.mxu0 0
        %2125 = vmatprep.subr.bf16.mxu0 0
        %2126 = vmatpush1.bf16.msra.mxu0 0
        %2127 = vmatprep.mubr.bf16.mxu0 0
        %2128 = vmatmul.mubr.bf16.gmra.mrb[0].mxu0 %v2090
        %v2129 = vpop.f32.mrb[0].mxu0
        %v2130 = vadd.f32 0.0, %v2129
        %v2131 = vpop.f32.mrb[0].mxu0
        %v2132 = vpop.f32.mrb[0].mxu0
        %v2133 = vpop.f32.mrb[0].mxu0
        %2134 = vdwg.mxu0
        %2135 = vrot.lane.b32.xlu0 %v715, 48
        %v2136 = vpop.permute.xlu0 %2135
        %v2138 = vsel %vm724, %v2086, 0
        %v2141 = vsel %vm1607, %v2136, 0
        %2143 = vmatprep.subr.bf16.mxu0 0
        %2144 = vmatpush1.bf16.msra.mxu0 %v2141
        %2145 = vmatprep.subr.bf16.mxu0 0
        %2146 = vmatpush1.bf16.msra.mxu0 0
        %2147 = vmatprep.subr.bf16.mxu0 0
        %2148 = vmatpush1.bf16.msra.mxu0 0
        %2149 = vmatprep.subr.bf16.mxu0 0
        %2150 = vmatpush1.bf16.msra.mxu0 0
        %2151 = vmatprep.subr.bf16.mxu0 0
        %2152 = vmatpush1.bf16.msra.mxu0 0
        %2153 = vmatprep.subr.bf16.mxu0 0
        %2154 = vmatpush1.bf16.msra.mxu0 0
        %2155 = vmatprep.subr.bf16.mxu0 0
        %2156 = vmatpush1.bf16.msra.mxu0 0
        %2157 = vmatprep.subr.bf16.mxu0 0
        %2158 = vmatpush1.bf16.msra.mxu0 0
        %2159 = vmatprep.subr.bf16.mxu0 0
        %2160 = vmatpush1.bf16.msra.mxu0 0
        %2161 = vmatprep.subr.bf16.mxu0 0
        %2162 = vmatpush1.bf16.msra.mxu0 0
        %2163 = vmatprep.subr.bf16.mxu0 0
        %2164 = vmatpush1.bf16.msra.mxu0 0
        %2165 = vmatprep.subr.bf16.mxu0 0
        %2166 = vmatpush1.bf16.msra.mxu0 0
        %2167 = vmatprep.subr.bf16.mxu0 0
        %2168 = vmatpush1.bf16.msra.mxu0 0
        %2169 = vmatprep.subr.bf16.mxu0 0
        %2170 = vmatpush1.bf16.msra.mxu0 0
        %2171 = vmatprep.subr.bf16.mxu0 0
        %2172 = vmatpush1.bf16.msra.mxu0 0
        %2173 = vmatprep.subr.bf16.mxu0 0
        %2174 = vmatpush1.bf16.msra.mxu0 0
        %2175 = vmatprep.mubr.bf16.mxu0 0
        %2176 = vmatmul.mubr.bf16.gmra.mrb[0].mxu0 %v2138
        %v2177 = vpop.f32.mrb[0].mxu0
        %v2178 = vadd.f32 0.0, %v2177
        %v2179 = vpop.f32.mrb[0].mxu0
        %v2180 = vpop.f32.mrb[0].mxu0
        %v2181 = vpop.f32.mrb[0].mxu0
        %2182 = vdwg.mxu0
        %v2183 = vpack.c.bf16 %v2178, %v2130
        %s2184 = scalar_lea.vmem [#allocation8], 8
        %v2185 = vld [vmem:[%s2184] sm:$0xf]
        %v2187 = vsel %vm724, %v2183, 0
        %v2190 = vsel %vm1607, %v2185, 0
        %2192 = vmatprep.subr.bf16.mxu0 0
        %2193 = vmatpush1.bf16.msra.mxu0 %v2190
        %2194 = vmatprep.subr.bf16.mxu0 0
        %2195 = vmatpush1.bf16.msra.mxu0 0
        %2196 = vmatprep.subr.bf16.mxu0 0
        %2197 = vmatpush1.bf16.msra.mxu0 0
        %2198 = vmatprep.subr.bf16.mxu0 0
        %2199 = vmatpush1.bf16.msra.mxu0 0
        %2200 = vmatprep.subr.bf16.mxu0 0
        %2201 = vmatpush1.bf16.msra.mxu0 0
        %2202 = vmatprep.subr.bf16.mxu0 0
        %2203 = vmatpush1.bf16.msra.mxu0 0
        %2204 = vmatprep.subr.bf16.mxu0 0
        %2205 = vmatpush1.bf16.msra.mxu0 0
        %2206 = vmatprep.subr.bf16.mxu0 0
        %2207 = vmatpush1.bf16.msra.mxu0 0
        %2208 = vmatprep.subr.bf16.mxu0 0
        %2209 = vmatpush1.bf16.msra.mxu0 0
        %2210 = vmatprep.subr.bf16.mxu0 0
        %2211 = vmatpush1.bf16.msra.mxu0 0
        %2212 = vmatprep.subr.bf16.mxu0 0
        %2213 = vmatpush1.bf16.msra.mxu0 0
        %2214 = vmatprep.subr.bf16.mxu0 0
        %2215 = vmatpush1.bf16.msra.mxu0 0
        %2216 = vmatprep.subr.bf16.mxu0 0
        %2217 = vmatpush1.bf16.msra.mxu0 0
        %2218 = vmatprep.subr.bf16.mxu0 0
        %2219 = vmatpush1.bf16.msra.mxu0 0
        %2220 = vmatprep.subr.bf16.mxu0 0
        %2221 = vmatpush1.bf16.msra.mxu0 0
        %2222 = vmatprep.subr.bf16.mxu0 0
        %2223 = vmatpush1.bf16.msra.mxu0 0
        %2224 = vmatprep.mubr.bf16.mxu0 0
        %2225 = vmatmul.mubr.bf16.gmra.mrb[0].mxu0 %v2187
        %v2226 = vpop.f32.mrb[0].mxu0
        %v2227 = vadd.f32 0.0, %v2226
        %v2228 = vpop.f32.mrb[0].mxu0
        %v2229 = vpop.f32.mrb[0].mxu0
        %v2230 = vadd.f32 0.0, %v2229
        %v2231 = vpop.f32.mrb[0].mxu0
        %2232 = vdwg.mxu0
        %v2233 = vadd.f32 %v2079, %v2227
        %v2234 = vadd.f32 %v2082, %v2230
        %v2235 = vpack.c.bf16 %v1788, %v1788
        %v2236 = vpack.c.bf16 %v1789, %v1789
        %2237 = vrot.lane.b32.xlu0 %v714, 40
        %v2238 = vpop.permute.xlu0 %2237
        %v2240 = vsel %vm724, %v2235, 0
        %v2243 = vsel %vm1607, %v2238, 0
        %2245 = vmatprep.subr.bf16.mxu0 0
        %2246 = vmatpush1.bf16.msra.mxu0 %v2243
        %2247 = vmatprep.subr.bf16.mxu0 0
        %2248 = vmatpush1.bf16.msra.mxu0 0
        %2249 = vmatprep.subr.bf16.mxu0 0
        %2250 = vmatpush1.bf16.msra.mxu0 0
        %2251 = vmatprep.subr.bf16.mxu0 0
        %2252 = vmatpush1.bf16.msra.mxu0 0
        %2253 = vmatprep.subr.bf16.mxu0 0
        %2254 = vmatpush1.bf16.msra.mxu0 0
        %2255 = vmatprep.subr.bf16.mxu0 0
        %2256 = vmatpush1.bf16.msra.mxu0 0
        %2257 = vmatprep.subr.bf16.mxu0 0
        %2258 = vmatpush1.bf16.msra.mxu0 0
        %2259 = vmatprep.subr.bf16.mxu0 0
        %2260 = vmatpush1.bf16.msra.mxu0 0
        %2261 = vmatprep.subr.bf16.mxu0 0
        %2262 = vmatpush1.bf16.msra.mxu0 0
        %2263 = vmatprep.subr.bf16.mxu0 0
        %2264 = vmatpush1.bf16.msra.mxu0 0
        %2265 = vmatprep.subr.bf16.mxu0 0
        %2266 = vmatpush1.bf16.msra.mxu0 0
        %2267 = vmatprep.subr.bf16.mxu0 0
        %2268 = vmatpush1.bf16.msra.mxu0 0
        %2269 = vmatprep.subr.bf16.mxu0 0
        %2270 = vmatpush1.bf16.msra.mxu0 0
        %2271 = vmatprep.subr.bf16.mxu0 0
        %2272 = vmatpush1.bf16.msra.mxu0 0
        %2273 = vmatprep.subr.bf16.mxu0 0
        %2274 = vmatpush1.bf16.msra.mxu0 0
        %2275 = vmatprep.subr.bf16.mxu0 0
        %2276 = vmatpush1.bf16.msra.mxu0 0
        %2277 = vmatprep.mubr.bf16.mxu0 0
        %2278 = vmatmul.mubr.bf16.gmra.mrb[0].mxu0 %v2240
        %v2279 = vpop.f32.mrb[0].mxu0
        %v2280 = vadd.f32 0.0, %v2279
        %v2281 = vpop.f32.mrb[0].mxu0
        %v2282 = vpop.f32.mrb[0].mxu0
        %v2283 = vpop.f32.mrb[0].mxu0
        %2284 = vdwg.mxu0
        %2285 = vrot.lane.b32.xlu0 %v715, 40
        %v2286 = vpop.permute.xlu0 %2285
        %v2288 = vsel %vm724, %v2236, 0
        %v2291 = vsel %vm1607, %v2286, 0
        %2293 = vmatprep.subr.bf16.mxu0 0
        %2294 = vmatpush1.bf16.msra.mxu0 %v2291
        %2295 = vmatprep.subr.bf16.mxu0 0
        %2296 = vmatpush1.bf16.msra.mxu0 0
        %2297 = vmatprep.subr.bf16.mxu0 0
        %2298 = vmatpush1.bf16.msra.mxu0 0
        %2299 = vmatprep.subr.bf16.mxu0 0
        %2300 = vmatpush1.bf16.msra.mxu0 0
        %2301 = vmatprep.subr.bf16.mxu0 0
        %2302 = vmatpush1.bf16.msra.mxu0 0
        %2303 = vmatprep.subr.bf16.mxu0 0
        %2304 = vmatpush1.bf16.msra.mxu0 0
        %2305 = vmatprep.subr.bf16.mxu0 0
        %2306 = vmatpush1.bf16.msra.mxu0 0
        %2307 = vmatprep.subr.bf16.mxu0 0
        %2308 = vmatpush1.bf16.msra.mxu0 0
        %2309 = vmatprep.subr.bf16.mxu0 0
        %2310 = vmatpush1.bf16.msra.mxu0 0
        %2311 = vmatprep.subr.bf16.mxu0 0
        %2312 = vmatpush1.bf16.msra.mxu0 0
        %2313 = vmatprep.subr.bf16.mxu0 0
        %2314 = vmatpush1.bf16.msra.mxu0 0
        %2315 = vmatprep.subr.bf16.mxu0 0
        %2316 = vmatpush1.bf16.msra.mxu0 0
        %2317 = vmatprep.subr.bf16.mxu0 0
        %2318 = vmatpush1.bf16.msra.mxu0 0
        %2319 = vmatprep.subr.bf16.mxu0 0
        %2320 = vmatpush1.bf16.msra.mxu0 0
        %2321 = vmatprep.subr.bf16.mxu0 0
        %2322 = vmatpush1.bf16.msra.mxu0 0
        %2323 = vmatprep.subr.bf16.mxu0 0
        %2324 = vmatpush1.bf16.msra.mxu0 0
        %2325 = vmatprep.mubr.bf16.mxu0 0
        %2326 = vmatmul.mubr.bf16.gmra.mrb[0].mxu0 %v2288
        %v2327 = vpop.f32.mrb[0].mxu0
        %v2328 = vadd.f32 0.0, %v2327
        %v2329 = vpop.f32.mrb[0].mxu0
        %v2330 = vpop.f32.mrb[0].mxu0
        %v2331 = vpop.f32.mrb[0].mxu0
        %2332 = vdwg.mxu0
        %v2333 = vpack.c.bf16 %v2328, %v2280
        %s2334 = scalar_lea.vmem [#allocation8], 12
        %v2335 = vld [vmem:[%s2334] sm:$0xf]
        %v2337 = vsel %vm724, %v2333, 0
        %v2340 = vsel %vm1607, %v2335, 0
        %2342 = vmatprep.subr.bf16.mxu0 0
        %2343 = vmatpush1.bf16.msra.mxu0 %v2340
        %2344 = vmatprep.subr.bf16.mxu0 0
        %2345 = vmatpush1.bf16.msra.mxu0 0
        %2346 = vmatprep.subr.bf16.mxu0 0
        %2347 = vmatpush1.bf16.msra.mxu0 0
        %2348 = vmatprep.subr.bf16.mxu0 0
        %2349 = vmatpush1.bf16.msra.mxu0 0
        %2350 = vmatprep.subr.bf16.mxu0 0
        %2351 = vmatpush1.bf16.msra.mxu0 0
        %2352 = vmatprep.subr.bf16.mxu0 0
        %2353 = vmatpush1.bf16.msra.mxu0 0
        %2354 = vmatprep.subr.bf16.mxu0 0
        %2355 = vmatpush1.bf16.msra.mxu0 0
        %2356 = vmatprep.subr.bf16.mxu0 0
        %2357 = vmatpush1.bf16.msra.mxu0 0
        %2358 = vmatprep.subr.bf16.mxu0 0
        %2359 = vmatpush1.bf16.msra.mxu0 0
        %2360 = vmatprep.subr.bf16.mxu0 0
        %2361 = vmatpush1.bf16.msra.mxu0 0
        %2362 = vmatprep.subr.bf16.mxu0 0
        %2363 = vmatpush1.bf16.msra.mxu0 0
        %2364 = vmatprep.subr.bf16.mxu0 0
        %2365 = vmatpush1.bf16.msra.mxu0 0
        %2366 = vmatprep.subr.bf16.mxu0 0
        %2367 = vmatpush1.bf16.msra.mxu0 0
        %2368 = vmatprep.subr.bf16.mxu0 0
        %2369 = vmatpush1.bf16.msra.mxu0 0
        %2370 = vmatprep.subr.bf16.mxu0 0
        %2371 = vmatpush1.bf16.msra.mxu0 0
        %2372 = vmatprep.subr.bf16.mxu0 0
        %2373 = vmatpush1.bf16.msra.mxu0 0
        %2374 = vmatprep.mubr.bf16.mxu0 0
        %2375 = vmatmul.mubr.bf16.gmra.mrb[0].mxu0 %v2337
        %v2376 = vpop.f32.mrb[0].mxu0
        %v2377 = vadd.f32 0.0, %v2376
        %v2378 = vpop.f32.mrb[0].mxu0
        %v2379 = vpop.f32.mrb[0].mxu0
        %v2380 = vadd.f32 0.0, %v2379
        %v2381 = vpop.f32.mrb[0].mxu0
        %2382 = vdwg.mxu0
        %v2383 = vadd.f32 %v2233, %v2377
        %v2384 = vadd.f32 %v2234, %v2380
        %v2385 = vlaneseq
        %v2386 = vand.u32 %v2385, 127
        %vm2387 = vcmp.lt.s32.totalorder %v2386, 32
        %v2388 = vsel %vm2387, 1, 0
        %v2389 = vcvt.s32.f32 %v2388
        %v2390 = vadd.f32 %v580, %v2383
        %v2391 = vadd.f32 %v581, %v2384
        %v2392 = vld [vmem:[%s7] sm:$0x1]
        %v2393 = vld [vmem:[%s8] sm:$0x1]
        %2394 = vadd.xlane.f32.xlu0 %v2390
        %v2395 = vpop.xlane.xlu0 %2394
        %2396 = vadd.xlane.f32.xlu0 %v2391
        %v2397 = vpop.xlane.xlu0 %2396
        %v2398 = vmul.f32 %v2395, 0.03125
        %v2399 = vmul.f32 %v2397, 0.03125
        %v2400 = vsub.f32 %v2390, %v2398
        %v2401 = vsub.f32 %v2391, %v2399
        %v2402 = vmul.f32 %v2400, %v2389
        %v2403 = vmul.f32 %v2401, %v2389
        %v2404 = vmul.f32 %v2402, %v2402
        %v2405 = vmul.f32 %v2403, %v2403
        %2406 = vadd.xlane.f32.xlu0 %v2404
        %v2407 = vpop.xlane.xlu0 %2406
        %2408 = vadd.xlane.f32.xlu0 %v2405
        %v2409 = vpop.xlane.xlu0 %2408
        %v2410 = vmul.f32 %v2407, 0.03125
        %v2411 = vmul.f32 %v2409, 0.03125
        %v2412 = vadd.f32 %v2410, 1e-05
        %v2413 = vadd.f32 %v2411, 1e-05
        %v2414 = vrsqrt.pop %v2412
        %v2415 = vrsqrt.pop %v2413
        %v2416 = vmul.f32 %v2402, %v2414
        %v2417 = vmul.f32 %v2403, %v2415
        %v2419 = vlaneseq
        %v2420 = vshrl.u32 %v2419, 7
        %v2421 = vsub.s32 0, %v2420
        %v2422 = vrot.slane %v2392, %v2421
        %v2424 = vmul.f32 %v2416, %v2422
        %v2425 = vmul.f32 %v2417, %v2422
        %v2427 = vlaneseq
        %v2428 = vshrl.u32 %v2427, 7
        %v2429 = vsub.s32 0, %v2428
        %v2430 = vrot.slane %v2393, %v2429
        %v2432 = vadd.f32 %v2424, %v2430
        %v2433 = vadd.f32 %v2425, %v2430
        %v2434 = vpack.c.bf16 %v2433, %v2432
        %v2435 = vld [vmem:[%s9] sm:$0xf]
        %v2436 = vld [vmem:[%s9 + $0x4] sm:$0xf]
        %v2437 = vld [vmem:[%s9 + $0x8] sm:$0xf]
        %v2438 = vld [vmem:[%s9 + $0xc] sm:$0xf]
        %v2439 = vld [vmem:[%s9 + $0x10] sm:$0xf]
        %v2440 = vld [vmem:[%s9 + $0x14] sm:$0xf]
        %v2441 = vld [vmem:[%s9 + $0x18] sm:$0xf]
        %v2442 = vld [vmem:[%s9 + $0x1c] sm:$0xf]
        %v2443 = vld [vmem:[%s9 + $0x20] sm:$0xf]
        %v2444 = vld [vmem:[%s9 + $0x24] sm:$0xf]
        %v2445 = vld [vmem:[%s9 + $0x28] sm:$0xf]
        %v2446 = vld [vmem:[%s9 + $0x2c] sm:$0xf]
        %v2447 = vld [vmem:[%s9 + $0x30] sm:$0xf]
        %v2448 = vld [vmem:[%s9 + $0x34] sm:$0xf]
        %v2449 = vld [vmem:[%s9 + $0x38] sm:$0xf]
        %v2450 = vld [vmem:[%s9 + $0x3c] sm:$0xf]
        %v2451 = vld [vmem:[%s10] sm:$0x1]
        %v2453 = vlaneseq
        %v2454 = vshrl.u32 %v2453, 7
        %v2455 = vsub.s32 0, %v2454
        %v2456 = vrot.slane %v2451, %v2455
        %v2474 = vunpack.c.l.b16 %v2435
        %v2475 = vunpack.c.l.b16 %v2436
        %v2476 = vunpack.c.l.b16 %v2437
        %v2477 = vunpack.c.l.b16 %v2438
        %v2478 = vunpack.c.l.b16 %v2439
        %v2479 = vunpack.c.l.b16 %v2440
        %v2480 = vunpack.c.l.b16 %v2441
        %v2481 = vunpack.c.l.b16 %v2442
        %v2482 = vunpack.c.l.b16 %v2443
        %v2483 = vunpack.c.l.b16 %v2444
        %v2484 = vunpack.c.l.b16 %v2445
        %v2485 = vunpack.c.l.b16 %v2446
        %v2486 = vunpack.c.l.b16 %v2447
        %v2487 = vunpack.c.l.b16 %v2448
        %v2488 = vunpack.c.l.b16 %v2449
        %v2489 = vunpack.c.l.b16 %v2450
        %v2490 = vpack.c.b16 %v2475, %v2474
        %v2491 = vpack.c.b16 %v2477, %v2476
        %v2492 = vpack.c.b16 %v2479, %v2478
        %v2493 = vpack.c.b16 %v2481, %v2480
        %v2494 = vpack.c.b16 %v2483, %v2482
        %v2495 = vpack.c.b16 %v2485, %v2484
        %v2496 = vpack.c.b16 %v2487, %v2486
        %v2497 = vpack.c.b16 %v2489, %v2488
        %2506 = vmatprep.subr.bf16.mxu0 0
        %2507 = vmatpush1.bf16.msra.mxu0 %v2490
        %2508 = vmatprep.subr.bf16.mxu0 0
        %2509 = vmatpush1.bf16.msra.mxu0 %v2491
        %2510 = vmatprep.subr.bf16.mxu0 0
        %2511 = vmatpush1.bf16.msra.mxu0 %v2492
        %2512 = vmatprep.subr.bf16.mxu0 0
        %2513 = vmatpush1.bf16.msra.mxu0 %v2493
        %2514 = vmatprep.subr.bf16.mxu0 0
        %2515 = vmatpush1.bf16.msra.mxu0 %v2494
        %2516 = vmatprep.subr.bf16.mxu0 0
        %2517 = vmatpush1.bf16.msra.mxu0 %v2495
        %2518 = vmatprep.subr.bf16.mxu0 0
        %2519 = vmatpush1.bf16.msra.mxu0 %v2496
        %2520 = vmatprep.subr.bf16.mxu0 0
        %2521 = vmatpush1.bf16.msra.mxu0 %v2497
        %2522 = vmatprep.subr.bf16.mxu0 0
        %2523 = vmatpush1.bf16.msra.mxu0 0
        %2524 = vmatprep.subr.bf16.mxu0 0
        %2525 = vmatpush1.bf16.msra.mxu0 0
        %2526 = vmatprep.subr.bf16.mxu0 0
        %2527 = vmatpush1.bf16.msra.mxu0 0
        %2528 = vmatprep.subr.bf16.mxu0 0
        %2529 = vmatpush1.bf16.msra.mxu0 0
        %2530 = vmatprep.subr.bf16.mxu0 0
        %2531 = vmatpush1.bf16.msra.mxu0 0
        %2532 = vmatprep.subr.bf16.mxu0 0
        %2533 = vmatpush1.bf16.msra.mxu0 0
        %2534 = vmatprep.subr.bf16.mxu0 0
        %2535 = vmatpush1.bf16.msra.mxu0 0
        %2536 = vmatprep.subr.bf16.mxu0 0
        %2537 = vmatpush1.bf16.msra.mxu0 0
        %2538 = vmatprep.mubr.bf16.mxu0 0
        %2539 = vmatmul.mubr.bf16.gmra.mrb[0].mxu0 %v2434
        %v2540 = vpop.f32.mrb[0].mxu0
        %v2541 = vadd.f32 %v2456, %v2540
        %v2542 = vpop.f32.mrb[0].mxu0
        %v2543 = vpop.f32.mrb[0].mxu0
        %v2544 = vadd.f32 %v2456, %v2543
        %v2545 = vpop.f32.mrb[0].mxu0
        %2546 = vdwg.mxu0
        %v2547 = vmax.f32 %v2541, 0.0
        %v2548 = vmax.f32 %v2544, 0.0
        %v2549 = vpack.c.bf16 %v2548, %v2547
        %v2550 = vld [vmem:[%s11] sm:$0xf]
        %v2551 = vld [vmem:[%s11 + $0x4] sm:$0xf]
        %v2552 = vld [vmem:[%s11 + $0x8] sm:$0xf]
        %v2553 = vld [vmem:[%s11 + $0xc] sm:$0xf]
        %v2554 = vld [vmem:[%s11 + $0x10] sm:$0xf]
        %v2555 = vld [vmem:[%s11 + $0x14] sm:$0xf]
        %v2556 = vld [vmem:[%s11 + $0x18] sm:$0xf]
        %v2557 = vld [vmem:[%s11 + $0x1c] sm:$0xf]
        %v2558 = vld [vmem:[%s11 + $0x20] sm:$0xf]
        %v2559 = vld [vmem:[%s11 + $0x24] sm:$0xf]
        %v2560 = vld [vmem:[%s11 + $0x28] sm:$0xf]
        %v2561 = vld [vmem:[%s11 + $0x2c] sm:$0xf]
        %v2562 = vld [vmem:[%s11 + $0x30] sm:$0xf]
        %v2563 = vld [vmem:[%s11 + $0x34] sm:$0xf]
        %v2564 = vld [vmem:[%s11 + $0x38] sm:$0xf]
        %v2565 = vld [vmem:[%s11 + $0x3c] sm:$0xf]
        %v2566 = vld [vmem:[%s12] sm:$0x1]
        %v2568 = vlaneseq
        %v2569 = vshrl.u32 %v2568, 7
        %v2570 = vsub.s32 0, %v2569
        %v2571 = vrot.slane %v2566, %v2570
        %v2589 = vunpack.c.l.b16 %v2550
        %v2590 = vunpack.c.l.b16 %v2551
        %v2591 = vunpack.c.l.b16 %v2552
        %v2592 = vunpack.c.l.b16 %v2553
        %v2593 = vunpack.c.l.b16 %v2554
        %v2594 = vunpack.c.l.b16 %v2555
        %v2595 = vunpack.c.l.b16 %v2556
        %v2596 = vunpack.c.l.b16 %v2557
        %v2597 = vunpack.c.l.b16 %v2558
        %v2598 = vunpack.c.l.b16 %v2559
        %v2599 = vunpack.c.l.b16 %v2560
        %v2600 = vunpack.c.l.b16 %v2561
        %v2601 = vunpack.c.l.b16 %v2562
        %v2602 = vunpack.c.l.b16 %v2563
        %v2603 = vunpack.c.l.b16 %v2564
        %v2604 = vunpack.c.l.b16 %v2565
        %v2605 = vpack.c.b16 %v2590, %v2589
        %v2606 = vpack.c.b16 %v2592, %v2591
        %v2607 = vpack.c.b16 %v2594, %v2593
        %v2608 = vpack.c.b16 %v2596, %v2595
        %v2609 = vpack.c.b16 %v2598, %v2597
        %v2610 = vpack.c.b16 %v2600, %v2599
        %v2611 = vpack.c.b16 %v2602, %v2601
        %v2612 = vpack.c.b16 %v2604, %v2603
        %2621 = vmatprep.subr.bf16.mxu0 0
        %2622 = vmatpush1.bf16.msra.mxu0 %v2605
        %2623 = vmatprep.subr.bf16.mxu0 0
        %2624 = vmatpush1.bf16.msra.mxu0 %v2606
        %2625 = vmatprep.subr.bf16.mxu0 0
        %2626 = vmatpush1.bf16.msra.mxu0 %v2607
        %2627 = vmatprep.subr.bf16.mxu0 0
        %2628 = vmatpush1.bf16.msra.mxu0 %v2608
        %2629 = vmatprep.subr.bf16.mxu0 0
        %2630 = vmatpush1.bf16.msra.mxu0 %v2609
        %2631 = vmatprep.subr.bf16.mxu0 0
        %2632 = vmatpush1.bf16.msra.mxu0 %v2610
        %2633 = vmatprep.subr.bf16.mxu0 0
        %2634 = vmatpush1.bf16.msra.mxu0 %v2611
        %2635 = vmatprep.subr.bf16.mxu0 0
        %2636 = vmatpush1.bf16.msra.mxu0 %v2612
        %2637 = vmatprep.subr.bf16.mxu0 0
        %2638 = vmatpush1.bf16.msra.mxu0 0
        %2639 = vmatprep.subr.bf16.mxu0 0
        %2640 = vmatpush1.bf16.msra.mxu0 0
        %2641 = vmatprep.subr.bf16.mxu0 0
        %2642 = vmatpush1.bf16.msra.mxu0 0
        %2643 = vmatprep.subr.bf16.mxu0 0
        %2644 = vmatpush1.bf16.msra.mxu0 0
        %2645 = vmatprep.subr.bf16.mxu0 0
        %2646 = vmatpush1.bf16.msra.mxu0 0
        %2647 = vmatprep.subr.bf16.mxu0 0
        %2648 = vmatpush1.bf16.msra.mxu0 0
        %2649 = vmatprep.subr.bf16.mxu0 0
        %2650 = vmatpush1.bf16.msra.mxu0 0
        %2651 = vmatprep.subr.bf16.mxu0 0
        %2652 = vmatpush1.bf16.msra.mxu0 0
        %2653 = vmatprep.mubr.bf16.mxu0 0
        %2654 = vmatmul.mubr.bf16.gmra.mrb[0].mxu0 %v2549
        %v2655 = vpop.f32.mrb[0].mxu0
        %v2656 = vadd.f32 %v2571, %v2655
        %v2657 = vpop.f32.mrb[0].mxu0
        %v2658 = vpop.f32.mrb[0].mxu0
        %v2659 = vadd.f32 %v2571, %v2658
        %v2660 = vpop.f32.mrb[0].mxu0
        %2661 = vdwg.mxu0
        %v2662 = vadd.f32 %v2432, %v2656
        %v2663 = vadd.f32 %v2433, %v2659
        %v2664 = vld [vmem:[%s13] sm:$0x1]
        %v2665 = vld [vmem:[%s14] sm:$0x1]
        %2666 = vadd.xlane.f32.xlu0 %v2662
        %v2667 = vpop.xlane.xlu0 %2666
        %2668 = vadd.xlane.f32.xlu0 %v2663
        %v2669 = vpop.xlane.xlu0 %2668
        %v2670 = vmul.f32 %v2667, 0.03125
        %v2671 = vmul.f32 %v2669, 0.03125
        %v2672 = vsub.f32 %v2662, %v2670
        %v2673 = vsub.f32 %v2663, %v2671
        %v2674 = vmul.f32 %v2672, %v2389
        %v2675 = vmul.f32 %v2673, %v2389
        %v2676 = vmul.f32 %v2674, %v2674
        %v2677 = vmul.f32 %v2675, %v2675
        %2678 = vadd.xlane.f32.xlu0 %v2676
        %v2679 = vpop.xlane.xlu0 %2678
        %2680 = vadd.xlane.f32.xlu0 %v2677
        %v2681 = vpop.xlane.xlu0 %2680
        %v2682 = vmul.f32 %v2679, 0.03125
        %v2683 = vmul.f32 %v2681, 0.03125
        %v2684 = vadd.f32 %v2682, 1e-05
        %v2685 = vadd.f32 %v2683, 1e-05
        %v2686 = vrsqrt.pop %v2684
        %v2687 = vrsqrt.pop %v2685
        %v2688 = vmul.f32 %v2674, %v2686
        %v2689 = vmul.f32 %v2675, %v2687
        %v2691 = vlaneseq
        %v2692 = vshrl.u32 %v2691, 7
        %v2693 = vsub.s32 0, %v2692
        %v2694 = vrot.slane %v2664, %v2693
        %v2696 = vmul.f32 %v2688, %v2694
        %v2697 = vmul.f32 %v2689, %v2694
        %v2699 = vlaneseq
        %v2700 = vshrl.u32 %v2699, 7
        %v2701 = vsub.s32 0, %v2700
        %v2702 = vrot.slane %v2665, %v2701
        %v2704 = vadd.f32 %v2696, %v2702
        %v2705 = vadd.f32 %v2697, %v2702
        %2706 = vst [vmem:[%s578] sm:$0xff] %v2704
        %2707 = vst [vmem:[%s578 + $0x8] sm:$0xff] %v2705
        %s2708 = sand.u32 %s366, 1
        %s2709 = scalar_lea.sflag [#allocation4], %s2708
        %s2710 = sand.u32 %s366, 1
        %s2711 = smul.addr %s2710, 16
        %s2712 = scalar_lea.vmem [#allocation9], %s2711
        // Predicated region
        $region97: #{tpu_custom_call.1} parent=79 // pred_check
          %p2713 = pneg %p376
        $region98: #{tpu_custom_call.1} parent=79 // pred_check_branch
          %2715 = sbr.rel (%p2713) target = $region100
        $region99: #{tpu_custom_call.1} parent=79 // pred_region
          %s2717 = ssub.s32 256, 256
          %2718 = vsyncadd %s2709, %s2717
          %s2719 = smul.addr %s33, 2
          %s2720 = smul.addr %s2719, 128
          %s2721 = scalar_lea.hbm %s15, %s2720
          %s2722 = sshll.u32 %s2712, 4
          %s2723 = int_to_ptr.vmem [resolvable:$true] %s2722
          %2728 = dma.vmem_to_hbm [thread:$0]  %s2723, 256, %s2721, %s2709, 128, 128, 8
        $region100: #{tpu_custom_call.1} parent=79 // pred_fallthru
          _
      $region80: #{tpu_custom_call.1} parent=5 // pred_fallthru
        _
      %p2729 = scmp.le.s32.totalorder 2, %s28
      // Predicated region
      $region101: #{tpu_custom_call.1} parent=5 // pred_check
        %p2730 = pneg %p2729
      $region102: #{tpu_custom_call.1} parent=5 // pred_check_branch
        %2732 = sbr.rel (%p2730) target = $region104
      $region103: #{tpu_custom_call.1} parent=5 // pred_region
        %s2733 = ssub.s32 %s28, 2
        // Predicated region
        $region105: #{tpu_custom_call.1} parent=103 // pred_check
          %p2734 = pneg %p382
        $region106: #{tpu_custom_call.1} parent=103 // pred_check_branch
          %2736 = sbr.rel (%p2734) target = $region108
        $region107: #{tpu_custom_call.1} parent=103 // pred_region
          %s2737 = sand.u32 %s367, 1
          %s2738 = scalar_lea.sflag [#allocation4], %s2737
          %s2739 = sand.u32 %s367, 1
          %s2740 = smul.addr %s2739, 16
          %s2741 = scalar_lea.vmem [#allocation9], %s2740
          %2742 = dma.done %s2738, 256
        $region108: #{tpu_custom_call.1} parent=103 // pred_fallthru
          _
      $region104: #{tpu_custom_call.1} parent=5 // pred_fallthru
        _
    $region6: #{tpu_custom_call.1} parent=1 // loop_footer
      %s32 = sadd.s32 1, %s28
    $region7: #{tpu_custom_call.1} parent=1 // loop_footer_branch
      %27 = sbr.rel target = $region3
    $region8: #{tpu_custom_call.1} parent=1 // loop_exit
      _
    %2743 = vsyncpa [#allocation3], 1
    %s2744 = scalar_lea.sflag [#allocation3], 1
    %2745 = vsyncpa %s2744, 1
    %2746 = vsyncpa [#allocation6], 1
    %2747 = vsyncpa [#allocation4], 1
    %s2748 = scalar_lea.sflag [#allocation4], 1
    %2749 = vsyncpa %s2748, 1

</llo_original>
